<compile_context>
chip_gen: v7x
topology: tpu7x:2x2x1
jax: 0.10.0
libtpu: 0.0.40
codegen_flags: <defaults>
</compile_context>

<pallas_src>
import functools

import jax
import jax.numpy as jnp
import numpy as np
from jax.experimental import pallas as pl
from jax.experimental.pallas import tpu as pltpu


# ------------------------------------------------------------------ kernels

def _lrelu(x, slope=0.2):
    return jnp.where(x > 0, x, slope * x)


def stats_kernel(x_ref, w1_ref, b1_ref, w2_ref, ssum_ref, ssq_ref):
    """conv1 (1x1, bias) + LeakyReLU + conv2 (1x1, no bias); emit per-tile BN partials."""
    x = x_ref[...]                                                    # (TM, Cin)
    h1 = _lrelu(jnp.dot(x, w1_ref[...],
                        preferred_element_type=jnp.float32) + b1_ref[...])
    h2 = jnp.dot(h1, w2_ref[...], preferred_element_type=jnp.float32)  # (TM, 2*ndf)

    s = jnp.sum(h2, axis=0, keepdims=True)        # (1, 2*ndf)
    sq = jnp.sum(h2 * h2, axis=0, keepdims=True)  # (1, 2*ndf)
    ssum_ref[...] = s[None]                       # (1, 1, 2*ndf) per-tile partial
    ssq_ref[...] = sq[None]


def out_kernel(x_ref, w1_ref, b1_ref, w2_ref, scale_ref, shift_ref, w3_ref, o_ref):
    """Recompute h1/h2, apply folded BatchNorm + LeakyReLU, then conv3 via VPU reduce."""
    x = x_ref[...]
    h1 = _lrelu(jnp.dot(x, w1_ref[...],
                        preferred_element_type=jnp.float32) + b1_ref[...])
    h2 = jnp.dot(h1, w2_ref[...], preferred_element_type=jnp.float32)
    h = _lrelu(h2 * scale_ref[...] + shift_ref[...])
    # conv3: output width 1 -> avoid a 1-wide MXU matmul; multiply + lane reduce.
    o_ref[...] = jnp.sum(h * w3_ref[...], axis=-1, keepdims=True)     # (TM, 1)


# ------------------------------------------------------------------ wrapper

def _choose_tile(m, tm_max):
    """Largest tile <= tm_max that divides m (prefer multiples of 8)."""
    tm_max = min(tm_max, m)
    for t in range(tm_max, 0, -1):
        if m % t == 0 and (t % 8 == 0 or t == m):
            return t
    return m


def pixel_discriminator_forward(x_nchw, params, *, tm=1024, eps=1e-5):
    N, C, H, W = x_nchw.shape
    M = N * H * W
    tm = _choose_tile(M, tm)
    nt = M // tm

    ndf = params["w1"].shape[1]
    ndf2 = params["w2"].shape[1]

    # NCHW -> (M, C) channels-last
    x = jnp.transpose(x_nchw, (0, 2, 3, 1)).reshape(M, C).astype(jnp.float32)
    w3_row = params["w3"].reshape(1, ndf2)

    grid = (nt,)

    # ---- stage 1: conv1 + lrelu + conv2, per-tile BN stat partials ----
    ssum, ssq = pl.pallas_call(
        stats_kernel,
        out_shape=(
            jax.ShapeDtypeStruct((nt, 1, ndf2), jnp.float32),
            jax.ShapeDtypeStruct((nt, 1, ndf2), jnp.float32),
        ),
        grid_spec=pltpu.PrefetchScalarGridSpec(
            num_scalar_prefetch=0,
            grid=grid,
            in_specs=[
                pl.BlockSpec((tm, C), lambda i: (i, 0)),        # x tile
                pl.BlockSpec((C, ndf), lambda i: (0, 0)),       # w1
                pl.BlockSpec((1, ndf), lambda i: (0, 0)),       # b1
                pl.BlockSpec((ndf, ndf2), lambda i: (0, 0)),    # w2
            ],
            out_specs=[
                pl.BlockSpec((1, 1, ndf2), lambda i: (i, 0, 0)),  # per-tile sum
                pl.BlockSpec((1, 1, ndf2), lambda i: (i, 0, 0)),  # per-tile sum of squares
            ],
        ),
        compiler_params=pltpu.CompilerParams(
            dimension_semantics=("parallel",)),                 # no cross-iter dependency
    )(x, params["w1"], params["b1"], params["w2"])

    # ---- tiny glue: reduce partials -> folded BN affine (plain JAX) ----
    total = jnp.sum(ssum, axis=(0, 1))                          # (2*ndf,)
    total_sq = jnp.sum(ssq, axis=(0, 1))
    mean = total / M
    var = total_sq / M - mean * mean                            # biased var (BN training mode)
    inv_std = jax.lax.rsqrt(var + eps)
    scale = (params["gamma"] * inv_std).reshape(1, ndf2)
    shift = (params["beta"] - mean * params["gamma"] * inv_std).reshape(1, ndf2)

    # ---- stage 2: recompute h1/h2 + BN + lrelu + conv3 ----
    out = pl.pallas_call(
        out_kernel,
        out_shape=jax.ShapeDtypeStruct((M, 1), jnp.float32),
        grid_spec=pltpu.PrefetchScalarGridSpec(
            num_scalar_prefetch=0,
            grid=grid,
            in_specs=[
                pl.BlockSpec((tm, C), lambda i: (i, 0)),        # x tile
                pl.BlockSpec((C, ndf), lambda i: (0, 0)),       # w1
                pl.BlockSpec((1, ndf), lambda i: (0, 0)),       # b1
                pl.BlockSpec((ndf, ndf2), lambda i: (0, 0)),    # w2
                pl.BlockSpec((1, ndf2), lambda i: (0, 0)),      # scale
                pl.BlockSpec((1, ndf2), lambda i: (0, 0)),      # shift
                pl.BlockSpec((1, ndf2), lambda i: (0, 0)),      # w3 (row)
            ],
            out_specs=pl.BlockSpec((tm, 1), lambda i: (i, 0)),
        ),
        compiler_params=pltpu.CompilerParams(
            dimension_semantics=("parallel",)),
    )(x, params["w1"], params["b1"], params["w2"], scale, shift, w3_row)

    # (M, 1) -> (N, 1, H, W)
    return jnp.transpose(out.reshape(N, H, W, 1), (0, 3, 1, 2))


# ------------------------------------------------------------------ reference (plain JAX)

def pixel_discriminator_reference(x_nchw, params, eps=1e-5):
    N, C, H, W = x_nchw.shape
    xm = jnp.transpose(x_nchw, (0, 2, 3, 1)).reshape(-1, C).astype(jnp.float32)
    h1 = _lrelu(xm @ params["w1"] + params["b1"])
    h2 = h1 @ params["w2"]
    mean = jnp.mean(h2, axis=0)
    var = jnp.mean(h2 * h2, axis=0) - mean * mean
    h2n = _lrelu((h2 - mean) * jax.lax.rsqrt(var + eps) * params["gamma"] + params["beta"])
    o = h2n @ params["w3"]
    return jnp.transpose(o.reshape(N, H, W, 1), (0, 3, 1, 2))


# ------------------------------------------------------------------ params

def init_params(key, input_nc, ndf=64):
    k1, k2, k3, kb = jax.random.split(key, 4)
    ndf2 = 2 * ndf
    # 1x1 conv weights stored as (in_c, out_c) for the channels-last matmul.
    return {
        "w1": 0.1 * jax.random.normal(k1, (input_nc, ndf), jnp.float32),
        "b1": 0.1 * jax.random.normal(kb, (1, ndf), jnp.float32),
        "w2": 0.1 * jax.random.normal(k2, (ndf, ndf2), jnp.float32),   # bias=False
        "w3": 0.1 * jax.random.normal(k3, (ndf2, 1), jnp.float32),     # bias=False
        # BatchNorm2d affine params (PyTorch default init: weight=1, bias=0)
        "gamma": jnp.ones((ndf2,), jnp.float32),
        "beta": jnp.zeros((ndf2,), jnp.float32),
    }


# ------------------------------------------------------------------ main

if __name__ == "__main__":
    key = jax.random.PRNGKey(0)
    kx, kp = jax.random.split(key)

    N, C, H, W = 2, 4, 16, 16          # batch=2, input_nc=4, 16x16 spatial
    ndf = 64

    x = jax.random.normal(kx, (N, C, H, W), jnp.float32)
    params = init_params(kp, input_nc=C, ndf=ndf)

    fwd = jax.jit(functools.partial(pixel_discriminator_forward, tm=1024))
    out = jax.block_until_ready(fwd(x, params))

    assert out.shape == (N, 1, H, W), out.shape
    assert bool(jnp.all(jnp.isfinite(out)))

    ref = jax.block_until_ready(pixel_discriminator_reference(x, params))
    np.testing.assert_allclose(np.asarray(out), np.asarray(ref), rtol=3e-2, atol=3e-2)

    print("KERNEL_OK")
</pallas_src>

<mosaic_0001>
module attributes {stable_mosaic.version = 11 : i64} {
  func.func @out_kernel(%arg0: i32, %arg1: memref<512x4xf32, #tpu.memory_space<vmem>>, %arg2: memref<4x64xf32, #tpu.memory_space<vmem>>, %arg3: memref<1x64xf32, #tpu.memory_space<vmem>>, %arg4: memref<64x128xf32, #tpu.memory_space<vmem>>, %arg5: memref<1x128xf32, #tpu.memory_space<vmem>>, %arg6: memref<1x128xf32, #tpu.memory_space<vmem>>, %arg7: memref<1x128xf32, #tpu.memory_space<vmem>>, %arg8: memref<512x1xf32, #tpu.memory_space<vmem>>) attributes {dimension_semantics = [#tpu.dimension_semantics<parallel>], iteration_bounds = array<i64: 1>, scalar_prefetch = 0 : i64, scratch_operands = 0 : i64, tpu.core_type = #tpu.core_type<tc>, window_params = [{transform_indices = @transform_0, window_bounds = array<i64: 512, 4>}, {pipeline_mode = #tpu.pipeline_mode<synchronous>, transform_indices = @transform_1, window_bounds = array<i64: 4, 64>}, {pipeline_mode = #tpu.pipeline_mode<synchronous>, transform_indices = @transform_2, window_bounds = array<i64: 1, 64>}, {pipeline_mode = #tpu.pipeline_mode<synchronous>, transform_indices = @transform_3, window_bounds = array<i64: 64, 128>}, {pipeline_mode = #tpu.pipeline_mode<synchronous>, transform_indices = @transform_4, window_bounds = array<i64: 1, 128>}, {pipeline_mode = #tpu.pipeline_mode<synchronous>, transform_indices = @transform_5, window_bounds = array<i64: 1, 128>}, {pipeline_mode = #tpu.pipeline_mode<synchronous>, transform_indices = @transform_6, window_bounds = array<i64: 1, 128>}, {transform_indices = @transform_7, window_bounds = array<i64: 512, 1>}]} {
    %c0 = arith.constant 0 : index
    %c0_0 = arith.constant 0 : index
    %0 = vector.load %arg1[%c0, %c0_0] : memref<512x4xf32, #tpu.memory_space<vmem>>, vector<512x4xf32>
    %c0_1 = arith.constant 0 : index
    %c0_2 = arith.constant 0 : index
    %1 = vector.load %arg2[%c0_1, %c0_2] : memref<4x64xf32, #tpu.memory_space<vmem>>, vector<4x64xf32>
    %cst = arith.constant dense<0.000000e+00> : vector<512x64xf32>
    %2 = tpu.matmul %0, %1, %cst {dimension_numbers = #tpu.dot_dimension_numbers<[1], [0], [0], [1], [0, 0, 1, 1], [], []>} : vector<512x4xf32>, vector<4x64xf32>, vector<512x64xf32> -> vector<512x64xf32>
    %c0_3 = arith.constant 0 : index
    %c0_4 = arith.constant 0 : index
    %3 = vector.load %arg3[%c0_3, %c0_4] : memref<1x64xf32, #tpu.memory_space<vmem>>, vector<1x64xf32>
    %4 = vector.broadcast %3 : vector<1x64xf32> to vector<512x64xf32>
    %5 = arith.addf %2, %4 : vector<512x64xf32>
    %cst_5 = arith.constant 0.000000e+00 : f32
    %6 = vector.broadcast %cst_5 : f32 to vector<512x64xf32>
    %7 = arith.cmpf ogt, %5, %6 : vector<512x64xf32>
    %cst_6 = arith.constant 2.000000e-01 : f32
    %8 = vector.broadcast %cst_6 : f32 to vector<512x64xf32>
    %9 = arith.mulf %8, %5 : vector<512x64xf32>
    %10 = arith.select %7, %5, %9 : vector<512x64xi1>, vector<512x64xf32>
    %c0_7 = arith.constant 0 : index
    %c0_8 = arith.constant 0 : index
    %11 = vector.load %arg4[%c0_7, %c0_8] : memref<64x128xf32, #tpu.memory_space<vmem>>, vector<64x128xf32>
    %cst_9 = arith.constant dense<0.000000e+00> : vector<512x128xf32>
    %12 = tpu.matmul %10, %11, %cst_9 {dimension_numbers = #tpu.dot_dimension_numbers<[1], [0], [0], [1], [0, 0, 1, 1], [], []>} : vector<512x64xf32>, vector<64x128xf32>, vector<512x128xf32> -> vector<512x128xf32>
    %c0_10 = arith.constant 0 : index
    %c0_11 = arith.constant 0 : index
    %13 = vector.load %arg5[%c0_10, %c0_11] : memref<1x128xf32, #tpu.memory_space<vmem>>, vector<1x128xf32>
    %14 = vector.broadcast %13 : vector<1x128xf32> to vector<512x128xf32>
    %15 = arith.mulf %12, %14 : vector<512x128xf32>
    %c0_12 = arith.constant 0 : index
    %c0_13 = arith.constant 0 : index
    %16 = vector.load %arg6[%c0_12, %c0_13] : memref<1x128xf32, #tpu.memory_space<vmem>>, vector<1x128xf32>
    %17 = vector.broadcast %16 : vector<1x128xf32> to vector<512x128xf32>
    %18 = arith.addf %15, %17 : vector<512x128xf32>
    %cst_14 = arith.constant 0.000000e+00 : f32
    %19 = vector.broadcast %cst_14 : f32 to vector<512x128xf32>
    %20 = arith.cmpf ogt, %18, %19 : vector<512x128xf32>
    %cst_15 = arith.constant 2.000000e-01 : f32
    %21 = vector.broadcast %cst_15 : f32 to vector<512x128xf32>
    %22 = arith.mulf %21, %18 : vector<512x128xf32>
    %23 = arith.select %20, %18, %22 : vector<512x128xi1>, vector<512x128xf32>
    %c0_16 = arith.constant 0 : index
    %c0_17 = arith.constant 0 : index
    %24 = vector.load %arg7[%c0_16, %c0_17] : memref<1x128xf32, #tpu.memory_space<vmem>>, vector<1x128xf32>
    %25 = vector.broadcast %24 : vector<1x128xf32> to vector<512x128xf32>
    %26 = arith.mulf %23, %25 : vector<512x128xf32>
    %cst_18 = arith.constant dense<0.000000e+00> : vector<512xf32>
    %27 = vector.multi_reduction <add>, %26, %cst_18 [1] : vector<512x128xf32> to vector<512xf32>
    %28 = vector.shape_cast %27 : vector<512xf32> to vector<512x1xf32>
    %c0_19 = arith.constant 0 : index
    %c0_20 = arith.constant 0 : index
    %29 = vector.load %arg8[%c0_19, %c0_20] : memref<512x1xf32, #tpu.memory_space<vmem>>, vector<512x1xf32>
    tpu.vector_store %arg8[%c0_19, %c0_20], %28 {strides = array<i32>} : memref<512x1xf32, #tpu.memory_space<vmem>>, vector<512x1xf32>,
    return
  }
  func.func @transform_0(%arg0: i32) -> (i32, i32) {
    %c0_i32 = arith.constant 0 : i32
    %c0_i32_0 = arith.constant 0 : i32
    return %arg0, %c0_i32 : i32, i32
  }
  func.func @transform_1(%arg0: i32) -> (i32, i32) {
    %c0_i32 = arith.constant 0 : i32
    %c0_i32_0 = arith.constant 0 : i32
    %c0_i32_1 = arith.constant 0 : i32
    return %c0_i32, %c0_i32_0 : i32, i32
  }
  func.func @transform_2(%arg0: i32) -> (i32, i32) {
    %c0_i32 = arith.constant 0 : i32
    %c0_i32_0 = arith.constant 0 : i32
    %c0_i32_1 = arith.constant 0 : i32
    return %c0_i32, %c0_i32_0 : i32, i32
  }
  func.func @transform_3(%arg0: i32) -> (i32, i32) {
    %c0_i32 = arith.constant 0 : i32
    %c0_i32_0 = arith.constant 0 : i32
    %c0_i32_1 = arith.constant 0 : i32
    return %c0_i32, %c0_i32_0 : i32, i32
  }
  func.func @transform_4(%arg0: i32) -> (i32, i32) {
    %c0_i32 = arith.constant 0 : i32
    %c0_i32_0 = arith.constant 0 : i32
    %c0_i32_1 = arith.constant 0 : i32
    return %c0_i32, %c0_i32_0 : i32, i32
  }
  func.func @transform_5(%arg0: i32) -> (i32, i32) {
    %c0_i32 = arith.constant 0 : i32
    %c0_i32_0 = arith.constant 0 : i32
    %c0_i32_1 = arith.constant 0 : i32
    return %c0_i32, %c0_i32_0 : i32, i32
  }
  func.func @transform_6(%arg0: i32) -> (i32, i32) {
    %c0_i32 = arith.constant 0 : i32
    %c0_i32_0 = arith.constant 0 : i32
    %c0_i32_1 = arith.constant 0 : i32
    return %c0_i32, %c0_i32_0 : i32, i32
  }
  func.func @transform_7(%arg0: i32) -> (i32, i32) {
    %c0_i32 = arith.constant 0 : i32
    %c0_i32_0 = arith.constant 0 : i32
    return %arg0, %c0_i32 : i32, i32
  }
}

module attributes {stable_mosaic.version = 11 : i64} {
  func.func @stats_kernel(%arg0: i32, %arg1: memref<512x4xf32, #tpu.memory_space<vmem>>, %arg2: memref<4x64xf32, #tpu.memory_space<vmem>>, %arg3: memref<1x64xf32, #tpu.memory_space<vmem>>, %arg4: memref<64x128xf32, #tpu.memory_space<vmem>>, %arg5: memref<1x1x128xf32, #tpu.memory_space<vmem>>, %arg6: memref<1x1x128xf32, #tpu.memory_space<vmem>>) attributes {dimension_semantics = [#tpu.dimension_semantics<parallel>], iteration_bounds = array<i64: 1>, scalar_prefetch = 0 : i64, scratch_operands = 0 : i64, tpu.core_type = #tpu.core_type<tc>, window_params = [{transform_indices = @transform_0, window_bounds = array<i64: 512, 4>}, {pipeline_mode = #tpu.pipeline_mode<synchronous>, transform_indices = @transform_1, window_bounds = array<i64: 4, 64>}, {pipeline_mode = #tpu.pipeline_mode<synchronous>, transform_indices = @transform_2, window_bounds = array<i64: 1, 64>}, {pipeline_mode = #tpu.pipeline_mode<synchronous>, transform_indices = @transform_3, window_bounds = array<i64: 64, 128>}, {transform_indices = @transform_4, window_bounds = array<i64: 1, 1, 128>}, {transform_indices = @transform_5, window_bounds = array<i64: 1, 1, 128>}]} {
    %c0 = arith.constant 0 : index
    %c0_0 = arith.constant 0 : index
    %0 = vector.load %arg1[%c0, %c0_0] : memref<512x4xf32, #tpu.memory_space<vmem>>, vector<512x4xf32>
    %c0_1 = arith.constant 0 : index
    %c0_2 = arith.constant 0 : index
    %1 = vector.load %arg2[%c0_1, %c0_2] : memref<4x64xf32, #tpu.memory_space<vmem>>, vector<4x64xf32>
    %cst = arith.constant dense<0.000000e+00> : vector<512x64xf32>
    %2 = tpu.matmul %0, %1, %cst {dimension_numbers = #tpu.dot_dimension_numbers<[1], [0], [0], [1], [0, 0, 1, 1], [], []>} : vector<512x4xf32>, vector<4x64xf32>, vector<512x64xf32> -> vector<512x64xf32>
    %c0_3 = arith.constant 0 : index
    %c0_4 = arith.constant 0 : index
    %3 = vector.load %arg3[%c0_3, %c0_4] : memref<1x64xf32, #tpu.memory_space<vmem>>, vector<1x64xf32>
    %4 = vector.broadcast %3 : vector<1x64xf32> to vector<512x64xf32>
    %5 = arith.addf %2, %4 : vector<512x64xf32>
    %cst_5 = arith.constant 0.000000e+00 : f32
    %6 = vector.broadcast %cst_5 : f32 to vector<512x64xf32>
    %7 = arith.cmpf ogt, %5, %6 : vector<512x64xf32>
    %cst_6 = arith.constant 2.000000e-01 : f32
    %8 = vector.broadcast %cst_6 : f32 to vector<512x64xf32>
    %9 = arith.mulf %8, %5 : vector<512x64xf32>
    %10 = arith.select %7, %5, %9 : vector<512x64xi1>, vector<512x64xf32>
    %c0_7 = arith.constant 0 : index
    %c0_8 = arith.constant 0 : index
    %11 = vector.load %arg4[%c0_7, %c0_8] : memref<64x128xf32, #tpu.memory_space<vmem>>, vector<64x128xf32>
    %cst_9 = arith.constant dense<0.000000e+00> : vector<512x128xf32>
    %12 = tpu.matmul %10, %11, %cst_9 {dimension_numbers = #tpu.dot_dimension_numbers<[1], [0], [0], [1], [0, 0, 1, 1], [], []>} : vector<512x64xf32>, vector<64x128xf32>, vector<512x128xf32> -> vector<512x128xf32>
    %cst_10 = arith.constant dense<0.000000e+00> : vector<128xf32>
    %13 = vector.multi_reduction <add>, %12, %cst_10 [0] : vector<512x128xf32> to vector<128xf32>
    %14 = vector.shape_cast %13 : vector<128xf32> to vector<1x128xf32>
    %15 = arith.mulf %12, %12 : vector<512x128xf32>
    %cst_11 = arith.constant dense<0.000000e+00> : vector<128xf32>
    %16 = vector.multi_reduction <add>, %15, %cst_11 [0] : vector<512x128xf32> to vector<128xf32>
    %17 = vector.shape_cast %16 : vector<128xf32> to vector<1x128xf32>
    %18 = vector.shape_cast %14 : vector<1x128xf32> to vector<1x1x128xf32>
    %c0_12 = arith.constant 0 : index
    %c0_13 = arith.constant 0 : index
    %c0_14 = arith.constant 0 : index
    %19 = vector.load %arg5[%c0_12, %c0_13, %c0_14] : memref<1x1x128xf32, #tpu.memory_space<vmem>>, vector<1x1x128xf32>
    tpu.vector_store %arg5[%c0_12, %c0_13, %c0_14], %18 {strides = array<i32>} : memref<1x1x128xf32, #tpu.memory_space<vmem>>, vector<1x1x128xf32>,
    %20 = vector.shape_cast %17 : vector<1x128xf32> to vector<1x1x128xf32>
    %c0_15 = arith.constant 0 : index
    %c0_16 = arith.constant 0 : index
    %c0_17 = arith.constant 0 : index
    %21 = vector.load %arg6[%c0_15, %c0_16, %c0_17] : memref<1x1x128xf32, #tpu.memory_space<vmem>>, vector<1x1x128xf32>
    tpu.vector_store %arg6[%c0_15, %c0_16, %c0_17], %20 {strides = array<i32>} : memref<1x1x128xf32, #tpu.memory_space<vmem>>, vector<1x1x128xf32>,
    return
  }
  func.func @transform_0(%arg0: i32) -> (i32, i32) {
    %c0_i32 = arith.constant 0 : i32
    %c0_i32_0 = arith.constant 0 : i32
    return %arg0, %c0_i32 : i32, i32
  }
  func.func @transform_1(%arg0: i32) -> (i32, i32) {
    %c0_i32 = arith.constant 0 : i32
    %c0_i32_0 = arith.constant 0 : i32
    %c0_i32_1 = arith.constant 0 : i32
    return %c0_i32, %c0_i32_0 : i32, i32
  }
  func.func @transform_2(%arg0: i32) -> (i32, i32) {
    %c0_i32 = arith.constant 0 : i32
    %c0_i32_0 = arith.constant 0 : i32
    %c0_i32_1 = arith.constant 0 : i32
    return %c0_i32, %c0_i32_0 : i32, i32
  }
  func.func @transform_3(%arg0: i32) -> (i32, i32) {
    %c0_i32 = arith.constant 0 : i32
    %c0_i32_0 = arith.constant 0 : i32
    %c0_i32_1 = arith.constant 0 : i32
    return %c0_i32, %c0_i32_0 : i32, i32
  }
  func.func @transform_4(%arg0: i32) -> (i32, i32, i32) {
    %c0_i32 = arith.constant 0 : i32
    %c0_i32_0 = arith.constant 0 : i32
    %c0_i32_1 = arith.constant 0 : i32
    return %arg0, %c0_i32, %c0_i32_0 : i32, i32, i32
  }
  func.func @transform_5(%arg0: i32) -> (i32, i32, i32) {
    %c0_i32 = arith.constant 0 : i32
    %c0_i32_0 = arith.constant 0 : i32
    %c0_i32_1 = arith.constant 0 : i32
    return %arg0, %c0_i32, %c0_i32_0 : i32, i32, i32
  }
}

</mosaic_0001>

<llo_original>
// kernel: pixel_discriminator_forward.2
$region0: #{pixel_discriminator_forward.2}
  #allocation0 [shape = 'u32[]', space=smem, size = 0x4, offset = 0x4, fixed_abs, tag = 'smem constant byte address 0x4 - core index']
  #allocation1 [shape = 'u32[144,128]{1,0:T(1,128)}', space=vmem, size = 0x12000, scoped, tag = 'internal scratch']
  %s0 = inlined_call_operand.vmem [shape: f32[512,4], index: 0, kind: input, shape index: {}]
  %s1 = inlined_call_operand.vmem [shape: f32[4,64], index: 1, kind: input, shape index: {}]
  %s2 = inlined_call_operand.vmem [shape: f32[1,64], index: 2, kind: input, shape index: {}]
  %s3 = inlined_call_operand.vmem [shape: f32[64,128], index: 3, kind: input, shape index: {}]
  %s4 = inlined_call_operand.vmem [shape: f32[1,1,128], index: 4, kind: output, shape index: {0}]
  %s5 = inlined_call_operand.vmem [shape: f32[1,1,128], index: 5, kind: output, shape index: {1}]
  %6 = xla_tuple %s4, %s5
  %s7 = sld [smem:[#allocation0]]
  $region34: #{pixel_discriminator_forward.2} parent=0
    _
  %s9 = ssub.s32 1, %s7
  %s10 = scalar_select 0, %s9, %s7
  // Predicated region
  $region2: #{pixel_discriminator_forward.2} parent=0 // pred_check
    _
  $region3: #{pixel_discriminator_forward.2} parent=0 // pred_check_branch
    %12 = sbr.rel (0) target = $region5
  $region4: #{pixel_discriminator_forward.2} parent=0 // pred_region
    _
  $region5: #{pixel_discriminator_forward.2} parent=0 // pred_fallthru
    _
  // Predicated region
  $region6: #{pixel_discriminator_forward.2} parent=0 // pred_check
    _
  $region7: #{pixel_discriminator_forward.2} parent=0 // pred_check_branch
    %14 = sbr.rel (0) target = $region9
  $region8: #{pixel_discriminator_forward.2} parent=0 // pred_region
    _
  $region9: #{pixel_discriminator_forward.2} parent=0 // pred_fallthru
    _
  // Predicated region
  $region10: #{pixel_discriminator_forward.2} parent=0 // pred_check
    _
  $region11: #{pixel_discriminator_forward.2} parent=0 // pred_check_branch
    %16 = sbr.rel (0) target = $region13
  $region12: #{pixel_discriminator_forward.2} parent=0 // pred_region
    _
  $region13: #{pixel_discriminator_forward.2} parent=0 // pred_fallthru
    _
  // Predicated region
  $region14: #{pixel_discriminator_forward.2} parent=0 // pred_check
    _
  $region15: #{pixel_discriminator_forward.2} parent=0 // pred_check_branch
    %18 = sbr.rel (0) target = $region17
  $region16: #{pixel_discriminator_forward.2} parent=0 // pred_region
    _
  $region17: #{pixel_discriminator_forward.2} parent=0 // pred_fallthru
    _
  %v19 = vld [vmem:[%s0] sm:$0xff]
  %v20 = vld [vmem:[%s0 + $0x8] sm:$0xff]
  %v21 = vld [vmem:[%s0 + $0x10] sm:$0xff]
  %v22 = vld [vmem:[%s0 + $0x18] sm:$0xff]
  %v23 = vld [vmem:[%s0 + $0x20] sm:$0xff]
  %v24 = vld [vmem:[%s0 + $0x28] sm:$0xff]
  %v25 = vld [vmem:[%s0 + $0x30] sm:$0xff]
  %v26 = vld [vmem:[%s0 + $0x38] sm:$0xff]
  %v27 = vld [vmem:[%s0 + $0x40] sm:$0xff]
  %v28 = vld [vmem:[%s0 + $0x48] sm:$0xff]
  %v29 = vld [vmem:[%s0 + $0x50] sm:$0xff]
  %v30 = vld [vmem:[%s0 + $0x58] sm:$0xff]
  %v31 = vld [vmem:[%s0 + $0x60] sm:$0xff]
  %v32 = vld [vmem:[%s0 + $0x68] sm:$0xff]
  %v33 = vld [vmem:[%s0 + $0x70] sm:$0xff]
  %v34 = vld [vmem:[%s0 + $0x78] sm:$0xff]
  %v35 = vld [vmem:[%s0 + $0x80] sm:$0xff]
  %v36 = vld [vmem:[%s0 + $0x88] sm:$0xff]
  %v37 = vld [vmem:[%s0 + $0x90] sm:$0xff]
  %v38 = vld [vmem:[%s0 + $0x98] sm:$0xff]
  %v39 = vld [vmem:[%s0 + $0xa0] sm:$0xff]
  %v40 = vld [vmem:[%s0 + $0xa8] sm:$0xff]
  %v41 = vld [vmem:[%s0 + $0xb0] sm:$0xff]
  %v42 = vld [vmem:[%s0 + $0xb8] sm:$0xff]
  %v43 = vld [vmem:[%s0 + $0xc0] sm:$0xff]
  %v44 = vld [vmem:[%s0 + $0xc8] sm:$0xff]
  %v45 = vld [vmem:[%s0 + $0xd0] sm:$0xff]
  %v46 = vld [vmem:[%s0 + $0xd8] sm:$0xff]
  %v47 = vld [vmem:[%s0 + $0xe0] sm:$0xff]
  %v48 = vld [vmem:[%s0 + $0xe8] sm:$0xff]
  %v49 = vld [vmem:[%s0 + $0xf0] sm:$0xff]
  %v50 = vld [vmem:[%s0 + $0xf8] sm:$0xff]
  %v51 = vld [vmem:[%s0 + $0x100] sm:$0xff]
  %v52 = vld [vmem:[%s0 + $0x108] sm:$0xff]
  %v53 = vld [vmem:[%s0 + $0x110] sm:$0xff]
  %v54 = vld [vmem:[%s0 + $0x118] sm:$0xff]
  %v55 = vld [vmem:[%s0 + $0x120] sm:$0xff]
  %v56 = vld [vmem:[%s0 + $0x128] sm:$0xff]
  %v57 = vld [vmem:[%s0 + $0x130] sm:$0xff]
  %v58 = vld [vmem:[%s0 + $0x138] sm:$0xff]
  %v59 = vld [vmem:[%s0 + $0x140] sm:$0xff]
  %v60 = vld [vmem:[%s0 + $0x148] sm:$0xff]
  %v61 = vld [vmem:[%s0 + $0x150] sm:$0xff]
  %v62 = vld [vmem:[%s0 + $0x158] sm:$0xff]
  %v63 = vld [vmem:[%s0 + $0x160] sm:$0xff]
  %v64 = vld [vmem:[%s0 + $0x168] sm:$0xff]
  %v65 = vld [vmem:[%s0 + $0x170] sm:$0xff]
  %v66 = vld [vmem:[%s0 + $0x178] sm:$0xff]
  %v67 = vld [vmem:[%s0 + $0x180] sm:$0xff]
  %v68 = vld [vmem:[%s0 + $0x188] sm:$0xff]
  %v69 = vld [vmem:[%s0 + $0x190] sm:$0xff]
  %v70 = vld [vmem:[%s0 + $0x198] sm:$0xff]
  %v71 = vld [vmem:[%s0 + $0x1a0] sm:$0xff]
  %v72 = vld [vmem:[%s0 + $0x1a8] sm:$0xff]
  %v73 = vld [vmem:[%s0 + $0x1b0] sm:$0xff]
  %v74 = vld [vmem:[%s0 + $0x1b8] sm:$0xff]
  %v75 = vld [vmem:[%s0 + $0x1c0] sm:$0xff]
  %v76 = vld [vmem:[%s0 + $0x1c8] sm:$0xff]
  %v77 = vld [vmem:[%s0 + $0x1d0] sm:$0xff]
  %v78 = vld [vmem:[%s0 + $0x1d8] sm:$0xff]
  %v79 = vld [vmem:[%s0 + $0x1e0] sm:$0xff]
  %v80 = vld [vmem:[%s0 + $0x1e8] sm:$0xff]
  %v81 = vld [vmem:[%s0 + $0x1f0] sm:$0xff]
  %v82 = vld [vmem:[%s0 + $0x1f8] sm:$0xff]
  %v83 = vld [vmem:[%s1] sm:$0xf]
  %v84 = vld [vmem:[%s2] sm:$0x1]
  %v86 = vlaneseq
  %v87 = vshrl.u32 %v86, 7
  %v88 = vsub.s32 0, %v87
  %v89 = vrot.slane %v84, %v88
  %vm91 = vcmask 31744
  %v93 = vsel %vm91, %v19, 0
  %v96 = vsel %vm91, %v20, 0
  %v99 = vsel %vm91, %v21, 0
  %v102 = vsel %vm91, %v22, 0
  %v105 = vsel %vm91, %v23, 0
  %v108 = vsel %vm91, %v24, 0
  %v111 = vsel %vm91, %v25, 0
  %v114 = vsel %vm91, %v26, 0
  %v117 = vsel %vm91, %v27, 0
  %v120 = vsel %vm91, %v28, 0
  %v123 = vsel %vm91, %v29, 0
  %v126 = vsel %vm91, %v30, 0
  %v129 = vsel %vm91, %v31, 0
  %v132 = vsel %vm91, %v32, 0
  %v135 = vsel %vm91, %v33, 0
  %v138 = vsel %vm91, %v34, 0
  %v141 = vsel %vm91, %v35, 0
  %v144 = vsel %vm91, %v36, 0
  %v147 = vsel %vm91, %v37, 0
  %v150 = vsel %vm91, %v38, 0
  %v153 = vsel %vm91, %v39, 0
  %v156 = vsel %vm91, %v40, 0
  %v159 = vsel %vm91, %v41, 0
  %v162 = vsel %vm91, %v42, 0
  %v165 = vsel %vm91, %v43, 0
  %v168 = vsel %vm91, %v44, 0
  %v171 = vsel %vm91, %v45, 0
  %v174 = vsel %vm91, %v46, 0
  %v177 = vsel %vm91, %v47, 0
  %v180 = vsel %vm91, %v48, 0
  %v183 = vsel %vm91, %v49, 0
  %v186 = vsel %vm91, %v50, 0
  %v189 = vsel %vm91, %v51, 0
  %v192 = vsel %vm91, %v52, 0
  %v195 = vsel %vm91, %v53, 0
  %v198 = vsel %vm91, %v54, 0
  %v201 = vsel %vm91, %v55, 0
  %v204 = vsel %vm91, %v56, 0
  %v207 = vsel %vm91, %v57, 0
  %v210 = vsel %vm91, %v58, 0
  %v213 = vsel %vm91, %v59, 0
  %v216 = vsel %vm91, %v60, 0
  %v219 = vsel %vm91, %v61, 0
  %v222 = vsel %vm91, %v62, 0
  %v225 = vsel %vm91, %v63, 0
  %v228 = vsel %vm91, %v64, 0
  %v231 = vsel %vm91, %v65, 0
  %v234 = vsel %vm91, %v66, 0
  %v237 = vsel %vm91, %v67, 0
  %v240 = vsel %vm91, %v68, 0
  %v243 = vsel %vm91, %v69, 0
  %v246 = vsel %vm91, %v70, 0
  %v249 = vsel %vm91, %v71, 0
  %v252 = vsel %vm91, %v72, 0
  %v255 = vsel %vm91, %v73, 0
  %v258 = vsel %vm91, %v74, 0
  %v261 = vsel %vm91, %v75, 0
  %v264 = vsel %vm91, %v76, 0
  %v267 = vsel %vm91, %v77, 0
  %v270 = vsel %vm91, %v78, 0
  %v273 = vsel %vm91, %v79, 0
  %v276 = vsel %vm91, %v80, 0
  %v279 = vsel %vm91, %v81, 0
  %v282 = vsel %vm91, %v82, 0
  %vm284 = vcmask 1043456
  %v286 = vsel %vm284, %v83, 0
  %288 = vmatprep.subr.mxu0 0.0
  %289 = vmatpush1.msra.mxu0 %v286
  %290 = vmatprep.subr.mxu0 0.0
  %291 = vmatpush1.msra.mxu0 0.0
  %292 = vmatprep.subr.mxu0 0.0
  %293 = vmatpush1.msra.mxu0 0.0
  %294 = vmatprep.subr.mxu0 0.0
  %295 = vmatpush1.msra.mxu0 0.0
  %296 = vmatprep.subr.mxu0 0.0
  %297 = vmatpush1.msra.mxu0 0.0
  %298 = vmatprep.subr.mxu0 0.0
  %299 = vmatpush1.msra.mxu0 0.0
  %300 = vmatprep.subr.mxu0 0.0
  %301 = vmatpush1.msra.mxu0 0.0
  %302 = vmatprep.subr.mxu0 0.0
  %303 = vmatpush1.msra.mxu0 0.0
  %304 = vmatprep.subr.mxu0 0.0
  %305 = vmatpush1.msra.mxu0 0.0
  %306 = vmatprep.subr.mxu0 0.0
  %307 = vmatpush1.msra.mxu0 0.0
  %308 = vmatprep.subr.mxu0 0.0
  %309 = vmatpush1.msra.mxu0 0.0
  %310 = vmatprep.subr.mxu0 0.0
  %311 = vmatpush1.msra.mxu0 0.0
  %312 = vmatprep.subr.mxu0 0.0
  %313 = vmatpush1.msra.mxu0 0.0
  %314 = vmatprep.subr.mxu0 0.0
  %315 = vmatpush1.msra.mxu0 0.0
  %316 = vmatprep.subr.mxu0 0.0
  %317 = vmatpush1.msra.mxu0 0.0
  %318 = vmatprep.subr.mxu0 0.0
  %319 = vmatpush1.msra.mxu0 0.0
  %320 = vmatprep.subr.mxu0 0.0
  %321 = vmatpush1.msra.mxu0 0.0
  %322 = vmatprep.subr.mxu0 0.0
  %323 = vmatpush1.msra.mxu0 0.0
  %324 = vmatprep.subr.mxu0 0.0
  %325 = vmatpush1.msra.mxu0 0.0
  %326 = vmatprep.subr.mxu0 0.0
  %327 = vmatpush1.msra.mxu0 0.0
  %328 = vmatprep.subr.mxu0 0.0
  %329 = vmatpush1.msra.mxu0 0.0
  %330 = vmatprep.subr.mxu0 0.0
  %331 = vmatpush1.msra.mxu0 0.0
  %332 = vmatprep.subr.mxu0 0.0
  %333 = vmatpush1.msra.mxu0 0.0
  %334 = vmatprep.subr.mxu0 0.0
  %335 = vmatpush1.msra.mxu0 0.0
  %336 = vmatprep.subr.mxu0 0.0
  %337 = vmatpush1.msra.mxu0 0.0
  %338 = vmatprep.subr.mxu0 0.0
  %339 = vmatpush1.msra.mxu0 0.0
  %340 = vmatprep.subr.mxu0 0.0
  %341 = vmatpush1.msra.mxu0 0.0
  %342 = vmatprep.subr.mxu0 0.0
  %343 = vmatpush1.msra.mxu0 0.0
  %344 = vmatprep.subr.mxu0 0.0
  %345 = vmatpush1.msra.mxu0 0.0
  %346 = vmatprep.subr.mxu0 0.0
  %347 = vmatpush1.msra.mxu0 0.0
  %348 = vmatprep.subr.mxu0 0.0
  %349 = vmatpush1.msra.mxu0 0.0
  %350 = vmatprep.subr.mxu0 0.0
  %351 = vmatpush1.msra.mxu0 0.0
  %352 = vmatprep.mubr.f32.mxu0 0.0
  %353 = vmatmul.mubr.f32.gmra.mrb[0].mxu0 %v93
  %v354 = vpop.f32.mrb[0].mxu0
  %v355 = vadd.f32 %v89, %v354
  %v356 = vpop.f32.mrb[0].mxu0
  %357 = vmatprep.mubr.f32.mxu0 0.0
  %358 = vmatmul.mubr.f32.gmra.mrb[0].mxu0 %v96
  %v359 = vpop.f32.mrb[0].mxu0
  %v360 = vadd.f32 %v89, %v359
  %v361 = vpop.f32.mrb[0].mxu0
  %362 = vmatprep.mubr.f32.mxu0 0.0
  %363 = vmatmul.mubr.f32.gmra.mrb[0].mxu0 %v99
  %v364 = vpop.f32.mrb[0].mxu0
  %v365 = vadd.f32 %v89, %v364
  %v366 = vpop.f32.mrb[0].mxu0
  %367 = vmatprep.mubr.f32.mxu0 0.0
  %368 = vmatmul.mubr.f32.gmra.mrb[0].mxu0 %v102
  %v369 = vpop.f32.mrb[0].mxu0
  %v370 = vadd.f32 %v89, %v369
  %v371 = vpop.f32.mrb[0].mxu0
  %372 = vmatprep.mubr.f32.mxu0 0.0
  %373 = vmatmul.mubr.f32.gmra.mrb[0].mxu0 %v105
  %v374 = vpop.f32.mrb[0].mxu0
  %v375 = vadd.f32 %v89, %v374
  %v376 = vpop.f32.mrb[0].mxu0
  %377 = vmatprep.mubr.f32.mxu0 0.0
  %378 = vmatmul.mubr.f32.gmra.mrb[0].mxu0 %v108
  %v379 = vpop.f32.mrb[0].mxu0
  %v380 = vadd.f32 %v89, %v379
  %v381 = vpop.f32.mrb[0].mxu0
  %382 = vmatprep.mubr.f32.mxu0 0.0
  %383 = vmatmul.mubr.f32.gmra.mrb[0].mxu0 %v111
  %v384 = vpop.f32.mrb[0].mxu0
  %v385 = vadd.f32 %v89, %v384
  %v386 = vpop.f32.mrb[0].mxu0
  %387 = vmatprep.mubr.f32.mxu0 0.0
  %388 = vmatmul.mubr.f32.gmra.mrb[0].mxu0 %v114
  %v389 = vpop.f32.mrb[0].mxu0
  %v390 = vadd.f32 %v89, %v389
  %v391 = vpop.f32.mrb[0].mxu0
  %392 = vmatprep.mubr.f32.mxu0 0.0
  %393 = vmatmul.mubr.f32.gmra.mrb[0].mxu0 %v117
  %v394 = vpop.f32.mrb[0].mxu0
  %v395 = vadd.f32 %v89, %v394
  %v396 = vpop.f32.mrb[0].mxu0
  %397 = vmatprep.mubr.f32.mxu0 0.0
  %398 = vmatmul.mubr.f32.gmra.mrb[0].mxu0 %v120
  %v399 = vpop.f32.mrb[0].mxu0
  %v400 = vadd.f32 %v89, %v399
  %v401 = vpop.f32.mrb[0].mxu0
  %402 = vmatprep.mubr.f32.mxu0 0.0
  %403 = vmatmul.mubr.f32.gmra.mrb[0].mxu0 %v123
  %v404 = vpop.f32.mrb[0].mxu0
  %v405 = vadd.f32 %v89, %v404
  %v406 = vpop.f32.mrb[0].mxu0
  %407 = vmatprep.mubr.f32.mxu0 0.0
  %408 = vmatmul.mubr.f32.gmra.mrb[0].mxu0 %v126
  %v409 = vpop.f32.mrb[0].mxu0
  %v410 = vadd.f32 %v89, %v409
  %v411 = vpop.f32.mrb[0].mxu0
  %412 = vmatprep.mubr.f32.mxu0 0.0
  %413 = vmatmul.mubr.f32.gmra.mrb[0].mxu0 %v129
  %v414 = vpop.f32.mrb[0].mxu0
  %v415 = vadd.f32 %v89, %v414
  %v416 = vpop.f32.mrb[0].mxu0
  %417 = vmatprep.mubr.f32.mxu0 0.0
  %418 = vmatmul.mubr.f32.gmra.mrb[0].mxu0 %v132
  %v419 = vpop.f32.mrb[0].mxu0
  %v420 = vadd.f32 %v89, %v419
  %v421 = vpop.f32.mrb[0].mxu0
  %422 = vmatprep.mubr.f32.mxu0 0.0
  %423 = vmatmul.mubr.f32.gmra.mrb[0].mxu0 %v135
  %v424 = vpop.f32.mrb[0].mxu0
  %v425 = vadd.f32 %v89, %v424
  %v426 = vpop.f32.mrb[0].mxu0
  %427 = vmatprep.mubr.f32.mxu0 0.0
  %428 = vmatmul.mubr.f32.gmra.mrb[0].mxu0 %v138
  %v429 = vpop.f32.mrb[0].mxu0
  %v430 = vadd.f32 %v89, %v429
  %v431 = vpop.f32.mrb[0].mxu0
  %432 = vmatprep.mubr.f32.mxu0 0.0
  %433 = vmatmul.mubr.f32.gmra.mrb[0].mxu0 %v141
  %v434 = vpop.f32.mrb[0].mxu0
  %v435 = vadd.f32 %v89, %v434
  %v436 = vpop.f32.mrb[0].mxu0
  %437 = vmatprep.mubr.f32.mxu0 0.0
  %438 = vmatmul.mubr.f32.gmra.mrb[0].mxu0 %v144
  %v439 = vpop.f32.mrb[0].mxu0
  %v440 = vadd.f32 %v89, %v439
  %v441 = vpop.f32.mrb[0].mxu0
  %442 = vmatprep.mubr.f32.mxu0 0.0
  %443 = vmatmul.mubr.f32.gmra.mrb[0].mxu0 %v147
  %v444 = vpop.f32.mrb[0].mxu0
  %v445 = vadd.f32 %v89, %v444
  %v446 = vpop.f32.mrb[0].mxu0
  %447 = vmatprep.mubr.f32.mxu0 0.0
  %448 = vmatmul.mubr.f32.gmra.mrb[0].mxu0 %v150
  %v449 = vpop.f32.mrb[0].mxu0
  %v450 = vadd.f32 %v89, %v449
  %v451 = vpop.f32.mrb[0].mxu0
  %452 = vmatprep.mubr.f32.mxu0 0.0
  %453 = vmatmul.mubr.f32.gmra.mrb[0].mxu0 %v153
  %v454 = vpop.f32.mrb[0].mxu0
  %v455 = vadd.f32 %v89, %v454
  %v456 = vpop.f32.mrb[0].mxu0
  %457 = vmatprep.mubr.f32.mxu0 0.0
  %458 = vmatmul.mubr.f32.gmra.mrb[0].mxu0 %v156
  %v459 = vpop.f32.mrb[0].mxu0
  %v460 = vadd.f32 %v89, %v459
  %v461 = vpop.f32.mrb[0].mxu0
  %462 = vmatprep.mubr.f32.mxu0 0.0
  %463 = vmatmul.mubr.f32.gmra.mrb[0].mxu0 %v159
  %v464 = vpop.f32.mrb[0].mxu0
  %v465 = vadd.f32 %v89, %v464
  %v466 = vpop.f32.mrb[0].mxu0
  %467 = vmatprep.mubr.f32.mxu0 0.0
  %468 = vmatmul.mubr.f32.gmra.mrb[0].mxu0 %v162
  %v469 = vpop.f32.mrb[0].mxu0
  %v470 = vadd.f32 %v89, %v469
  %v471 = vpop.f32.mrb[0].mxu0
  %472 = vmatprep.mubr.f32.mxu0 0.0
  %473 = vmatmul.mubr.f32.gmra.mrb[0].mxu0 %v165
  %v474 = vpop.f32.mrb[0].mxu0
  %v475 = vadd.f32 %v89, %v474
  %v476 = vpop.f32.mrb[0].mxu0
  %477 = vmatprep.mubr.f32.mxu0 0.0
  %478 = vmatmul.mubr.f32.gmra.mrb[0].mxu0 %v168
  %v479 = vpop.f32.mrb[0].mxu0
  %v480 = vadd.f32 %v89, %v479
  %v481 = vpop.f32.mrb[0].mxu0
  %482 = vmatprep.mubr.f32.mxu0 0.0
  %483 = vmatmul.mubr.f32.gmra.mrb[0].mxu0 %v171
  %v484 = vpop.f32.mrb[0].mxu0
  %v485 = vadd.f32 %v89, %v484
  %v486 = vpop.f32.mrb[0].mxu0
  %487 = vmatprep.mubr.f32.mxu0 0.0
  %488 = vmatmul.mubr.f32.gmra.mrb[0].mxu0 %v174
  %v489 = vpop.f32.mrb[0].mxu0
  %v490 = vadd.f32 %v89, %v489
  %v491 = vpop.f32.mrb[0].mxu0
  %492 = vmatprep.mubr.f32.mxu0 0.0
  %493 = vmatmul.mubr.f32.gmra.mrb[0].mxu0 %v177
  %v494 = vpop.f32.mrb[0].mxu0
  %v495 = vadd.f32 %v89, %v494
  %v496 = vpop.f32.mrb[0].mxu0
  %497 = vmatprep.mubr.f32.mxu0 0.0
  %498 = vmatmul.mubr.f32.gmra.mrb[0].mxu0 %v180
  %v499 = vpop.f32.mrb[0].mxu0
  %v500 = vadd.f32 %v89, %v499
  %v501 = vpop.f32.mrb[0].mxu0
  %502 = vmatprep.mubr.f32.mxu0 0.0
  %503 = vmatmul.mubr.f32.gmra.mrb[0].mxu0 %v183
  %v504 = vpop.f32.mrb[0].mxu0
  %v505 = vadd.f32 %v89, %v504
  %v506 = vpop.f32.mrb[0].mxu0
  %507 = vmatprep.mubr.f32.mxu0 0.0
  %508 = vmatmul.mubr.f32.gmra.mrb[0].mxu0 %v186
  %v509 = vpop.f32.mrb[0].mxu0
  %v510 = vadd.f32 %v89, %v509
  %v511 = vpop.f32.mrb[0].mxu0
  %512 = vmatprep.mubr.f32.mxu0 0.0
  %513 = vmatmul.mubr.f32.gmra.mrb[0].mxu0 %v189
  %v514 = vpop.f32.mrb[0].mxu0
  %v515 = vadd.f32 %v89, %v514
  %v516 = vpop.f32.mrb[0].mxu0
  %517 = vmatprep.mubr.f32.mxu0 0.0
  %518 = vmatmul.mubr.f32.gmra.mrb[0].mxu0 %v192
  %v519 = vpop.f32.mrb[0].mxu0
  %v520 = vadd.f32 %v89, %v519
  %v521 = vpop.f32.mrb[0].mxu0
  %522 = vmatprep.mubr.f32.mxu0 0.0
  %523 = vmatmul.mubr.f32.gmra.mrb[0].mxu0 %v195
  %v524 = vpop.f32.mrb[0].mxu0
  %v525 = vadd.f32 %v89, %v524
  %v526 = vpop.f32.mrb[0].mxu0
  %527 = vmatprep.mubr.f32.mxu0 0.0
  %528 = vmatmul.mubr.f32.gmra.mrb[0].mxu0 %v198
  %v529 = vpop.f32.mrb[0].mxu0
  %v530 = vadd.f32 %v89, %v529
  %v531 = vpop.f32.mrb[0].mxu0
  %532 = vmatprep.mubr.f32.mxu0 0.0
  %533 = vmatmul.mubr.f32.gmra.mrb[0].mxu0 %v201
  %v534 = vpop.f32.mrb[0].mxu0
  %v535 = vadd.f32 %v89, %v534
  %v536 = vpop.f32.mrb[0].mxu0
  %537 = vmatprep.mubr.f32.mxu0 0.0
  %538 = vmatmul.mubr.f32.gmra.mrb[0].mxu0 %v204
  %v539 = vpop.f32.mrb[0].mxu0
  %v540 = vadd.f32 %v89, %v539
  %v541 = vpop.f32.mrb[0].mxu0
  %542 = vmatprep.mubr.f32.mxu0 0.0
  %543 = vmatmul.mubr.f32.gmra.mrb[0].mxu0 %v207
  %v544 = vpop.f32.mrb[0].mxu0
  %v545 = vadd.f32 %v89, %v544
  %v546 = vpop.f32.mrb[0].mxu0
  %547 = vmatprep.mubr.f32.mxu0 0.0
  %548 = vmatmul.mubr.f32.gmra.mrb[0].mxu0 %v210
  %v549 = vpop.f32.mrb[0].mxu0
  %v550 = vadd.f32 %v89, %v549
  %v551 = vpop.f32.mrb[0].mxu0
  %552 = vmatprep.mubr.f32.mxu0 0.0
  %553 = vmatmul.mubr.f32.gmra.mrb[0].mxu0 %v213
  %v554 = vpop.f32.mrb[0].mxu0
  %v555 = vadd.f32 %v89, %v554
  %v556 = vpop.f32.mrb[0].mxu0
  %557 = vmatprep.mubr.f32.mxu0 0.0
  %558 = vmatmul.mubr.f32.gmra.mrb[0].mxu0 %v216
  %v559 = vpop.f32.mrb[0].mxu0
  %v560 = vadd.f32 %v89, %v559
  %v561 = vpop.f32.mrb[0].mxu0
  %562 = vmatprep.mubr.f32.mxu0 0.0
  %563 = vmatmul.mubr.f32.gmra.mrb[0].mxu0 %v219
  %v564 = vpop.f32.mrb[0].mxu0
  %v565 = vadd.f32 %v89, %v564
  %v566 = vpop.f32.mrb[0].mxu0
  %567 = vmatprep.mubr.f32.mxu0 0.0
  %568 = vmatmul.mubr.f32.gmra.mrb[0].mxu0 %v222
  %v569 = vpop.f32.mrb[0].mxu0
  %v570 = vadd.f32 %v89, %v569
  %v571 = vpop.f32.mrb[0].mxu0
  %572 = vmatprep.mubr.f32.mxu0 0.0
  %573 = vmatmul.mubr.f32.gmra.mrb[0].mxu0 %v225
  %v574 = vpop.f32.mrb[0].mxu0
  %v575 = vadd.f32 %v89, %v574
  %v576 = vpop.f32.mrb[0].mxu0
  %577 = vmatprep.mubr.f32.mxu0 0.0
  %578 = vmatmul.mubr.f32.gmra.mrb[0].mxu0 %v228
  %v579 = vpop.f32.mrb[0].mxu0
  %v580 = vadd.f32 %v89, %v579
  %v581 = vpop.f32.mrb[0].mxu0
  %582 = vmatprep.mubr.f32.mxu0 0.0
  %583 = vmatmul.mubr.f32.gmra.mrb[0].mxu0 %v231
  %v584 = vpop.f32.mrb[0].mxu0
  %v585 = vadd.f32 %v89, %v584
  %v586 = vpop.f32.mrb[0].mxu0
  %587 = vmatprep.mubr.f32.mxu0 0.0
  %588 = vmatmul.mubr.f32.gmra.mrb[0].mxu0 %v234
  %v589 = vpop.f32.mrb[0].mxu0
  %v590 = vadd.f32 %v89, %v589
  %v591 = vpop.f32.mrb[0].mxu0
  %592 = vmatprep.mubr.f32.mxu0 0.0
  %593 = vmatmul.mubr.f32.gmra.mrb[0].mxu0 %v237
  %v594 = vpop.f32.mrb[0].mxu0
  %v595 = vadd.f32 %v89, %v594
  %v596 = vpop.f32.mrb[0].mxu0
  %597 = vmatprep.mubr.f32.mxu0 0.0
  %598 = vmatmul.mubr.f32.gmra.mrb[0].mxu0 %v240
  %v599 = vpop.f32.mrb[0].mxu0
  %v600 = vadd.f32 %v89, %v599
  %v601 = vpop.f32.mrb[0].mxu0
  %602 = vmatprep.mubr.f32.mxu0 0.0
  %603 = vmatmul.mubr.f32.gmra.mrb[0].mxu0 %v243
  %v604 = vpop.f32.mrb[0].mxu0
  %v605 = vadd.f32 %v89, %v604
  %v606 = vpop.f32.mrb[0].mxu0
  %607 = vmatprep.mubr.f32.mxu0 0.0
  %608 = vmatmul.mubr.f32.gmra.mrb[0].mxu0 %v246
  %v609 = vpop.f32.mrb[0].mxu0
  %v610 = vadd.f32 %v89, %v609
  %v611 = vpop.f32.mrb[0].mxu0
  %612 = vmatprep.mubr.f32.mxu0 0.0
  %613 = vmatmul.mubr.f32.gmra.mrb[0].mxu0 %v249
  %v614 = vpop.f32.mrb[0].mxu0
  %v615 = vadd.f32 %v89, %v614
  %v616 = vpop.f32.mrb[0].mxu0
  %617 = vmatprep.mubr.f32.mxu0 0.0
  %618 = vmatmul.mubr.f32.gmra.mrb[0].mxu0 %v252
  %v619 = vpop.f32.mrb[0].mxu0
  %v620 = vadd.f32 %v89, %v619
  %v621 = vpop.f32.mrb[0].mxu0
  %622 = vmatprep.mubr.f32.mxu0 0.0
  %623 = vmatmul.mubr.f32.gmra.mrb[0].mxu0 %v255
  %v624 = vpop.f32.mrb[0].mxu0
  %v625 = vadd.f32 %v89, %v624
  %v626 = vpop.f32.mrb[0].mxu0
  %627 = vmatprep.mubr.f32.mxu0 0.0
  %628 = vmatmul.mubr.f32.gmra.mrb[0].mxu0 %v258
  %v629 = vpop.f32.mrb[0].mxu0
  %v630 = vadd.f32 %v89, %v629
  %v631 = vpop.f32.mrb[0].mxu0
  %632 = vmatprep.mubr.f32.mxu0 0.0
  %633 = vmatmul.mubr.f32.gmra.mrb[0].mxu0 %v261
  %v634 = vpop.f32.mrb[0].mxu0
  %v635 = vadd.f32 %v89, %v634
  %v636 = vpop.f32.mrb[0].mxu0
  %637 = vmatprep.mubr.f32.mxu0 0.0
  %638 = vmatmul.mubr.f32.gmra.mrb[0].mxu0 %v264
  %v639 = vpop.f32.mrb[0].mxu0
  %v640 = vadd.f32 %v89, %v639
  %v641 = vpop.f32.mrb[0].mxu0
  %642 = vmatprep.mubr.f32.mxu0 0.0
  %643 = vmatmul.mubr.f32.gmra.mrb[0].mxu0 %v267
  %v644 = vpop.f32.mrb[0].mxu0
  %v645 = vadd.f32 %v89, %v644
  %v646 = vpop.f32.mrb[0].mxu0
  %647 = vmatprep.mubr.f32.mxu0 0.0
  %648 = vmatmul.mubr.f32.gmra.mrb[0].mxu0 %v270
  %v649 = vpop.f32.mrb[0].mxu0
  %v650 = vadd.f32 %v89, %v649
  %v651 = vpop.f32.mrb[0].mxu0
  %652 = vmatprep.mubr.f32.mxu0 0.0
  %653 = vmatmul.mubr.f32.gmra.mrb[0].mxu0 %v273
  %v654 = vpop.f32.mrb[0].mxu0
  %v655 = vadd.f32 %v89, %v654
  %v656 = vpop.f32.mrb[0].mxu0
  %657 = vmatprep.mubr.f32.mxu0 0.0
  %658 = vmatmul.mubr.f32.gmra.mrb[0].mxu0 %v276
  %v659 = vpop.f32.mrb[0].mxu0
  %v660 = vadd.f32 %v89, %v659
  %v661 = vpop.f32.mrb[0].mxu0
  %662 = vmatprep.mubr.f32.mxu0 0.0
  %663 = vmatmul.mubr.f32.gmra.mrb[0].mxu0 %v279
  %v664 = vpop.f32.mrb[0].mxu0
  %v665 = vadd.f32 %v89, %v664
  %v666 = vpop.f32.mrb[0].mxu0
  %667 = vmatprep.mubr.f32.mxu0 0.0
  %668 = vmatmul.mubr.f32.gmra.mrb[0].mxu0 %v282
  %v669 = vpop.f32.mrb[0].mxu0
  %v670 = vadd.f32 %v89, %v669
  %v671 = vpop.f32.mrb[0].mxu0
  %672 = vdwg.mxu0
  %vm673 = vcmp.gt.f32.partialorder %v355, 0.0
  %vm674 = vcmp.gt.f32.partialorder %v360, 0.0
  %vm675 = vcmp.gt.f32.partialorder %v365, 0.0
  %vm676 = vcmp.gt.f32.partialorder %v370, 0.0
  %vm677 = vcmp.gt.f32.partialorder %v375, 0.0
  %vm678 = vcmp.gt.f32.partialorder %v380, 0.0
  %vm679 = vcmp.gt.f32.partialorder %v385, 0.0
  %vm680 = vcmp.gt.f32.partialorder %v390, 0.0
  %vm681 = vcmp.gt.f32.partialorder %v395, 0.0
  %vm682 = vcmp.gt.f32.partialorder %v400, 0.0
  %vm683 = vcmp.gt.f32.partialorder %v405, 0.0
  %vm684 = vcmp.gt.f32.partialorder %v410, 0.0
  %vm685 = vcmp.gt.f32.partialorder %v415, 0.0
  %vm686 = vcmp.gt.f32.partialorder %v420, 0.0
  %vm687 = vcmp.gt.f32.partialorder %v425, 0.0
  %vm688 = vcmp.gt.f32.partialorder %v430, 0.0
  %vm689 = vcmp.gt.f32.partialorder %v435, 0.0
  %vm690 = vcmp.gt.f32.partialorder %v440, 0.0
  %vm691 = vcmp.gt.f32.partialorder %v445, 0.0
  %vm692 = vcmp.gt.f32.partialorder %v450, 0.0
  %vm693 = vcmp.gt.f32.partialorder %v455, 0.0
  %vm694 = vcmp.gt.f32.partialorder %v460, 0.0
  %vm695 = vcmp.gt.f32.partialorder %v465, 0.0
  %vm696 = vcmp.gt.f32.partialorder %v470, 0.0
  %vm697 = vcmp.gt.f32.partialorder %v475, 0.0
  %vm698 = vcmp.gt.f32.partialorder %v480, 0.0
  %vm699 = vcmp.gt.f32.partialorder %v485, 0.0
  %vm700 = vcmp.gt.f32.partialorder %v490, 0.0
  %vm701 = vcmp.gt.f32.partialorder %v495, 0.0
  %vm702 = vcmp.gt.f32.partialorder %v500, 0.0
  %vm703 = vcmp.gt.f32.partialorder %v505, 0.0
  %vm704 = vcmp.gt.f32.partialorder %v510, 0.0
  %vm705 = vcmp.gt.f32.partialorder %v515, 0.0
  %vm706 = vcmp.gt.f32.partialorder %v520, 0.0
  %vm707 = vcmp.gt.f32.partialorder %v525, 0.0
  %vm708 = vcmp.gt.f32.partialorder %v530, 0.0
  %vm709 = vcmp.gt.f32.partialorder %v535, 0.0
  %vm710 = vcmp.gt.f32.partialorder %v540, 0.0
  %vm711 = vcmp.gt.f32.partialorder %v545, 0.0
  %vm712 = vcmp.gt.f32.partialorder %v550, 0.0
  %vm713 = vcmp.gt.f32.partialorder %v555, 0.0
  %vm714 = vcmp.gt.f32.partialorder %v560, 0.0
  %vm715 = vcmp.gt.f32.partialorder %v565, 0.0
  %vm716 = vcmp.gt.f32.partialorder %v570, 0.0
  %vm717 = vcmp.gt.f32.partialorder %v575, 0.0
  %vm718 = vcmp.gt.f32.partialorder %v580, 0.0
  %vm719 = vcmp.gt.f32.partialorder %v585, 0.0
  %vm720 = vcmp.gt.f32.partialorder %v590, 0.0
  %vm721 = vcmp.gt.f32.partialorder %v595, 0.0
  %vm722 = vcmp.gt.f32.partialorder %v600, 0.0
  %vm723 = vcmp.gt.f32.partialorder %v605, 0.0
  %vm724 = vcmp.gt.f32.partialorder %v610, 0.0
  %vm725 = vcmp.gt.f32.partialorder %v615, 0.0
  %vm726 = vcmp.gt.f32.partialorder %v620, 0.0
  %vm727 = vcmp.gt.f32.partialorder %v625, 0.0
  %vm728 = vcmp.gt.f32.partialorder %v630, 0.0
  %vm729 = vcmp.gt.f32.partialorder %v635, 0.0
  %vm730 = vcmp.gt.f32.partialorder %v640, 0.0
  %vm731 = vcmp.gt.f32.partialorder %v645, 0.0
  %vm732 = vcmp.gt.f32.partialorder %v650, 0.0
  %vm733 = vcmp.gt.f32.partialorder %v655, 0.0
  %vm734 = vcmp.gt.f32.partialorder %v660, 0.0
  %vm735 = vcmp.gt.f32.partialorder %v665, 0.0
  %vm736 = vcmp.gt.f32.partialorder %v670, 0.0
  %v737 = vmul.f32 %v355, 0.2
  %v738 = vmul.f32 %v360, 0.2
  %v739 = vmul.f32 %v365, 0.2
  %v740 = vmul.f32 %v370, 0.2
  %v741 = vmul.f32 %v375, 0.2
  %v742 = vmul.f32 %v380, 0.2
  %v743 = vmul.f32 %v385, 0.2
  %v744 = vmul.f32 %v390, 0.2
  %v745 = vmul.f32 %v395, 0.2
  %v746 = vmul.f32 %v400, 0.2
  %v747 = vmul.f32 %v405, 0.2
  %v748 = vmul.f32 %v410, 0.2
  %v749 = vmul.f32 %v415, 0.2
  %v750 = vmul.f32 %v420, 0.2
  %v751 = vmul.f32 %v425, 0.2
  %v752 = vmul.f32 %v430, 0.2
  %v753 = vmul.f32 %v435, 0.2
  %v754 = vmul.f32 %v440, 0.2
  %v755 = vmul.f32 %v445, 0.2
  %v756 = vmul.f32 %v450, 0.2
  %v757 = vmul.f32 %v455, 0.2
  %v758 = vmul.f32 %v460, 0.2
  %v759 = vmul.f32 %v465, 0.2
  %v760 = vmul.f32 %v470, 0.2
  %v761 = vmul.f32 %v475, 0.2
  %v762 = vmul.f32 %v480, 0.2
  %v763 = vmul.f32 %v485, 0.2
  %v764 = vmul.f32 %v490, 0.2
  %v765 = vmul.f32 %v495, 0.2
  %v766 = vmul.f32 %v500, 0.2
  %v767 = vmul.f32 %v505, 0.2
  %v768 = vmul.f32 %v510, 0.2
  %v769 = vmul.f32 %v515, 0.2
  %v770 = vmul.f32 %v520, 0.2
  %v771 = vmul.f32 %v525, 0.2
  %v772 = vmul.f32 %v530, 0.2
  %v773 = vmul.f32 %v535, 0.2
  %v774 = vmul.f32 %v540, 0.2
  %v775 = vmul.f32 %v545, 0.2
  %v776 = vmul.f32 %v550, 0.2
  %v777 = vmul.f32 %v555, 0.2
  %v778 = vmul.f32 %v560, 0.2
  %v779 = vmul.f32 %v565, 0.2
  %v780 = vmul.f32 %v570, 0.2
  %v781 = vmul.f32 %v575, 0.2
  %v782 = vmul.f32 %v580, 0.2
  %v783 = vmul.f32 %v585, 0.2
  %v784 = vmul.f32 %v590, 0.2
  %v785 = vmul.f32 %v595, 0.2
  %v786 = vmul.f32 %v600, 0.2
  %v787 = vmul.f32 %v605, 0.2
  %v788 = vmul.f32 %v610, 0.2
  %v789 = vmul.f32 %v615, 0.2
  %v790 = vmul.f32 %v620, 0.2
  %v791 = vmul.f32 %v625, 0.2
  %v792 = vmul.f32 %v630, 0.2
  %v793 = vmul.f32 %v635, 0.2
  %v794 = vmul.f32 %v640, 0.2
  %v795 = vmul.f32 %v645, 0.2
  %v796 = vmul.f32 %v650, 0.2
  %v797 = vmul.f32 %v655, 0.2
  %v798 = vmul.f32 %v660, 0.2
  %v799 = vmul.f32 %v665, 0.2
  %v800 = vmul.f32 %v670, 0.2
  %v801 = vsel %vm673, %v355, %v737
  %v802 = vsel %vm674, %v360, %v738
  %v803 = vsel %vm675, %v365, %v739
  %v804 = vsel %vm676, %v370, %v740
  %v805 = vsel %vm677, %v375, %v741
  %v806 = vsel %vm678, %v380, %v742
  %v807 = vsel %vm679, %v385, %v743
  %v808 = vsel %vm680, %v390, %v744
  %v809 = vsel %vm681, %v395, %v745
  %v810 = vsel %vm682, %v400, %v746
  %v811 = vsel %vm683, %v405, %v747
  %v812 = vsel %vm684, %v410, %v748
  %v813 = vsel %vm685, %v415, %v749
  %v814 = vsel %vm686, %v420, %v750
  %v815 = vsel %vm687, %v425, %v751
  %v816 = vsel %vm688, %v430, %v752
  %v817 = vsel %vm689, %v435, %v753
  %v818 = vsel %vm690, %v440, %v754
  %v819 = vsel %vm691, %v445, %v755
  %v820 = vsel %vm692, %v450, %v756
  %v821 = vsel %vm693, %v455, %v757
  %v822 = vsel %vm694, %v460, %v758
  %v823 = vsel %vm695, %v465, %v759
  %v824 = vsel %vm696, %v470, %v760
  %v825 = vsel %vm697, %v475, %v761
  %v826 = vsel %vm698, %v480, %v762
  %v827 = vsel %vm699, %v485, %v763
  %v828 = vsel %vm700, %v490, %v764
  %v829 = vsel %vm701, %v495, %v765
  %v830 = vsel %vm702, %v500, %v766
  %v831 = vsel %vm703, %v505, %v767
  %v832 = vsel %vm704, %v510, %v768
  %v833 = vsel %vm705, %v515, %v769
  %v834 = vsel %vm706, %v520, %v770
  %v835 = vsel %vm707, %v525, %v771
  %v836 = vsel %vm708, %v530, %v772
  %v837 = vsel %vm709, %v535, %v773
  %v838 = vsel %vm710, %v540, %v774
  %v839 = vsel %vm711, %v545, %v775
  %v840 = vsel %vm712, %v550, %v776
  %v841 = vsel %vm713, %v555, %v777
  %v842 = vsel %vm714, %v560, %v778
  %v843 = vsel %vm715, %v565, %v779
  %v844 = vsel %vm716, %v570, %v780
  %v845 = vsel %vm717, %v575, %v781
  %v846 = vsel %vm718, %v580, %v782
  %v847 = vsel %vm719, %v585, %v783
  %v848 = vsel %vm720, %v590, %v784
  %v849 = vsel %vm721, %v595, %v785
  %v850 = vsel %vm722, %v600, %v786
  %v851 = vsel %vm723, %v605, %v787
  %v852 = vsel %vm724, %v610, %v788
  %v853 = vsel %vm725, %v615, %v789
  %v854 = vsel %vm726, %v620, %v790
  %v855 = vsel %vm727, %v625, %v791
  %v856 = vsel %vm728, %v630, %v792
  %v857 = vsel %vm729, %v635, %v793
  %v858 = vsel %vm730, %v640, %v794
  %v859 = vsel %vm731, %v645, %v795
  %v860 = vsel %vm732, %v650, %v796
  %v861 = vsel %vm733, %v655, %v797
  %v862 = vsel %vm734, %v660, %v798
  %v863 = vsel %vm735, %v665, %v799
  %v864 = vsel %vm736, %v670, %v800
  %v865 = vld [vmem:[%s3] sm:$0xff]
  %v866 = vld [vmem:[%s3 + $0x8] sm:$0xff]
  %v867 = vld [vmem:[%s3 + $0x10] sm:$0xff]
  %v868 = vld [vmem:[%s3 + $0x18] sm:$0xff]
  %v869 = vld [vmem:[%s3 + $0x20] sm:$0xff]
  %v870 = vld [vmem:[%s3 + $0x28] sm:$0xff]
  %v871 = vld [vmem:[%s3 + $0x30] sm:$0xff]
  %v872 = vld [vmem:[%s3 + $0x38] sm:$0xff]
  %vm873 = vcmask 523264
  %v875 = vsel %vm873, %v801, 0
  %v878 = vsel %vm873, %v802, 0
  %v881 = vsel %vm873, %v803, 0
  %v884 = vsel %vm873, %v804, 0
  %v887 = vsel %vm873, %v805, 0
  %v890 = vsel %vm873, %v806, 0
  %v893 = vsel %vm873, %v807, 0
  %v896 = vsel %vm873, %v808, 0
  %v899 = vsel %vm873, %v809, 0
  %v902 = vsel %vm873, %v810, 0
  %v905 = vsel %vm873, %v811, 0
  %v908 = vsel %vm873, %v812, 0
  %v911 = vsel %vm873, %v813, 0
  %v914 = vsel %vm873, %v814, 0
  %v917 = vsel %vm873, %v815, 0
  %v920 = vsel %vm873, %v816, 0
  %v923 = vsel %vm873, %v817, 0
  %v926 = vsel %vm873, %v818, 0
  %v929 = vsel %vm873, %v819, 0
  %v932 = vsel %vm873, %v820, 0
  %v935 = vsel %vm873, %v821, 0
  %v938 = vsel %vm873, %v822, 0
  %v941 = vsel %vm873, %v823, 0
  %v944 = vsel %vm873, %v824, 0
  %v947 = vsel %vm873, %v825, 0
  %v950 = vsel %vm873, %v826, 0
  %v953 = vsel %vm873, %v827, 0
  %v956 = vsel %vm873, %v828, 0
  %v959 = vsel %vm873, %v829, 0
  %v962 = vsel %vm873, %v830, 0
  %v965 = vsel %vm873, %v831, 0
  %v968 = vsel %vm873, %v832, 0
  %v971 = vsel %vm873, %v833, 0
  %v974 = vsel %vm873, %v834, 0
  %v977 = vsel %vm873, %v835, 0
  %v980 = vsel %vm873, %v836, 0
  %v983 = vsel %vm873, %v837, 0
  %v986 = vsel %vm873, %v838, 0
  %v989 = vsel %vm873, %v839, 0
  %v992 = vsel %vm873, %v840, 0
  %v995 = vsel %vm873, %v841, 0
  %v998 = vsel %vm873, %v842, 0
  %v1001 = vsel %vm873, %v843, 0
  %v1004 = vsel %vm873, %v844, 0
  %v1007 = vsel %vm873, %v845, 0
  %v1010 = vsel %vm873, %v846, 0
  %v1013 = vsel %vm873, %v847, 0
  %v1016 = vsel %vm873, %v848, 0
  %v1019 = vsel %vm873, %v849, 0
  %v1022 = vsel %vm873, %v850, 0
  %v1025 = vsel %vm873, %v851, 0
  %v1028 = vsel %vm873, %v852, 0
  %v1031 = vsel %vm873, %v853, 0
  %v1034 = vsel %vm873, %v854, 0
  %v1037 = vsel %vm873, %v855, 0
  %v1040 = vsel %vm873, %v856, 0
  %v1043 = vsel %vm873, %v857, 0
  %v1046 = vsel %vm873, %v858, 0
  %v1049 = vsel %vm873, %v859, 0
  %v1052 = vsel %vm873, %v860, 0
  %v1055 = vsel %vm873, %v861, 0
  %v1058 = vsel %vm873, %v862, 0
  %v1061 = vsel %vm873, %v863, 0
  %v1064 = vsel %vm873, %v864, 0
  %1066 = vmatprep.subr.mxu0 0.0
  %1067 = vmatpush1.msra.mxu0 %v865
  %1068 = vmatprep.subr.mxu0 0.0
  %1069 = vmatpush1.msra.mxu0 %v866
  %1070 = vmatprep.subr.mxu0 0.0
  %1071 = vmatpush1.msra.mxu0 %v867
  %1072 = vmatprep.subr.mxu0 0.0
  %1073 = vmatpush1.msra.mxu0 %v868
  %1074 = vmatprep.subr.mxu0 0.0
  %1075 = vmatpush1.msra.mxu0 %v869
  %1076 = vmatprep.subr.mxu0 0.0
  %1077 = vmatpush1.msra.mxu0 %v870
  %1078 = vmatprep.subr.mxu0 0.0
  %1079 = vmatpush1.msra.mxu0 %v871
  %1080 = vmatprep.subr.mxu0 0.0
  %1081 = vmatpush1.msra.mxu0 %v872
  %1082 = vmatprep.subr.mxu0 0.0
  %1083 = vmatpush1.msra.mxu0 0.0
  %1084 = vmatprep.subr.mxu0 0.0
  %1085 = vmatpush1.msra.mxu0 0.0
  %1086 = vmatprep.subr.mxu0 0.0
  %1087 = vmatpush1.msra.mxu0 0.0
  %1088 = vmatprep.subr.mxu0 0.0
  %1089 = vmatpush1.msra.mxu0 0.0
  %1090 = vmatprep.subr.mxu0 0.0
  %1091 = vmatpush1.msra.mxu0 0.0
  %1092 = vmatprep.subr.mxu0 0.0
  %1093 = vmatpush1.msra.mxu0 0.0
  %1094 = vmatprep.subr.mxu0 0.0
  %1095 = vmatpush1.msra.mxu0 0.0
  %1096 = vmatprep.subr.mxu0 0.0
  %1097 = vmatpush1.msra.mxu0 0.0
  %1098 = vmatprep.subr.mxu0 0.0
  %1099 = vmatpush1.msra.mxu0 0.0
  %1100 = vmatprep.subr.mxu0 0.0
  %1101 = vmatpush1.msra.mxu0 0.0
  %1102 = vmatprep.subr.mxu0 0.0
  %1103 = vmatpush1.msra.mxu0 0.0
  %1104 = vmatprep.subr.mxu0 0.0
  %1105 = vmatpush1.msra.mxu0 0.0
  %1106 = vmatprep.subr.mxu0 0.0
  %1107 = vmatpush1.msra.mxu0 0.0
  %1108 = vmatprep.subr.mxu0 0.0
  %1109 = vmatpush1.msra.mxu0 0.0
  %1110 = vmatprep.subr.mxu0 0.0
  %1111 = vmatpush1.msra.mxu0 0.0
  %1112 = vmatprep.subr.mxu0 0.0
  %1113 = vmatpush1.msra.mxu0 0.0
  %1114 = vmatprep.subr.mxu0 0.0
  %1115 = vmatpush1.msra.mxu0 0.0
  %1116 = vmatprep.subr.mxu0 0.0
  %1117 = vmatpush1.msra.mxu0 0.0
  %1118 = vmatprep.subr.mxu0 0.0
  %1119 = vmatpush1.msra.mxu0 0.0
  %1120 = vmatprep.subr.mxu0 0.0
  %1121 = vmatpush1.msra.mxu0 0.0
  %1122 = vmatprep.subr.mxu0 0.0
  %1123 = vmatpush1.msra.mxu0 0.0
  %1124 = vmatprep.subr.mxu0 0.0
  %1125 = vmatpush1.msra.mxu0 0.0
  %1126 = vmatprep.subr.mxu0 0.0
  %1127 = vmatpush1.msra.mxu0 0.0
  %1128 = vmatprep.subr.mxu0 0.0
  %1129 = vmatpush1.msra.mxu0 0.0
  %1130 = vmatprep.mubr.f32.mxu0 0.0
  %1131 = vmatmul.mubr.f32.gmra.mrb[0].mxu0 %v875
  %v1132 = vpop.f32.mrb[0].mxu0
  %v1133 = vadd.f32 0.0, %v1132
  %v1134 = vpop.f32.mrb[0].mxu0
  %1135 = vmatprep.mubr.f32.mxu0 0.0
  %1136 = vmatmul.mubr.f32.gmra.mrb[0].mxu0 %v878
  %v1137 = vpop.f32.mrb[0].mxu0
  %v1138 = vadd.f32 0.0, %v1137
  %v1139 = vpop.f32.mrb[0].mxu0
  %1140 = vmatprep.mubr.f32.mxu0 0.0
  %1141 = vmatmul.mubr.f32.gmra.mrb[0].mxu0 %v881
  %v1142 = vpop.f32.mrb[0].mxu0
  %v1143 = vadd.f32 0.0, %v1142
  %v1144 = vpop.f32.mrb[0].mxu0
  %1145 = vmatprep.mubr.f32.mxu0 0.0
  %1146 = vmatmul.mubr.f32.gmra.mrb[0].mxu0 %v884
  %v1147 = vpop.f32.mrb[0].mxu0
  %v1148 = vadd.f32 0.0, %v1147
  %v1149 = vpop.f32.mrb[0].mxu0
  %1150 = vmatprep.mubr.f32.mxu0 0.0
  %1151 = vmatmul.mubr.f32.gmra.mrb[0].mxu0 %v887
  %v1152 = vpop.f32.mrb[0].mxu0
  %v1153 = vadd.f32 0.0, %v1152
  %v1154 = vpop.f32.mrb[0].mxu0
  %1155 = vmatprep.mubr.f32.mxu0 0.0
  %1156 = vmatmul.mubr.f32.gmra.mrb[0].mxu0 %v890
  %v1157 = vpop.f32.mrb[0].mxu0
  %v1158 = vadd.f32 0.0, %v1157
  %v1159 = vpop.f32.mrb[0].mxu0
  %1160 = vmatprep.mubr.f32.mxu0 0.0
  %1161 = vmatmul.mubr.f32.gmra.mrb[0].mxu0 %v893
  %v1162 = vpop.f32.mrb[0].mxu0
  %v1163 = vadd.f32 0.0, %v1162
  %v1164 = vpop.f32.mrb[0].mxu0
  %1165 = vmatprep.mubr.f32.mxu0 0.0
  %1166 = vmatmul.mubr.f32.gmra.mrb[0].mxu0 %v896
  %v1167 = vpop.f32.mrb[0].mxu0
  %v1168 = vadd.f32 0.0, %v1167
  %v1169 = vpop.f32.mrb[0].mxu0
  %1170 = vmatprep.mubr.f32.mxu0 0.0
  %1171 = vmatmul.mubr.f32.gmra.mrb[0].mxu0 %v899
  %v1172 = vpop.f32.mrb[0].mxu0
  %v1173 = vadd.f32 0.0, %v1172
  %v1174 = vpop.f32.mrb[0].mxu0
  %1175 = vmatprep.mubr.f32.mxu0 0.0
  %1176 = vmatmul.mubr.f32.gmra.mrb[0].mxu0 %v902
  %v1177 = vpop.f32.mrb[0].mxu0
  %v1178 = vadd.f32 0.0, %v1177
  %v1179 = vpop.f32.mrb[0].mxu0
  %1180 = vmatprep.mubr.f32.mxu0 0.0
  %1181 = vmatmul.mubr.f32.gmra.mrb[0].mxu0 %v905
  %v1182 = vpop.f32.mrb[0].mxu0
  %v1183 = vadd.f32 0.0, %v1182
  %v1184 = vpop.f32.mrb[0].mxu0
  %1185 = vmatprep.mubr.f32.mxu0 0.0
  %1186 = vmatmul.mubr.f32.gmra.mrb[0].mxu0 %v908
  %v1187 = vpop.f32.mrb[0].mxu0
  %v1188 = vadd.f32 0.0, %v1187
  %v1189 = vpop.f32.mrb[0].mxu0
  %1190 = vmatprep.mubr.f32.mxu0 0.0
  %1191 = vmatmul.mubr.f32.gmra.mrb[0].mxu0 %v911
  %v1192 = vpop.f32.mrb[0].mxu0
  %v1193 = vadd.f32 0.0, %v1192
  %v1194 = vpop.f32.mrb[0].mxu0
  %1195 = vmatprep.mubr.f32.mxu0 0.0
  %1196 = vmatmul.mubr.f32.gmra.mrb[0].mxu0 %v914
  %v1197 = vpop.f32.mrb[0].mxu0
  %v1198 = vadd.f32 0.0, %v1197
  %v1199 = vpop.f32.mrb[0].mxu0
  %1200 = vmatprep.mubr.f32.mxu0 0.0
  %1201 = vmatmul.mubr.f32.gmra.mrb[0].mxu0 %v917
  %v1202 = vpop.f32.mrb[0].mxu0
  %v1203 = vadd.f32 0.0, %v1202
  %v1204 = vpop.f32.mrb[0].mxu0
  %1205 = vmatprep.mubr.f32.mxu0 0.0
  %1206 = vmatmul.mubr.f32.gmra.mrb[0].mxu0 %v920
  %v1207 = vpop.f32.mrb[0].mxu0
  %v1208 = vadd.f32 0.0, %v1207
  %v1209 = vpop.f32.mrb[0].mxu0
  %1210 = vmatprep.mubr.f32.mxu0 0.0
  %1211 = vmatmul.mubr.f32.gmra.mrb[0].mxu0 %v923
  %v1212 = vpop.f32.mrb[0].mxu0
  %v1213 = vadd.f32 0.0, %v1212
  %v1214 = vpop.f32.mrb[0].mxu0
  %1215 = vmatprep.mubr.f32.mxu0 0.0
  %1216 = vmatmul.mubr.f32.gmra.mrb[0].mxu0 %v926
  %v1217 = vpop.f32.mrb[0].mxu0
  %v1218 = vadd.f32 0.0, %v1217
  %v1219 = vpop.f32.mrb[0].mxu0
  %1220 = vmatprep.mubr.f32.mxu0 0.0
  %1221 = vmatmul.mubr.f32.gmra.mrb[0].mxu0 %v929
  %v1222 = vpop.f32.mrb[0].mxu0
  %v1223 = vadd.f32 0.0, %v1222
  %v1224 = vpop.f32.mrb[0].mxu0
  %1225 = vmatprep.mubr.f32.mxu0 0.0
  %1226 = vmatmul.mubr.f32.gmra.mrb[0].mxu0 %v932
  %v1227 = vpop.f32.mrb[0].mxu0
  %v1228 = vadd.f32 0.0, %v1227
  %v1229 = vpop.f32.mrb[0].mxu0
  %1230 = vmatprep.mubr.f32.mxu0 0.0
  %1231 = vmatmul.mubr.f32.gmra.mrb[0].mxu0 %v935
  %v1232 = vpop.f32.mrb[0].mxu0
  %v1233 = vadd.f32 0.0, %v1232
  %v1234 = vpop.f32.mrb[0].mxu0
  %1235 = vmatprep.mubr.f32.mxu0 0.0
  %1236 = vmatmul.mubr.f32.gmra.mrb[0].mxu0 %v938
  %v1237 = vpop.f32.mrb[0].mxu0
  %v1238 = vadd.f32 0.0, %v1237
  %v1239 = vpop.f32.mrb[0].mxu0
  %1240 = vmatprep.mubr.f32.mxu0 0.0
  %1241 = vmatmul.mubr.f32.gmra.mrb[0].mxu0 %v941
  %v1242 = vpop.f32.mrb[0].mxu0
  %v1243 = vadd.f32 0.0, %v1242
  %v1244 = vpop.f32.mrb[0].mxu0
  %1245 = vmatprep.mubr.f32.mxu0 0.0
  %1246 = vmatmul.mubr.f32.gmra.mrb[0].mxu0 %v944
  %v1247 = vpop.f32.mrb[0].mxu0
  %v1248 = vadd.f32 0.0, %v1247
  %v1249 = vpop.f32.mrb[0].mxu0
  %1250 = vmatprep.mubr.f32.mxu0 0.0
  %1251 = vmatmul.mubr.f32.gmra.mrb[0].mxu0 %v947
  %v1252 = vpop.f32.mrb[0].mxu0
  %v1253 = vadd.f32 0.0, %v1252
  %v1254 = vpop.f32.mrb[0].mxu0
  %1255 = vmatprep.mubr.f32.mxu0 0.0
  %1256 = vmatmul.mubr.f32.gmra.mrb[0].mxu0 %v950
  %v1257 = vpop.f32.mrb[0].mxu0
  %v1258 = vadd.f32 0.0, %v1257
  %v1259 = vpop.f32.mrb[0].mxu0
  %1260 = vmatprep.mubr.f32.mxu0 0.0
  %1261 = vmatmul.mubr.f32.gmra.mrb[0].mxu0 %v953
  %v1262 = vpop.f32.mrb[0].mxu0
  %v1263 = vadd.f32 0.0, %v1262
  %v1264 = vpop.f32.mrb[0].mxu0
  %1265 = vmatprep.mubr.f32.mxu0 0.0
  %1266 = vmatmul.mubr.f32.gmra.mrb[0].mxu0 %v956
  %v1267 = vpop.f32.mrb[0].mxu0
  %v1268 = vadd.f32 0.0, %v1267
  %v1269 = vpop.f32.mrb[0].mxu0
  %1270 = vmatprep.mubr.f32.mxu0 0.0
  %1271 = vmatmul.mubr.f32.gmra.mrb[0].mxu0 %v959
  %v1272 = vpop.f32.mrb[0].mxu0
  %v1273 = vadd.f32 0.0, %v1272
  %v1274 = vpop.f32.mrb[0].mxu0
  %1275 = vmatprep.mubr.f32.mxu0 0.0
  %1276 = vmatmul.mubr.f32.gmra.mrb[0].mxu0 %v962
  %v1277 = vpop.f32.mrb[0].mxu0
  %v1278 = vadd.f32 0.0, %v1277
  %v1279 = vpop.f32.mrb[0].mxu0
  %1280 = vmatprep.mubr.f32.mxu0 0.0
  %1281 = vmatmul.mubr.f32.gmra.mrb[0].mxu0 %v965
  %v1282 = vpop.f32.mrb[0].mxu0
  %v1283 = vadd.f32 0.0, %v1282
  %v1284 = vpop.f32.mrb[0].mxu0
  %1285 = vmatprep.mubr.f32.mxu0 0.0
  %1286 = vmatmul.mubr.f32.gmra.mrb[0].mxu0 %v968
  %v1287 = vpop.f32.mrb[0].mxu0
  %v1288 = vadd.f32 0.0, %v1287
  %v1289 = vpop.f32.mrb[0].mxu0
  %1290 = vmatprep.mubr.f32.mxu0 0.0
  %1291 = vmatmul.mubr.f32.gmra.mrb[0].mxu0 %v971
  %v1292 = vpop.f32.mrb[0].mxu0
  %v1293 = vadd.f32 0.0, %v1292
  %v1294 = vpop.f32.mrb[0].mxu0
  %1295 = vmatprep.mubr.f32.mxu0 0.0
  %1296 = vmatmul.mubr.f32.gmra.mrb[0].mxu0 %v974
  %v1297 = vpop.f32.mrb[0].mxu0
  %v1298 = vadd.f32 0.0, %v1297
  %v1299 = vpop.f32.mrb[0].mxu0
  %1300 = vmatprep.mubr.f32.mxu0 0.0
  %1301 = vmatmul.mubr.f32.gmra.mrb[0].mxu0 %v977
  %v1302 = vpop.f32.mrb[0].mxu0
  %v1303 = vadd.f32 0.0, %v1302
  %v1304 = vpop.f32.mrb[0].mxu0
  %1305 = vmatprep.mubr.f32.mxu0 0.0
  %1306 = vmatmul.mubr.f32.gmra.mrb[0].mxu0 %v980
  %v1307 = vpop.f32.mrb[0].mxu0
  %v1308 = vadd.f32 0.0, %v1307
  %v1309 = vpop.f32.mrb[0].mxu0
  %1310 = vmatprep.mubr.f32.mxu0 0.0
  %1311 = vmatmul.mubr.f32.gmra.mrb[0].mxu0 %v983
  %v1312 = vpop.f32.mrb[0].mxu0
  %v1313 = vadd.f32 0.0, %v1312
  %v1314 = vpop.f32.mrb[0].mxu0
  %1315 = vmatprep.mubr.f32.mxu0 0.0
  %1316 = vmatmul.mubr.f32.gmra.mrb[0].mxu0 %v986
  %v1317 = vpop.f32.mrb[0].mxu0
  %v1318 = vadd.f32 0.0, %v1317
  %v1319 = vpop.f32.mrb[0].mxu0
  %1320 = vmatprep.mubr.f32.mxu0 0.0
  %1321 = vmatmul.mubr.f32.gmra.mrb[0].mxu0 %v989
  %v1322 = vpop.f32.mrb[0].mxu0
  %v1323 = vadd.f32 0.0, %v1322
  %v1324 = vpop.f32.mrb[0].mxu0
  %1325 = vmatprep.mubr.f32.mxu0 0.0
  %1326 = vmatmul.mubr.f32.gmra.mrb[0].mxu0 %v992
  %v1327 = vpop.f32.mrb[0].mxu0
  %v1328 = vadd.f32 0.0, %v1327
  %v1329 = vpop.f32.mrb[0].mxu0
  %1330 = vmatprep.mubr.f32.mxu0 0.0
  %1331 = vmatmul.mubr.f32.gmra.mrb[0].mxu0 %v995
  %v1332 = vpop.f32.mrb[0].mxu0
  %v1333 = vadd.f32 0.0, %v1332
  %v1334 = vpop.f32.mrb[0].mxu0
  %1335 = vmatprep.mubr.f32.mxu0 0.0
  %1336 = vmatmul.mubr.f32.gmra.mrb[0].mxu0 %v998
  %v1337 = vpop.f32.mrb[0].mxu0
  %v1338 = vadd.f32 0.0, %v1337
  %v1339 = vpop.f32.mrb[0].mxu0
  %1340 = vmatprep.mubr.f32.mxu0 0.0
  %1341 = vmatmul.mubr.f32.gmra.mrb[0].mxu0 %v1001
  %v1342 = vpop.f32.mrb[0].mxu0
  %v1343 = vadd.f32 0.0, %v1342
  %v1344 = vpop.f32.mrb[0].mxu0
  %1345 = vmatprep.mubr.f32.mxu0 0.0
  %1346 = vmatmul.mubr.f32.gmra.mrb[0].mxu0 %v1004
  %v1347 = vpop.f32.mrb[0].mxu0
  %v1348 = vadd.f32 0.0, %v1347
  %v1349 = vpop.f32.mrb[0].mxu0
  %1350 = vmatprep.mubr.f32.mxu0 0.0
  %1351 = vmatmul.mubr.f32.gmra.mrb[0].mxu0 %v1007
  %v1352 = vpop.f32.mrb[0].mxu0
  %v1353 = vadd.f32 0.0, %v1352
  %v1354 = vpop.f32.mrb[0].mxu0
  %1355 = vmatprep.mubr.f32.mxu0 0.0
  %1356 = vmatmul.mubr.f32.gmra.mrb[0].mxu0 %v1010
  %v1357 = vpop.f32.mrb[0].mxu0
  %v1358 = vadd.f32 0.0, %v1357
  %v1359 = vpop.f32.mrb[0].mxu0
  %1360 = vmatprep.mubr.f32.mxu0 0.0
  %1361 = vmatmul.mubr.f32.gmra.mrb[0].mxu0 %v1013
  %v1362 = vpop.f32.mrb[0].mxu0
  %v1363 = vadd.f32 0.0, %v1362
  %v1364 = vpop.f32.mrb[0].mxu0
  %1365 = vmatprep.mubr.f32.mxu0 0.0
  %1366 = vmatmul.mubr.f32.gmra.mrb[0].mxu0 %v1016
  %v1367 = vpop.f32.mrb[0].mxu0
  %v1368 = vadd.f32 0.0, %v1367
  %v1369 = vpop.f32.mrb[0].mxu0
  %1370 = vmatprep.mubr.f32.mxu0 0.0
  %1371 = vmatmul.mubr.f32.gmra.mrb[0].mxu0 %v1019
  %v1372 = vpop.f32.mrb[0].mxu0
  %v1373 = vadd.f32 0.0, %v1372
  %v1374 = vpop.f32.mrb[0].mxu0
  %1375 = vmatprep.mubr.f32.mxu0 0.0
  %1376 = vmatmul.mubr.f32.gmra.mrb[0].mxu0 %v1022
  %v1377 = vpop.f32.mrb[0].mxu0
  %v1378 = vadd.f32 0.0, %v1377
  %v1379 = vpop.f32.mrb[0].mxu0
  %1380 = vmatprep.mubr.f32.mxu0 0.0
  %1381 = vmatmul.mubr.f32.gmra.mrb[0].mxu0 %v1025
  %v1382 = vpop.f32.mrb[0].mxu0
  %v1383 = vadd.f32 0.0, %v1382
  %v1384 = vpop.f32.mrb[0].mxu0
  %1385 = vmatprep.mubr.f32.mxu0 0.0
  %1386 = vmatmul.mubr.f32.gmra.mrb[0].mxu0 %v1028
  %v1387 = vpop.f32.mrb[0].mxu0
  %v1388 = vadd.f32 0.0, %v1387
  %v1389 = vpop.f32.mrb[0].mxu0
  %1390 = vmatprep.mubr.f32.mxu0 0.0
  %1391 = vmatmul.mubr.f32.gmra.mrb[0].mxu0 %v1031
  %v1392 = vpop.f32.mrb[0].mxu0
  %v1393 = vadd.f32 0.0, %v1392
  %v1394 = vpop.f32.mrb[0].mxu0
  %1395 = vmatprep.mubr.f32.mxu0 0.0
  %1396 = vmatmul.mubr.f32.gmra.mrb[0].mxu0 %v1034
  %v1397 = vpop.f32.mrb[0].mxu0
  %v1398 = vadd.f32 0.0, %v1397
  %v1399 = vpop.f32.mrb[0].mxu0
  %1400 = vmatprep.mubr.f32.mxu0 0.0
  %1401 = vmatmul.mubr.f32.gmra.mrb[0].mxu0 %v1037
  %v1402 = vpop.f32.mrb[0].mxu0
  %v1403 = vadd.f32 0.0, %v1402
  %v1404 = vpop.f32.mrb[0].mxu0
  %1405 = vmatprep.mubr.f32.mxu0 0.0
  %1406 = vmatmul.mubr.f32.gmra.mrb[0].mxu0 %v1040
  %v1407 = vpop.f32.mrb[0].mxu0
  %v1408 = vadd.f32 0.0, %v1407
  %v1409 = vpop.f32.mrb[0].mxu0
  %1410 = vmatprep.mubr.f32.mxu0 0.0
  %1411 = vmatmul.mubr.f32.gmra.mrb[0].mxu0 %v1043
  %v1412 = vpop.f32.mrb[0].mxu0
  %v1413 = vadd.f32 0.0, %v1412
  %v1414 = vpop.f32.mrb[0].mxu0
  %1415 = vmatprep.mubr.f32.mxu0 0.0
  %1416 = vmatmul.mubr.f32.gmra.mrb[0].mxu0 %v1046
  %v1417 = vpop.f32.mrb[0].mxu0
  %v1418 = vadd.f32 0.0, %v1417
  %v1419 = vpop.f32.mrb[0].mxu0
  %1420 = vmatprep.mubr.f32.mxu0 0.0
  %1421 = vmatmul.mubr.f32.gmra.mrb[0].mxu0 %v1049
  %v1422 = vpop.f32.mrb[0].mxu0
  %v1423 = vadd.f32 0.0, %v1422
  %v1424 = vpop.f32.mrb[0].mxu0
  %1425 = vmatprep.mubr.f32.mxu0 0.0
  %1426 = vmatmul.mubr.f32.gmra.mrb[0].mxu0 %v1052
  %v1427 = vpop.f32.mrb[0].mxu0
  %v1428 = vadd.f32 0.0, %v1427
  %v1429 = vpop.f32.mrb[0].mxu0
  %1430 = vmatprep.mubr.f32.mxu0 0.0
  %1431 = vmatmul.mubr.f32.gmra.mrb[0].mxu0 %v1055
  %v1432 = vpop.f32.mrb[0].mxu0
  %v1433 = vadd.f32 0.0, %v1432
  %v1434 = vpop.f32.mrb[0].mxu0
  %1435 = vmatprep.mubr.f32.mxu0 0.0
  %1436 = vmatmul.mubr.f32.gmra.mrb[0].mxu0 %v1058
  %v1437 = vpop.f32.mrb[0].mxu0
  %v1438 = vadd.f32 0.0, %v1437
  %v1439 = vpop.f32.mrb[0].mxu0
  %1440 = vmatprep.mubr.f32.mxu0 0.0
  %1441 = vmatmul.mubr.f32.gmra.mrb[0].mxu0 %v1061
  %v1442 = vpop.f32.mrb[0].mxu0
  %v1443 = vadd.f32 0.0, %v1442
  %v1444 = vpop.f32.mrb[0].mxu0
  %1445 = vmatprep.mubr.f32.mxu0 0.0
  %1446 = vmatmul.mubr.f32.gmra.mrb[0].mxu0 %v1064
  %v1447 = vpop.f32.mrb[0].mxu0
  %v1448 = vadd.f32 0.0, %v1447
  %v1449 = vpop.f32.mrb[0].mxu0
  %1450 = vdwg.mxu0
  %v1451 = vadd.f32 %v1133, %v1138
  %v1452 = vadd.f32 %v1451, %v1143
  %v1453 = vadd.f32 %v1452, %v1148
  %v1454 = vadd.f32 %v1453, %v1153
  %v1455 = vadd.f32 %v1454, %v1158
  %v1456 = vadd.f32 %v1455, %v1163
  %v1457 = vadd.f32 %v1456, %v1168
  %v1458 = vadd.f32 %v1457, %v1173
  %v1459 = vadd.f32 %v1458, %v1178
  %v1460 = vadd.f32 %v1459, %v1183
  %v1461 = vadd.f32 %v1460, %v1188
  %v1462 = vadd.f32 %v1461, %v1193
  %v1463 = vadd.f32 %v1462, %v1198
  %v1464 = vadd.f32 %v1463, %v1203
  %v1465 = vadd.f32 %v1464, %v1208
  %v1466 = vadd.f32 %v1465, %v1213
  %v1467 = vadd.f32 %v1466, %v1218
  %v1468 = vadd.f32 %v1467, %v1223
  %v1469 = vadd.f32 %v1468, %v1228
  %v1470 = vadd.f32 %v1469, %v1233
  %v1471 = vadd.f32 %v1470, %v1238
  %v1472 = vadd.f32 %v1471, %v1243
  %v1473 = vadd.f32 %v1472, %v1248
  %v1474 = vadd.f32 %v1473, %v1253
  %v1475 = vadd.f32 %v1474, %v1258
  %v1476 = vadd.f32 %v1475, %v1263
  %v1477 = vadd.f32 %v1476, %v1268
  %v1478 = vadd.f32 %v1477, %v1273
  %v1479 = vadd.f32 %v1478, %v1278
  %v1480 = vadd.f32 %v1479, %v1283
  %v1481 = vadd.f32 %v1480, %v1288
  %v1482 = vadd.f32 %v1481, %v1293
  %v1483 = vadd.f32 %v1482, %v1298
  %v1484 = vadd.f32 %v1483, %v1303
  %v1485 = vadd.f32 %v1484, %v1308
  %v1486 = vadd.f32 %v1485, %v1313
  %v1487 = vadd.f32 %v1486, %v1318
  %v1488 = vadd.f32 %v1487, %v1323
  %v1489 = vadd.f32 %v1488, %v1328
  %v1490 = vadd.f32 %v1489, %v1333
  %v1491 = vadd.f32 %v1490, %v1338
  %v1492 = vadd.f32 %v1491, %v1343
  %v1493 = vadd.f32 %v1492, %v1348
  %v1494 = vadd.f32 %v1493, %v1353
  %v1495 = vadd.f32 %v1494, %v1358
  %v1496 = vadd.f32 %v1495, %v1363
  %v1497 = vadd.f32 %v1496, %v1368
  %v1498 = vadd.f32 %v1497, %v1373
  %v1499 = vadd.f32 %v1498, %v1378
  %v1500 = vadd.f32 %v1499, %v1383
  %v1501 = vadd.f32 %v1500, %v1388
  %v1502 = vadd.f32 %v1501, %v1393
  %v1503 = vadd.f32 %v1502, %v1398
  %v1504 = vadd.f32 %v1503, %v1403
  %v1505 = vadd.f32 %v1504, %v1408
  %v1506 = vadd.f32 %v1505, %v1413
  %v1507 = vadd.f32 %v1506, %v1418
  %v1508 = vadd.f32 %v1507, %v1423
  %v1509 = vadd.f32 %v1508, %v1428
  %v1510 = vadd.f32 %v1509, %v1433
  %v1511 = vadd.f32 %v1510, %v1438
  %v1512 = vadd.f32 %v1511, %v1443
  %v1513 = vadd.f32 %v1512, %v1448
  %v1514 = vrot.slane %v1513, 4
  %v1515 = vadd.f32 %v1513, %v1514
  %v1516 = vrot.slane %v1515, 2
  %v1517 = vadd.f32 %v1515, %v1516
  %v1518 = vrot.slane %v1517, 1
  %v1519 = vadd.f32 %v1517, %v1518
  %v1520 = vmul.f32 %v1133, %v1133
  %v1521 = vmul.f32 %v1138, %v1138
  %v1522 = vmul.f32 %v1143, %v1143
  %v1523 = vmul.f32 %v1148, %v1148
  %v1524 = vmul.f32 %v1153, %v1153
  %v1525 = vmul.f32 %v1158, %v1158
  %v1526 = vmul.f32 %v1163, %v1163
  %v1527 = vmul.f32 %v1168, %v1168
  %v1528 = vmul.f32 %v1173, %v1173
  %v1529 = vmul.f32 %v1178, %v1178
  %v1530 = vmul.f32 %v1183, %v1183
  %v1531 = vmul.f32 %v1188, %v1188
  %v1532 = vmul.f32 %v1193, %v1193
  %v1533 = vmul.f32 %v1198, %v1198
  %v1534 = vmul.f32 %v1203, %v1203
  %v1535 = vmul.f32 %v1208, %v1208
  %v1536 = vmul.f32 %v1213, %v1213
  %v1537 = vmul.f32 %v1218, %v1218
  %v1538 = vmul.f32 %v1223, %v1223
  %v1539 = vmul.f32 %v1228, %v1228
  %v1540 = vmul.f32 %v1233, %v1233
  %v1541 = vmul.f32 %v1238, %v1238
  %v1542 = vmul.f32 %v1243, %v1243
  %v1543 = vmul.f32 %v1248, %v1248
  %v1544 = vmul.f32 %v1253, %v1253
  %v1545 = vmul.f32 %v1258, %v1258
  %v1546 = vmul.f32 %v1263, %v1263
  %v1547 = vmul.f32 %v1268, %v1268
  %v1548 = vmul.f32 %v1273, %v1273
  %v1549 = vmul.f32 %v1278, %v1278
  %v1550 = vmul.f32 %v1283, %v1283
  %v1551 = vmul.f32 %v1288, %v1288
  %v1552 = vmul.f32 %v1293, %v1293
  %v1553 = vmul.f32 %v1298, %v1298
  %v1554 = vmul.f32 %v1303, %v1303
  %v1555 = vmul.f32 %v1308, %v1308
  %v1556 = vmul.f32 %v1313, %v1313
  %v1557 = vmul.f32 %v1318, %v1318
  %v1558 = vmul.f32 %v1323, %v1323
  %v1559 = vmul.f32 %v1328, %v1328
  %v1560 = vmul.f32 %v1333, %v1333
  %v1561 = vmul.f32 %v1338, %v1338
  %v1562 = vmul.f32 %v1343, %v1343
  %v1563 = vmul.f32 %v1348, %v1348
  %v1564 = vmul.f32 %v1353, %v1353
  %v1565 = vmul.f32 %v1358, %v1358
  %v1566 = vmul.f32 %v1363, %v1363
  %v1567 = vmul.f32 %v1368, %v1368
  %v1568 = vmul.f32 %v1373, %v1373
  %v1569 = vmul.f32 %v1378, %v1378
  %v1570 = vmul.f32 %v1383, %v1383
  %v1571 = vmul.f32 %v1388, %v1388
  %v1572 = vmul.f32 %v1393, %v1393
  %v1573 = vmul.f32 %v1398, %v1398
  %v1574 = vmul.f32 %v1403, %v1403
  %v1575 = vmul.f32 %v1408, %v1408
  %v1576 = vmul.f32 %v1413, %v1413
  %v1577 = vmul.f32 %v1418, %v1418
  %v1578 = vmul.f32 %v1423, %v1423
  %v1579 = vmul.f32 %v1428, %v1428
  %v1580 = vmul.f32 %v1433, %v1433
  %v1581 = vmul.f32 %v1438, %v1438
  %v1582 = vmul.f32 %v1443, %v1443
  %v1583 = vmul.f32 %v1448, %v1448
  %v1584 = vadd.f32 %v1520, %v1521
  %v1585 = vadd.f32 %v1584, %v1522
  %v1586 = vadd.f32 %v1585, %v1523
  %v1587 = vadd.f32 %v1586, %v1524
  %v1588 = vadd.f32 %v1587, %v1525
  %v1589 = vadd.f32 %v1588, %v1526
  %v1590 = vadd.f32 %v1589, %v1527
  %v1591 = vadd.f32 %v1590, %v1528
  %v1592 = vadd.f32 %v1591, %v1529
  %v1593 = vadd.f32 %v1592, %v1530
  %v1594 = vadd.f32 %v1593, %v1531
  %v1595 = vadd.f32 %v1594, %v1532
  %v1596 = vadd.f32 %v1595, %v1533
  %v1597 = vadd.f32 %v1596, %v1534
  %v1598 = vadd.f32 %v1597, %v1535
  %v1599 = vadd.f32 %v1598, %v1536
  %v1600 = vadd.f32 %v1599, %v1537
  %v1601 = vadd.f32 %v1600, %v1538
  %v1602 = vadd.f32 %v1601, %v1539
  %v1603 = vadd.f32 %v1602, %v1540
  %v1604 = vadd.f32 %v1603, %v1541
  %v1605 = vadd.f32 %v1604, %v1542
  %v1606 = vadd.f32 %v1605, %v1543
  %v1607 = vadd.f32 %v1606, %v1544
  %v1608 = vadd.f32 %v1607, %v1545
  %v1609 = vadd.f32 %v1608, %v1546
  %v1610 = vadd.f32 %v1609, %v1547
  %v1611 = vadd.f32 %v1610, %v1548
  %v1612 = vadd.f32 %v1611, %v1549
  %v1613 = vadd.f32 %v1612, %v1550
  %v1614 = vadd.f32 %v1613, %v1551
  %v1615 = vadd.f32 %v1614, %v1552
  %v1616 = vadd.f32 %v1615, %v1553
  %v1617 = vadd.f32 %v1616, %v1554
  %v1618 = vadd.f32 %v1617, %v1555
  %v1619 = vadd.f32 %v1618, %v1556
  %v1620 = vadd.f32 %v1619, %v1557
  %v1621 = vadd.f32 %v1620, %v1558
  %v1622 = vadd.f32 %v1621, %v1559
  %v1623 = vadd.f32 %v1622, %v1560
  %v1624 = vadd.f32 %v1623, %v1561
  %v1625 = vadd.f32 %v1624, %v1562
  %v1626 = vadd.f32 %v1625, %v1563
  %v1627 = vadd.f32 %v1626, %v1564
  %v1628 = vadd.f32 %v1627, %v1565
  %v1629 = vadd.f32 %v1628, %v1566
  %v1630 = vadd.f32 %v1629, %v1567
  %v1631 = vadd.f32 %v1630, %v1568
  %v1632 = vadd.f32 %v1631, %v1569
  %v1633 = vadd.f32 %v1632, %v1570
  %v1634 = vadd.f32 %v1633, %v1571
  %v1635 = vadd.f32 %v1634, %v1572
  %v1636 = vadd.f32 %v1635, %v1573
  %v1637 = vadd.f32 %v1636, %v1574
  %v1638 = vadd.f32 %v1637, %v1575
  %v1639 = vadd.f32 %v1638, %v1576
  %v1640 = vadd.f32 %v1639, %v1577
  %v1641 = vadd.f32 %v1640, %v1578
  %v1642 = vadd.f32 %v1641, %v1579
  %v1643 = vadd.f32 %v1642, %v1580
  %v1644 = vadd.f32 %v1643, %v1581
  %v1645 = vadd.f32 %v1644, %v1582
  %v1646 = vadd.f32 %v1645, %v1583
  %v1647 = vrot.slane %v1646, 4
  %v1648 = vadd.f32 %v1646, %v1647
  %v1649 = vrot.slane %v1648, 2
  %v1650 = vadd.f32 %v1648, %v1649
  %v1651 = vrot.slane %v1650, 1
  %v1652 = vadd.f32 %v1650, %v1651
  %1653 = vst [vmem:[%s4] sm:$0x1] %v1519
  %1654 = vst [vmem:[%s5] sm:$0x1] %v1652
  // Predicated region
  $region18: #{pixel_discriminator_forward.2} parent=0 // pred_check
    _
  $region19: #{pixel_discriminator_forward.2} parent=0 // pred_check_branch
    %1656 = sbr.rel (0) target = $region21
  $region20: #{pixel_discriminator_forward.2} parent=0 // pred_region
    _
  $region21: #{pixel_discriminator_forward.2} parent=0 // pred_fallthru
    _
  // Predicated region
  $region22: #{pixel_discriminator_forward.2} parent=0 // pred_check
    _
  $region23: #{pixel_discriminator_forward.2} parent=0 // pred_check_branch
    %1658 = sbr.rel (0) target = $region25
  $region24: #{pixel_discriminator_forward.2} parent=0 // pred_region
    _
  $region25: #{pixel_discriminator_forward.2} parent=0 // pred_fallthru
    _
  // Predicated region
  $region26: #{pixel_discriminator_forward.2} parent=0 // pred_check
    _
  $region27: #{pixel_discriminator_forward.2} parent=0 // pred_check_branch
    %1660 = sbr.rel (0) target = $region29
  $region28: #{pixel_discriminator_forward.2} parent=0 // pred_region
    _
  $region29: #{pixel_discriminator_forward.2} parent=0 // pred_fallthru
    _
  // Predicated region
  $region30: #{pixel_discriminator_forward.2} parent=0 // pred_check
    _
  $region31: #{pixel_discriminator_forward.2} parent=0 // pred_check_branch
    %1662 = sbr.rel (0) target = $region33
  $region32: #{pixel_discriminator_forward.2} parent=0 // pred_region
    _
  $region33: #{pixel_discriminator_forward.2} parent=0 // pred_fallthru
    _

// kernel: pixel_discriminator_forward.3
$region0: #{pixel_discriminator_forward.3}
  #allocation0 [shape = 'u32[]', space=smem, size = 0x4, offset = 0x4, fixed_abs, tag = 'smem constant byte address 0x4 - core index']
  #allocation1 [shape = 'u32[144,128]{1,0:T(1,128)}', space=vmem, size = 0x12000, scoped, tag = 'internal scratch']
  %s0 = inlined_call_operand.vmem [shape: f32[512,4], index: 0, kind: input, shape index: {}]
  %s1 = inlined_call_operand.vmem [shape: f32[4,64], index: 1, kind: input, shape index: {}]
  %s2 = inlined_call_operand.vmem [shape: f32[1,64], index: 2, kind: input, shape index: {}]
  %s3 = inlined_call_operand.vmem [shape: f32[64,128], index: 3, kind: input, shape index: {}]
  %s4 = inlined_call_operand.vmem [shape: f32[1,128], index: 4, kind: input, shape index: {}]
  %s5 = inlined_call_operand.vmem [shape: f32[1,128], index: 5, kind: input, shape index: {}]
  %s6 = inlined_call_operand.vmem [shape: f32[1,128], index: 6, kind: input, shape index: {}]
  %s7 = inlined_call_operand.vmem [shape: f32[512,1], index: 7, kind: output, shape index: {}]
  %s8 = sld [smem:[#allocation0]]
  $region38: #{pixel_discriminator_forward.3} parent=0
    _
  %s10 = ssub.s32 1, %s8
  %s11 = scalar_select 0, %s10, %s8
  // Predicated region
  $region2: #{pixel_discriminator_forward.3} parent=0 // pred_check
    _
  $region3: #{pixel_discriminator_forward.3} parent=0 // pred_check_branch
    %13 = sbr.rel (0) target = $region5
  $region4: #{pixel_discriminator_forward.3} parent=0 // pred_region
    _
  $region5: #{pixel_discriminator_forward.3} parent=0 // pred_fallthru
    _
  // Predicated region
  $region6: #{pixel_discriminator_forward.3} parent=0 // pred_check
    _
  $region7: #{pixel_discriminator_forward.3} parent=0 // pred_check_branch
    %15 = sbr.rel (0) target = $region9
  $region8: #{pixel_discriminator_forward.3} parent=0 // pred_region
    _
  $region9: #{pixel_discriminator_forward.3} parent=0 // pred_fallthru
    _
  // Predicated region
  $region10: #{pixel_discriminator_forward.3} parent=0 // pred_check
    _
  $region11: #{pixel_discriminator_forward.3} parent=0 // pred_check_branch
    %17 = sbr.rel (0) target = $region13
  $region12: #{pixel_discriminator_forward.3} parent=0 // pred_region
    _
  $region13: #{pixel_discriminator_forward.3} parent=0 // pred_fallthru
    _
  // Predicated region
  $region14: #{pixel_discriminator_forward.3} parent=0 // pred_check
    _
  $region15: #{pixel_discriminator_forward.3} parent=0 // pred_check_branch
    %19 = sbr.rel (0) target = $region17
  $region16: #{pixel_discriminator_forward.3} parent=0 // pred_region
    _
  $region17: #{pixel_discriminator_forward.3} parent=0 // pred_fallthru
    _
  // Predicated region
  $region18: #{pixel_discriminator_forward.3} parent=0 // pred_check
    _
  $region19: #{pixel_discriminator_forward.3} parent=0 // pred_check_branch
    %21 = sbr.rel (0) target = $region21
  $region20: #{pixel_discriminator_forward.3} parent=0 // pred_region
    _
  $region21: #{pixel_discriminator_forward.3} parent=0 // pred_fallthru
    _
  // Predicated region
  $region22: #{pixel_discriminator_forward.3} parent=0 // pred_check
    _
  $region23: #{pixel_discriminator_forward.3} parent=0 // pred_check_branch
    %23 = sbr.rel (0) target = $region25
  $region24: #{pixel_discriminator_forward.3} parent=0 // pred_region
    _
  $region25: #{pixel_discriminator_forward.3} parent=0 // pred_fallthru
    _
  // Predicated region
  $region26: #{pixel_discriminator_forward.3} parent=0 // pred_check
    _
  $region27: #{pixel_discriminator_forward.3} parent=0 // pred_check_branch
    %25 = sbr.rel (0) target = $region29
  $region28: #{pixel_discriminator_forward.3} parent=0 // pred_region
    _
  $region29: #{pixel_discriminator_forward.3} parent=0 // pred_fallthru
    _
  %v26 = vld [vmem:[%s0] sm:$0xff]
  %v27 = vld [vmem:[%s0 + $0x8] sm:$0xff]
  %v28 = vld [vmem:[%s0 + $0x10] sm:$0xff]
  %v29 = vld [vmem:[%s0 + $0x18] sm:$0xff]
  %v30 = vld [vmem:[%s0 + $0x20] sm:$0xff]
  %v31 = vld [vmem:[%s0 + $0x28] sm:$0xff]
  %v32 = vld [vmem:[%s0 + $0x30] sm:$0xff]
  %v33 = vld [vmem:[%s0 + $0x38] sm:$0xff]
  %v34 = vld [vmem:[%s0 + $0x40] sm:$0xff]
  %v35 = vld [vmem:[%s0 + $0x48] sm:$0xff]
  %v36 = vld [vmem:[%s0 + $0x50] sm:$0xff]
  %v37 = vld [vmem:[%s0 + $0x58] sm:$0xff]
  %v38 = vld [vmem:[%s0 + $0x60] sm:$0xff]
  %v39 = vld [vmem:[%s0 + $0x68] sm:$0xff]
  %v40 = vld [vmem:[%s0 + $0x70] sm:$0xff]
  %v41 = vld [vmem:[%s0 + $0x78] sm:$0xff]
  %v42 = vld [vmem:[%s0 + $0x80] sm:$0xff]
  %v43 = vld [vmem:[%s0 + $0x88] sm:$0xff]
  %v44 = vld [vmem:[%s0 + $0x90] sm:$0xff]
  %v45 = vld [vmem:[%s0 + $0x98] sm:$0xff]
  %v46 = vld [vmem:[%s0 + $0xa0] sm:$0xff]
  %v47 = vld [vmem:[%s0 + $0xa8] sm:$0xff]
  %v48 = vld [vmem:[%s0 + $0xb0] sm:$0xff]
  %v49 = vld [vmem:[%s0 + $0xb8] sm:$0xff]
  %v50 = vld [vmem:[%s0 + $0xc0] sm:$0xff]
  %v51 = vld [vmem:[%s0 + $0xc8] sm:$0xff]
  %v52 = vld [vmem:[%s0 + $0xd0] sm:$0xff]
  %v53 = vld [vmem:[%s0 + $0xd8] sm:$0xff]
  %v54 = vld [vmem:[%s0 + $0xe0] sm:$0xff]
  %v55 = vld [vmem:[%s0 + $0xe8] sm:$0xff]
  %v56 = vld [vmem:[%s0 + $0xf0] sm:$0xff]
  %v57 = vld [vmem:[%s0 + $0xf8] sm:$0xff]
  %v58 = vld [vmem:[%s0 + $0x100] sm:$0xff]
  %v59 = vld [vmem:[%s0 + $0x108] sm:$0xff]
  %v60 = vld [vmem:[%s0 + $0x110] sm:$0xff]
  %v61 = vld [vmem:[%s0 + $0x118] sm:$0xff]
  %v62 = vld [vmem:[%s0 + $0x120] sm:$0xff]
  %v63 = vld [vmem:[%s0 + $0x128] sm:$0xff]
  %v64 = vld [vmem:[%s0 + $0x130] sm:$0xff]
  %v65 = vld [vmem:[%s0 + $0x138] sm:$0xff]
  %v66 = vld [vmem:[%s0 + $0x140] sm:$0xff]
  %v67 = vld [vmem:[%s0 + $0x148] sm:$0xff]
  %v68 = vld [vmem:[%s0 + $0x150] sm:$0xff]
  %v69 = vld [vmem:[%s0 + $0x158] sm:$0xff]
  %v70 = vld [vmem:[%s0 + $0x160] sm:$0xff]
  %v71 = vld [vmem:[%s0 + $0x168] sm:$0xff]
  %v72 = vld [vmem:[%s0 + $0x170] sm:$0xff]
  %v73 = vld [vmem:[%s0 + $0x178] sm:$0xff]
  %v74 = vld [vmem:[%s0 + $0x180] sm:$0xff]
  %v75 = vld [vmem:[%s0 + $0x188] sm:$0xff]
  %v76 = vld [vmem:[%s0 + $0x190] sm:$0xff]
  %v77 = vld [vmem:[%s0 + $0x198] sm:$0xff]
  %v78 = vld [vmem:[%s0 + $0x1a0] sm:$0xff]
  %v79 = vld [vmem:[%s0 + $0x1a8] sm:$0xff]
  %v80 = vld [vmem:[%s0 + $0x1b0] sm:$0xff]
  %v81 = vld [vmem:[%s0 + $0x1b8] sm:$0xff]
  %v82 = vld [vmem:[%s0 + $0x1c0] sm:$0xff]
  %v83 = vld [vmem:[%s0 + $0x1c8] sm:$0xff]
  %v84 = vld [vmem:[%s0 + $0x1d0] sm:$0xff]
  %v85 = vld [vmem:[%s0 + $0x1d8] sm:$0xff]
  %v86 = vld [vmem:[%s0 + $0x1e0] sm:$0xff]
  %v87 = vld [vmem:[%s0 + $0x1e8] sm:$0xff]
  %v88 = vld [vmem:[%s0 + $0x1f0] sm:$0xff]
  %v89 = vld [vmem:[%s0 + $0x1f8] sm:$0xff]
  %v90 = vld [vmem:[%s1] sm:$0xf]
  %v91 = vld [vmem:[%s2] sm:$0x1]
  %v93 = vlaneseq
  %v94 = vshrl.u32 %v93, 7
  %v95 = vsub.s32 0, %v94
  %v96 = vrot.slane %v91, %v95
  %vm98 = vcmask 31744
  %v100 = vsel %vm98, %v26, 0
  %v103 = vsel %vm98, %v27, 0
  %v106 = vsel %vm98, %v28, 0
  %v109 = vsel %vm98, %v29, 0
  %v112 = vsel %vm98, %v30, 0
  %v115 = vsel %vm98, %v31, 0
  %v118 = vsel %vm98, %v32, 0
  %v121 = vsel %vm98, %v33, 0
  %v124 = vsel %vm98, %v34, 0
  %v127 = vsel %vm98, %v35, 0
  %v130 = vsel %vm98, %v36, 0
  %v133 = vsel %vm98, %v37, 0
  %v136 = vsel %vm98, %v38, 0
  %v139 = vsel %vm98, %v39, 0
  %v142 = vsel %vm98, %v40, 0
  %v145 = vsel %vm98, %v41, 0
  %v148 = vsel %vm98, %v42, 0
  %v151 = vsel %vm98, %v43, 0
  %v154 = vsel %vm98, %v44, 0
  %v157 = vsel %vm98, %v45, 0
  %v160 = vsel %vm98, %v46, 0
  %v163 = vsel %vm98, %v47, 0
  %v166 = vsel %vm98, %v48, 0
  %v169 = vsel %vm98, %v49, 0
  %v172 = vsel %vm98, %v50, 0
  %v175 = vsel %vm98, %v51, 0
  %v178 = vsel %vm98, %v52, 0
  %v181 = vsel %vm98, %v53, 0
  %v184 = vsel %vm98, %v54, 0
  %v187 = vsel %vm98, %v55, 0
  %v190 = vsel %vm98, %v56, 0
  %v193 = vsel %vm98, %v57, 0
  %v196 = vsel %vm98, %v58, 0
  %v199 = vsel %vm98, %v59, 0
  %v202 = vsel %vm98, %v60, 0
  %v205 = vsel %vm98, %v61, 0
  %v208 = vsel %vm98, %v62, 0
  %v211 = vsel %vm98, %v63, 0
  %v214 = vsel %vm98, %v64, 0
  %v217 = vsel %vm98, %v65, 0
  %v220 = vsel %vm98, %v66, 0
  %v223 = vsel %vm98, %v67, 0
  %v226 = vsel %vm98, %v68, 0
  %v229 = vsel %vm98, %v69, 0
  %v232 = vsel %vm98, %v70, 0
  %v235 = vsel %vm98, %v71, 0
  %v238 = vsel %vm98, %v72, 0
  %v241 = vsel %vm98, %v73, 0
  %v244 = vsel %vm98, %v74, 0
  %v247 = vsel %vm98, %v75, 0
  %v250 = vsel %vm98, %v76, 0
  %v253 = vsel %vm98, %v77, 0
  %v256 = vsel %vm98, %v78, 0
  %v259 = vsel %vm98, %v79, 0
  %v262 = vsel %vm98, %v80, 0
  %v265 = vsel %vm98, %v81, 0
  %v268 = vsel %vm98, %v82, 0
  %v271 = vsel %vm98, %v83, 0
  %v274 = vsel %vm98, %v84, 0
  %v277 = vsel %vm98, %v85, 0
  %v280 = vsel %vm98, %v86, 0
  %v283 = vsel %vm98, %v87, 0
  %v286 = vsel %vm98, %v88, 0
  %v289 = vsel %vm98, %v89, 0
  %vm291 = vcmask 1043456
  %v293 = vsel %vm291, %v90, 0
  %295 = vmatprep.subr.mxu0 0.0
  %296 = vmatpush1.msra.mxu0 %v293
  %297 = vmatprep.subr.mxu0 0.0
  %298 = vmatpush1.msra.mxu0 0.0
  %299 = vmatprep.subr.mxu0 0.0
  %300 = vmatpush1.msra.mxu0 0.0
  %301 = vmatprep.subr.mxu0 0.0
  %302 = vmatpush1.msra.mxu0 0.0
  %303 = vmatprep.subr.mxu0 0.0
  %304 = vmatpush1.msra.mxu0 0.0
  %305 = vmatprep.subr.mxu0 0.0
  %306 = vmatpush1.msra.mxu0 0.0
  %307 = vmatprep.subr.mxu0 0.0
  %308 = vmatpush1.msra.mxu0 0.0
  %309 = vmatprep.subr.mxu0 0.0
  %310 = vmatpush1.msra.mxu0 0.0
  %311 = vmatprep.subr.mxu0 0.0
  %312 = vmatpush1.msra.mxu0 0.0
  %313 = vmatprep.subr.mxu0 0.0
  %314 = vmatpush1.msra.mxu0 0.0
  %315 = vmatprep.subr.mxu0 0.0
  %316 = vmatpush1.msra.mxu0 0.0
  %317 = vmatprep.subr.mxu0 0.0
  %318 = vmatpush1.msra.mxu0 0.0
  %319 = vmatprep.subr.mxu0 0.0
  %320 = vmatpush1.msra.mxu0 0.0
  %321 = vmatprep.subr.mxu0 0.0
  %322 = vmatpush1.msra.mxu0 0.0
  %323 = vmatprep.subr.mxu0 0.0
  %324 = vmatpush1.msra.mxu0 0.0
  %325 = vmatprep.subr.mxu0 0.0
  %326 = vmatpush1.msra.mxu0 0.0
  %327 = vmatprep.subr.mxu0 0.0
  %328 = vmatpush1.msra.mxu0 0.0
  %329 = vmatprep.subr.mxu0 0.0
  %330 = vmatpush1.msra.mxu0 0.0
  %331 = vmatprep.subr.mxu0 0.0
  %332 = vmatpush1.msra.mxu0 0.0
  %333 = vmatprep.subr.mxu0 0.0
  %334 = vmatpush1.msra.mxu0 0.0
  %335 = vmatprep.subr.mxu0 0.0
  %336 = vmatpush1.msra.mxu0 0.0
  %337 = vmatprep.subr.mxu0 0.0
  %338 = vmatpush1.msra.mxu0 0.0
  %339 = vmatprep.subr.mxu0 0.0
  %340 = vmatpush1.msra.mxu0 0.0
  %341 = vmatprep.subr.mxu0 0.0
  %342 = vmatpush1.msra.mxu0 0.0
  %343 = vmatprep.subr.mxu0 0.0
  %344 = vmatpush1.msra.mxu0 0.0
  %345 = vmatprep.subr.mxu0 0.0
  %346 = vmatpush1.msra.mxu0 0.0
  %347 = vmatprep.subr.mxu0 0.0
  %348 = vmatpush1.msra.mxu0 0.0
  %349 = vmatprep.subr.mxu0 0.0
  %350 = vmatpush1.msra.mxu0 0.0
  %351 = vmatprep.subr.mxu0 0.0
  %352 = vmatpush1.msra.mxu0 0.0
  %353 = vmatprep.subr.mxu0 0.0
  %354 = vmatpush1.msra.mxu0 0.0
  %355 = vmatprep.subr.mxu0 0.0
  %356 = vmatpush1.msra.mxu0 0.0
  %357 = vmatprep.subr.mxu0 0.0
  %358 = vmatpush1.msra.mxu0 0.0
  %359 = vmatprep.mubr.f32.mxu0 0.0
  %360 = vmatmul.mubr.f32.gmra.mrb[0].mxu0 %v100
  %v361 = vpop.f32.mrb[0].mxu0
  %v362 = vadd.f32 %v96, %v361
  %v363 = vpop.f32.mrb[0].mxu0
  %364 = vmatprep.mubr.f32.mxu0 0.0
  %365 = vmatmul.mubr.f32.gmra.mrb[0].mxu0 %v103
  %v366 = vpop.f32.mrb[0].mxu0
  %v367 = vadd.f32 %v96, %v366
  %v368 = vpop.f32.mrb[0].mxu0
  %369 = vmatprep.mubr.f32.mxu0 0.0
  %370 = vmatmul.mubr.f32.gmra.mrb[0].mxu0 %v106
  %v371 = vpop.f32.mrb[0].mxu0
  %v372 = vadd.f32 %v96, %v371
  %v373 = vpop.f32.mrb[0].mxu0
  %374 = vmatprep.mubr.f32.mxu0 0.0
  %375 = vmatmul.mubr.f32.gmra.mrb[0].mxu0 %v109
  %v376 = vpop.f32.mrb[0].mxu0
  %v377 = vadd.f32 %v96, %v376
  %v378 = vpop.f32.mrb[0].mxu0
  %379 = vmatprep.mubr.f32.mxu0 0.0
  %380 = vmatmul.mubr.f32.gmra.mrb[0].mxu0 %v112
  %v381 = vpop.f32.mrb[0].mxu0
  %v382 = vadd.f32 %v96, %v381
  %v383 = vpop.f32.mrb[0].mxu0
  %384 = vmatprep.mubr.f32.mxu0 0.0
  %385 = vmatmul.mubr.f32.gmra.mrb[0].mxu0 %v115
  %v386 = vpop.f32.mrb[0].mxu0
  %v387 = vadd.f32 %v96, %v386
  %v388 = vpop.f32.mrb[0].mxu0
  %389 = vmatprep.mubr.f32.mxu0 0.0
  %390 = vmatmul.mubr.f32.gmra.mrb[0].mxu0 %v118
  %v391 = vpop.f32.mrb[0].mxu0
  %v392 = vadd.f32 %v96, %v391
  %v393 = vpop.f32.mrb[0].mxu0
  %394 = vmatprep.mubr.f32.mxu0 0.0
  %395 = vmatmul.mubr.f32.gmra.mrb[0].mxu0 %v121
  %v396 = vpop.f32.mrb[0].mxu0
  %v397 = vadd.f32 %v96, %v396
  %v398 = vpop.f32.mrb[0].mxu0
  %399 = vmatprep.mubr.f32.mxu0 0.0
  %400 = vmatmul.mubr.f32.gmra.mrb[0].mxu0 %v124
  %v401 = vpop.f32.mrb[0].mxu0
  %v402 = vadd.f32 %v96, %v401
  %v403 = vpop.f32.mrb[0].mxu0
  %404 = vmatprep.mubr.f32.mxu0 0.0
  %405 = vmatmul.mubr.f32.gmra.mrb[0].mxu0 %v127
  %v406 = vpop.f32.mrb[0].mxu0
  %v407 = vadd.f32 %v96, %v406
  %v408 = vpop.f32.mrb[0].mxu0
  %409 = vmatprep.mubr.f32.mxu0 0.0
  %410 = vmatmul.mubr.f32.gmra.mrb[0].mxu0 %v130
  %v411 = vpop.f32.mrb[0].mxu0
  %v412 = vadd.f32 %v96, %v411
  %v413 = vpop.f32.mrb[0].mxu0
  %414 = vmatprep.mubr.f32.mxu0 0.0
  %415 = vmatmul.mubr.f32.gmra.mrb[0].mxu0 %v133
  %v416 = vpop.f32.mrb[0].mxu0
  %v417 = vadd.f32 %v96, %v416
  %v418 = vpop.f32.mrb[0].mxu0
  %419 = vmatprep.mubr.f32.mxu0 0.0
  %420 = vmatmul.mubr.f32.gmra.mrb[0].mxu0 %v136
  %v421 = vpop.f32.mrb[0].mxu0
  %v422 = vadd.f32 %v96, %v421
  %v423 = vpop.f32.mrb[0].mxu0
  %424 = vmatprep.mubr.f32.mxu0 0.0
  %425 = vmatmul.mubr.f32.gmra.mrb[0].mxu0 %v139
  %v426 = vpop.f32.mrb[0].mxu0
  %v427 = vadd.f32 %v96, %v426
  %v428 = vpop.f32.mrb[0].mxu0
  %429 = vmatprep.mubr.f32.mxu0 0.0
  %430 = vmatmul.mubr.f32.gmra.mrb[0].mxu0 %v142
  %v431 = vpop.f32.mrb[0].mxu0
  %v432 = vadd.f32 %v96, %v431
  %v433 = vpop.f32.mrb[0].mxu0
  %434 = vmatprep.mubr.f32.mxu0 0.0
  %435 = vmatmul.mubr.f32.gmra.mrb[0].mxu0 %v145
  %v436 = vpop.f32.mrb[0].mxu0
  %v437 = vadd.f32 %v96, %v436
  %v438 = vpop.f32.mrb[0].mxu0
  %439 = vmatprep.mubr.f32.mxu0 0.0
  %440 = vmatmul.mubr.f32.gmra.mrb[0].mxu0 %v148
  %v441 = vpop.f32.mrb[0].mxu0
  %v442 = vadd.f32 %v96, %v441
  %v443 = vpop.f32.mrb[0].mxu0
  %444 = vmatprep.mubr.f32.mxu0 0.0
  %445 = vmatmul.mubr.f32.gmra.mrb[0].mxu0 %v151
  %v446 = vpop.f32.mrb[0].mxu0
  %v447 = vadd.f32 %v96, %v446
  %v448 = vpop.f32.mrb[0].mxu0
  %449 = vmatprep.mubr.f32.mxu0 0.0
  %450 = vmatmul.mubr.f32.gmra.mrb[0].mxu0 %v154
  %v451 = vpop.f32.mrb[0].mxu0
  %v452 = vadd.f32 %v96, %v451
  %v453 = vpop.f32.mrb[0].mxu0
  %454 = vmatprep.mubr.f32.mxu0 0.0
  %455 = vmatmul.mubr.f32.gmra.mrb[0].mxu0 %v157
  %v456 = vpop.f32.mrb[0].mxu0
  %v457 = vadd.f32 %v96, %v456
  %v458 = vpop.f32.mrb[0].mxu0
  %459 = vmatprep.mubr.f32.mxu0 0.0
  %460 = vmatmul.mubr.f32.gmra.mrb[0].mxu0 %v160
  %v461 = vpop.f32.mrb[0].mxu0
  %v462 = vadd.f32 %v96, %v461
  %v463 = vpop.f32.mrb[0].mxu0
  %464 = vmatprep.mubr.f32.mxu0 0.0
  %465 = vmatmul.mubr.f32.gmra.mrb[0].mxu0 %v163
  %v466 = vpop.f32.mrb[0].mxu0
  %v467 = vadd.f32 %v96, %v466
  %v468 = vpop.f32.mrb[0].mxu0
  %469 = vmatprep.mubr.f32.mxu0 0.0
  %470 = vmatmul.mubr.f32.gmra.mrb[0].mxu0 %v166
  %v471 = vpop.f32.mrb[0].mxu0
  %v472 = vadd.f32 %v96, %v471
  %v473 = vpop.f32.mrb[0].mxu0
  %474 = vmatprep.mubr.f32.mxu0 0.0
  %475 = vmatmul.mubr.f32.gmra.mrb[0].mxu0 %v169
  %v476 = vpop.f32.mrb[0].mxu0
  %v477 = vadd.f32 %v96, %v476
  %v478 = vpop.f32.mrb[0].mxu0
  %479 = vmatprep.mubr.f32.mxu0 0.0
  %480 = vmatmul.mubr.f32.gmra.mrb[0].mxu0 %v172
  %v481 = vpop.f32.mrb[0].mxu0
  %v482 = vadd.f32 %v96, %v481
  %v483 = vpop.f32.mrb[0].mxu0
  %484 = vmatprep.mubr.f32.mxu0 0.0
  %485 = vmatmul.mubr.f32.gmra.mrb[0].mxu0 %v175
  %v486 = vpop.f32.mrb[0].mxu0
  %v487 = vadd.f32 %v96, %v486
  %v488 = vpop.f32.mrb[0].mxu0
  %489 = vmatprep.mubr.f32.mxu0 0.0
  %490 = vmatmul.mubr.f32.gmra.mrb[0].mxu0 %v178
  %v491 = vpop.f32.mrb[0].mxu0
  %v492 = vadd.f32 %v96, %v491
  %v493 = vpop.f32.mrb[0].mxu0
  %494 = vmatprep.mubr.f32.mxu0 0.0
  %495 = vmatmul.mubr.f32.gmra.mrb[0].mxu0 %v181
  %v496 = vpop.f32.mrb[0].mxu0
  %v497 = vadd.f32 %v96, %v496
  %v498 = vpop.f32.mrb[0].mxu0
  %499 = vmatprep.mubr.f32.mxu0 0.0
  %500 = vmatmul.mubr.f32.gmra.mrb[0].mxu0 %v184
  %v501 = vpop.f32.mrb[0].mxu0
  %v502 = vadd.f32 %v96, %v501
  %v503 = vpop.f32.mrb[0].mxu0
  %504 = vmatprep.mubr.f32.mxu0 0.0
  %505 = vmatmul.mubr.f32.gmra.mrb[0].mxu0 %v187
  %v506 = vpop.f32.mrb[0].mxu0
  %v507 = vadd.f32 %v96, %v506
  %v508 = vpop.f32.mrb[0].mxu0
  %509 = vmatprep.mubr.f32.mxu0 0.0
  %510 = vmatmul.mubr.f32.gmra.mrb[0].mxu0 %v190
  %v511 = vpop.f32.mrb[0].mxu0
  %v512 = vadd.f32 %v96, %v511
  %v513 = vpop.f32.mrb[0].mxu0
  %514 = vmatprep.mubr.f32.mxu0 0.0
  %515 = vmatmul.mubr.f32.gmra.mrb[0].mxu0 %v193
  %v516 = vpop.f32.mrb[0].mxu0
  %v517 = vadd.f32 %v96, %v516
  %v518 = vpop.f32.mrb[0].mxu0
  %519 = vmatprep.mubr.f32.mxu0 0.0
  %520 = vmatmul.mubr.f32.gmra.mrb[0].mxu0 %v196
  %v521 = vpop.f32.mrb[0].mxu0
  %v522 = vadd.f32 %v96, %v521
  %v523 = vpop.f32.mrb[0].mxu0
  %524 = vmatprep.mubr.f32.mxu0 0.0
  %525 = vmatmul.mubr.f32.gmra.mrb[0].mxu0 %v199
  %v526 = vpop.f32.mrb[0].mxu0
  %v527 = vadd.f32 %v96, %v526
  %v528 = vpop.f32.mrb[0].mxu0
  %529 = vmatprep.mubr.f32.mxu0 0.0
  %530 = vmatmul.mubr.f32.gmra.mrb[0].mxu0 %v202
  %v531 = vpop.f32.mrb[0].mxu0
  %v532 = vadd.f32 %v96, %v531
  %v533 = vpop.f32.mrb[0].mxu0
  %534 = vmatprep.mubr.f32.mxu0 0.0
  %535 = vmatmul.mubr.f32.gmra.mrb[0].mxu0 %v205
  %v536 = vpop.f32.mrb[0].mxu0
  %v537 = vadd.f32 %v96, %v536
  %v538 = vpop.f32.mrb[0].mxu0
  %539 = vmatprep.mubr.f32.mxu0 0.0
  %540 = vmatmul.mubr.f32.gmra.mrb[0].mxu0 %v208
  %v541 = vpop.f32.mrb[0].mxu0
  %v542 = vadd.f32 %v96, %v541
  %v543 = vpop.f32.mrb[0].mxu0
  %544 = vmatprep.mubr.f32.mxu0 0.0
  %545 = vmatmul.mubr.f32.gmra.mrb[0].mxu0 %v211
  %v546 = vpop.f32.mrb[0].mxu0
  %v547 = vadd.f32 %v96, %v546
  %v548 = vpop.f32.mrb[0].mxu0
  %549 = vmatprep.mubr.f32.mxu0 0.0
  %550 = vmatmul.mubr.f32.gmra.mrb[0].mxu0 %v214
  %v551 = vpop.f32.mrb[0].mxu0
  %v552 = vadd.f32 %v96, %v551
  %v553 = vpop.f32.mrb[0].mxu0
  %554 = vmatprep.mubr.f32.mxu0 0.0
  %555 = vmatmul.mubr.f32.gmra.mrb[0].mxu0 %v217
  %v556 = vpop.f32.mrb[0].mxu0
  %v557 = vadd.f32 %v96, %v556
  %v558 = vpop.f32.mrb[0].mxu0
  %559 = vmatprep.mubr.f32.mxu0 0.0
  %560 = vmatmul.mubr.f32.gmra.mrb[0].mxu0 %v220
  %v561 = vpop.f32.mrb[0].mxu0
  %v562 = vadd.f32 %v96, %v561
  %v563 = vpop.f32.mrb[0].mxu0
  %564 = vmatprep.mubr.f32.mxu0 0.0
  %565 = vmatmul.mubr.f32.gmra.mrb[0].mxu0 %v223
  %v566 = vpop.f32.mrb[0].mxu0
  %v567 = vadd.f32 %v96, %v566
  %v568 = vpop.f32.mrb[0].mxu0
  %569 = vmatprep.mubr.f32.mxu0 0.0
  %570 = vmatmul.mubr.f32.gmra.mrb[0].mxu0 %v226
  %v571 = vpop.f32.mrb[0].mxu0
  %v572 = vadd.f32 %v96, %v571
  %v573 = vpop.f32.mrb[0].mxu0
  %574 = vmatprep.mubr.f32.mxu0 0.0
  %575 = vmatmul.mubr.f32.gmra.mrb[0].mxu0 %v229
  %v576 = vpop.f32.mrb[0].mxu0
  %v577 = vadd.f32 %v96, %v576
  %v578 = vpop.f32.mrb[0].mxu0
  %579 = vmatprep.mubr.f32.mxu0 0.0
  %580 = vmatmul.mubr.f32.gmra.mrb[0].mxu0 %v232
  %v581 = vpop.f32.mrb[0].mxu0
  %v582 = vadd.f32 %v96, %v581
  %v583 = vpop.f32.mrb[0].mxu0
  %584 = vmatprep.mubr.f32.mxu0 0.0
  %585 = vmatmul.mubr.f32.gmra.mrb[0].mxu0 %v235
  %v586 = vpop.f32.mrb[0].mxu0
  %v587 = vadd.f32 %v96, %v586
  %v588 = vpop.f32.mrb[0].mxu0
  %589 = vmatprep.mubr.f32.mxu0 0.0
  %590 = vmatmul.mubr.f32.gmra.mrb[0].mxu0 %v238
  %v591 = vpop.f32.mrb[0].mxu0
  %v592 = vadd.f32 %v96, %v591
  %v593 = vpop.f32.mrb[0].mxu0
  %594 = vmatprep.mubr.f32.mxu0 0.0
  %595 = vmatmul.mubr.f32.gmra.mrb[0].mxu0 %v241
  %v596 = vpop.f32.mrb[0].mxu0
  %v597 = vadd.f32 %v96, %v596
  %v598 = vpop.f32.mrb[0].mxu0
  %599 = vmatprep.mubr.f32.mxu0 0.0
  %600 = vmatmul.mubr.f32.gmra.mrb[0].mxu0 %v244
  %v601 = vpop.f32.mrb[0].mxu0
  %v602 = vadd.f32 %v96, %v601
  %v603 = vpop.f32.mrb[0].mxu0
  %604 = vmatprep.mubr.f32.mxu0 0.0
  %605 = vmatmul.mubr.f32.gmra.mrb[0].mxu0 %v247
  %v606 = vpop.f32.mrb[0].mxu0
  %v607 = vadd.f32 %v96, %v606
  %v608 = vpop.f32.mrb[0].mxu0
  %609 = vmatprep.mubr.f32.mxu0 0.0
  %610 = vmatmul.mubr.f32.gmra.mrb[0].mxu0 %v250
  %v611 = vpop.f32.mrb[0].mxu0
  %v612 = vadd.f32 %v96, %v611
  %v613 = vpop.f32.mrb[0].mxu0
  %614 = vmatprep.mubr.f32.mxu0 0.0
  %615 = vmatmul.mubr.f32.gmra.mrb[0].mxu0 %v253
  %v616 = vpop.f32.mrb[0].mxu0
  %v617 = vadd.f32 %v96, %v616
  %v618 = vpop.f32.mrb[0].mxu0
  %619 = vmatprep.mubr.f32.mxu0 0.0
  %620 = vmatmul.mubr.f32.gmra.mrb[0].mxu0 %v256
  %v621 = vpop.f32.mrb[0].mxu0
  %v622 = vadd.f32 %v96, %v621
  %v623 = vpop.f32.mrb[0].mxu0
  %624 = vmatprep.mubr.f32.mxu0 0.0
  %625 = vmatmul.mubr.f32.gmra.mrb[0].mxu0 %v259
  %v626 = vpop.f32.mrb[0].mxu0
  %v627 = vadd.f32 %v96, %v626
  %v628 = vpop.f32.mrb[0].mxu0
  %629 = vmatprep.mubr.f32.mxu0 0.0
  %630 = vmatmul.mubr.f32.gmra.mrb[0].mxu0 %v262
  %v631 = vpop.f32.mrb[0].mxu0
  %v632 = vadd.f32 %v96, %v631
  %v633 = vpop.f32.mrb[0].mxu0
  %634 = vmatprep.mubr.f32.mxu0 0.0
  %635 = vmatmul.mubr.f32.gmra.mrb[0].mxu0 %v265
  %v636 = vpop.f32.mrb[0].mxu0
  %v637 = vadd.f32 %v96, %v636
  %v638 = vpop.f32.mrb[0].mxu0
  %639 = vmatprep.mubr.f32.mxu0 0.0
  %640 = vmatmul.mubr.f32.gmra.mrb[0].mxu0 %v268
  %v641 = vpop.f32.mrb[0].mxu0
  %v642 = vadd.f32 %v96, %v641
  %v643 = vpop.f32.mrb[0].mxu0
  %644 = vmatprep.mubr.f32.mxu0 0.0
  %645 = vmatmul.mubr.f32.gmra.mrb[0].mxu0 %v271
  %v646 = vpop.f32.mrb[0].mxu0
  %v647 = vadd.f32 %v96, %v646
  %v648 = vpop.f32.mrb[0].mxu0
  %649 = vmatprep.mubr.f32.mxu0 0.0
  %650 = vmatmul.mubr.f32.gmra.mrb[0].mxu0 %v274
  %v651 = vpop.f32.mrb[0].mxu0
  %v652 = vadd.f32 %v96, %v651
  %v653 = vpop.f32.mrb[0].mxu0
  %654 = vmatprep.mubr.f32.mxu0 0.0
  %655 = vmatmul.mubr.f32.gmra.mrb[0].mxu0 %v277
  %v656 = vpop.f32.mrb[0].mxu0
  %v657 = vadd.f32 %v96, %v656
  %v658 = vpop.f32.mrb[0].mxu0
  %659 = vmatprep.mubr.f32.mxu0 0.0
  %660 = vmatmul.mubr.f32.gmra.mrb[0].mxu0 %v280
  %v661 = vpop.f32.mrb[0].mxu0
  %v662 = vadd.f32 %v96, %v661
  %v663 = vpop.f32.mrb[0].mxu0
  %664 = vmatprep.mubr.f32.mxu0 0.0
  %665 = vmatmul.mubr.f32.gmra.mrb[0].mxu0 %v283
  %v666 = vpop.f32.mrb[0].mxu0
  %v667 = vadd.f32 %v96, %v666
  %v668 = vpop.f32.mrb[0].mxu0
  %669 = vmatprep.mubr.f32.mxu0 0.0
  %670 = vmatmul.mubr.f32.gmra.mrb[0].mxu0 %v286
  %v671 = vpop.f32.mrb[0].mxu0
  %v672 = vadd.f32 %v96, %v671
  %v673 = vpop.f32.mrb[0].mxu0
  %674 = vmatprep.mubr.f32.mxu0 0.0
  %675 = vmatmul.mubr.f32.gmra.mrb[0].mxu0 %v289
  %v676 = vpop.f32.mrb[0].mxu0
  %v677 = vadd.f32 %v96, %v676
  %v678 = vpop.f32.mrb[0].mxu0
  %679 = vdwg.mxu0
  %vm680 = vcmp.gt.f32.partialorder %v362, 0.0
  %vm681 = vcmp.gt.f32.partialorder %v367, 0.0
  %vm682 = vcmp.gt.f32.partialorder %v372, 0.0
  %vm683 = vcmp.gt.f32.partialorder %v377, 0.0
  %vm684 = vcmp.gt.f32.partialorder %v382, 0.0
  %vm685 = vcmp.gt.f32.partialorder %v387, 0.0
  %vm686 = vcmp.gt.f32.partialorder %v392, 0.0
  %vm687 = vcmp.gt.f32.partialorder %v397, 0.0
  %vm688 = vcmp.gt.f32.partialorder %v402, 0.0
  %vm689 = vcmp.gt.f32.partialorder %v407, 0.0
  %vm690 = vcmp.gt.f32.partialorder %v412, 0.0
  %vm691 = vcmp.gt.f32.partialorder %v417, 0.0
  %vm692 = vcmp.gt.f32.partialorder %v422, 0.0
  %vm693 = vcmp.gt.f32.partialorder %v427, 0.0
  %vm694 = vcmp.gt.f32.partialorder %v432, 0.0
  %vm695 = vcmp.gt.f32.partialorder %v437, 0.0
  %vm696 = vcmp.gt.f32.partialorder %v442, 0.0
  %vm697 = vcmp.gt.f32.partialorder %v447, 0.0
  %vm698 = vcmp.gt.f32.partialorder %v452, 0.0
  %vm699 = vcmp.gt.f32.partialorder %v457, 0.0
  %vm700 = vcmp.gt.f32.partialorder %v462, 0.0
  %vm701 = vcmp.gt.f32.partialorder %v467, 0.0
  %vm702 = vcmp.gt.f32.partialorder %v472, 0.0
  %vm703 = vcmp.gt.f32.partialorder %v477, 0.0
  %vm704 = vcmp.gt.f32.partialorder %v482, 0.0
  %vm705 = vcmp.gt.f32.partialorder %v487, 0.0
  %vm706 = vcmp.gt.f32.partialorder %v492, 0.0
  %vm707 = vcmp.gt.f32.partialorder %v497, 0.0
  %vm708 = vcmp.gt.f32.partialorder %v502, 0.0
  %vm709 = vcmp.gt.f32.partialorder %v507, 0.0
  %vm710 = vcmp.gt.f32.partialorder %v512, 0.0
  %vm711 = vcmp.gt.f32.partialorder %v517, 0.0
  %vm712 = vcmp.gt.f32.partialorder %v522, 0.0
  %vm713 = vcmp.gt.f32.partialorder %v527, 0.0
  %vm714 = vcmp.gt.f32.partialorder %v532, 0.0
  %vm715 = vcmp.gt.f32.partialorder %v537, 0.0
  %vm716 = vcmp.gt.f32.partialorder %v542, 0.0
  %vm717 = vcmp.gt.f32.partialorder %v547, 0.0
  %vm718 = vcmp.gt.f32.partialorder %v552, 0.0
  %vm719 = vcmp.gt.f32.partialorder %v557, 0.0
  %vm720 = vcmp.gt.f32.partialorder %v562, 0.0
  %vm721 = vcmp.gt.f32.partialorder %v567, 0.0
  %vm722 = vcmp.gt.f32.partialorder %v572, 0.0
  %vm723 = vcmp.gt.f32.partialorder %v577, 0.0
  %vm724 = vcmp.gt.f32.partialorder %v582, 0.0
  %vm725 = vcmp.gt.f32.partialorder %v587, 0.0
  %vm726 = vcmp.gt.f32.partialorder %v592, 0.0
  %vm727 = vcmp.gt.f32.partialorder %v597, 0.0
  %vm728 = vcmp.gt.f32.partialorder %v602, 0.0
  %vm729 = vcmp.gt.f32.partialorder %v607, 0.0
  %vm730 = vcmp.gt.f32.partialorder %v612, 0.0
  %vm731 = vcmp.gt.f32.partialorder %v617, 0.0
  %vm732 = vcmp.gt.f32.partialorder %v622, 0.0
  %vm733 = vcmp.gt.f32.partialorder %v627, 0.0
  %vm734 = vcmp.gt.f32.partialorder %v632, 0.0
  %vm735 = vcmp.gt.f32.partialorder %v637, 0.0
  %vm736 = vcmp.gt.f32.partialorder %v642, 0.0
  %vm737 = vcmp.gt.f32.partialorder %v647, 0.0
  %vm738 = vcmp.gt.f32.partialorder %v652, 0.0
  %vm739 = vcmp.gt.f32.partialorder %v657, 0.0
  %vm740 = vcmp.gt.f32.partialorder %v662, 0.0
  %vm741 = vcmp.gt.f32.partialorder %v667, 0.0
  %vm742 = vcmp.gt.f32.partialorder %v672, 0.0
  %vm743 = vcmp.gt.f32.partialorder %v677, 0.0
  %v744 = vmul.f32 %v362, 0.2
  %v745 = vmul.f32 %v367, 0.2
  %v746 = vmul.f32 %v372, 0.2
  %v747 = vmul.f32 %v377, 0.2
  %v748 = vmul.f32 %v382, 0.2
  %v749 = vmul.f32 %v387, 0.2
  %v750 = vmul.f32 %v392, 0.2
  %v751 = vmul.f32 %v397, 0.2
  %v752 = vmul.f32 %v402, 0.2
  %v753 = vmul.f32 %v407, 0.2
  %v754 = vmul.f32 %v412, 0.2
  %v755 = vmul.f32 %v417, 0.2
  %v756 = vmul.f32 %v422, 0.2
  %v757 = vmul.f32 %v427, 0.2
  %v758 = vmul.f32 %v432, 0.2
  %v759 = vmul.f32 %v437, 0.2
  %v760 = vmul.f32 %v442, 0.2
  %v761 = vmul.f32 %v447, 0.2
  %v762 = vmul.f32 %v452, 0.2
  %v763 = vmul.f32 %v457, 0.2
  %v764 = vmul.f32 %v462, 0.2
  %v765 = vmul.f32 %v467, 0.2
  %v766 = vmul.f32 %v472, 0.2
  %v767 = vmul.f32 %v477, 0.2
  %v768 = vmul.f32 %v482, 0.2
  %v769 = vmul.f32 %v487, 0.2
  %v770 = vmul.f32 %v492, 0.2
  %v771 = vmul.f32 %v497, 0.2
  %v772 = vmul.f32 %v502, 0.2
  %v773 = vmul.f32 %v507, 0.2
  %v774 = vmul.f32 %v512, 0.2
  %v775 = vmul.f32 %v517, 0.2
  %v776 = vmul.f32 %v522, 0.2
  %v777 = vmul.f32 %v527, 0.2
  %v778 = vmul.f32 %v532, 0.2
  %v779 = vmul.f32 %v537, 0.2
  %v780 = vmul.f32 %v542, 0.2
  %v781 = vmul.f32 %v547, 0.2
  %v782 = vmul.f32 %v552, 0.2
  %v783 = vmul.f32 %v557, 0.2
  %v784 = vmul.f32 %v562, 0.2
  %v785 = vmul.f32 %v567, 0.2
  %v786 = vmul.f32 %v572, 0.2
  %v787 = vmul.f32 %v577, 0.2
  %v788 = vmul.f32 %v582, 0.2
  %v789 = vmul.f32 %v587, 0.2
  %v790 = vmul.f32 %v592, 0.2
  %v791 = vmul.f32 %v597, 0.2
  %v792 = vmul.f32 %v602, 0.2
  %v793 = vmul.f32 %v607, 0.2
  %v794 = vmul.f32 %v612, 0.2
  %v795 = vmul.f32 %v617, 0.2
  %v796 = vmul.f32 %v622, 0.2
  %v797 = vmul.f32 %v627, 0.2
  %v798 = vmul.f32 %v632, 0.2
  %v799 = vmul.f32 %v637, 0.2
  %v800 = vmul.f32 %v642, 0.2
  %v801 = vmul.f32 %v647, 0.2
  %v802 = vmul.f32 %v652, 0.2
  %v803 = vmul.f32 %v657, 0.2
  %v804 = vmul.f32 %v662, 0.2
  %v805 = vmul.f32 %v667, 0.2
  %v806 = vmul.f32 %v672, 0.2
  %v807 = vmul.f32 %v677, 0.2
  %v808 = vsel %vm680, %v362, %v744
  %v809 = vsel %vm681, %v367, %v745
  %v810 = vsel %vm682, %v372, %v746
  %v811 = vsel %vm683, %v377, %v747
  %v812 = vsel %vm684, %v382, %v748
  %v813 = vsel %vm685, %v387, %v749
  %v814 = vsel %vm686, %v392, %v750
  %v815 = vsel %vm687, %v397, %v751
  %v816 = vsel %vm688, %v402, %v752
  %v817 = vsel %vm689, %v407, %v753
  %v818 = vsel %vm690, %v412, %v754
  %v819 = vsel %vm691, %v417, %v755
  %v820 = vsel %vm692, %v422, %v756
  %v821 = vsel %vm693, %v427, %v757
  %v822 = vsel %vm694, %v432, %v758
  %v823 = vsel %vm695, %v437, %v759
  %v824 = vsel %vm696, %v442, %v760
  %v825 = vsel %vm697, %v447, %v761
  %v826 = vsel %vm698, %v452, %v762
  %v827 = vsel %vm699, %v457, %v763
  %v828 = vsel %vm700, %v462, %v764
  %v829 = vsel %vm701, %v467, %v765
  %v830 = vsel %vm702, %v472, %v766
  %v831 = vsel %vm703, %v477, %v767
  %v832 = vsel %vm704, %v482, %v768
  %v833 = vsel %vm705, %v487, %v769
  %v834 = vsel %vm706, %v492, %v770
  %v835 = vsel %vm707, %v497, %v771
  %v836 = vsel %vm708, %v502, %v772
  %v837 = vsel %vm709, %v507, %v773
  %v838 = vsel %vm710, %v512, %v774
  %v839 = vsel %vm711, %v517, %v775
  %v840 = vsel %vm712, %v522, %v776
  %v841 = vsel %vm713, %v527, %v777
  %v842 = vsel %vm714, %v532, %v778
  %v843 = vsel %vm715, %v537, %v779
  %v844 = vsel %vm716, %v542, %v780
  %v845 = vsel %vm717, %v547, %v781
  %v846 = vsel %vm718, %v552, %v782
  %v847 = vsel %vm719, %v557, %v783
  %v848 = vsel %vm720, %v562, %v784
  %v849 = vsel %vm721, %v567, %v785
  %v850 = vsel %vm722, %v572, %v786
  %v851 = vsel %vm723, %v577, %v787
  %v852 = vsel %vm724, %v582, %v788
  %v853 = vsel %vm725, %v587, %v789
  %v854 = vsel %vm726, %v592, %v790
  %v855 = vsel %vm727, %v597, %v791
  %v856 = vsel %vm728, %v602, %v792
  %v857 = vsel %vm729, %v607, %v793
  %v858 = vsel %vm730, %v612, %v794
  %v859 = vsel %vm731, %v617, %v795
  %v860 = vsel %vm732, %v622, %v796
  %v861 = vsel %vm733, %v627, %v797
  %v862 = vsel %vm734, %v632, %v798
  %v863 = vsel %vm735, %v637, %v799
  %v864 = vsel %vm736, %v642, %v800
  %v865 = vsel %vm737, %v647, %v801
  %v866 = vsel %vm738, %v652, %v802
  %v867 = vsel %vm739, %v657, %v803
  %v868 = vsel %vm740, %v662, %v804
  %v869 = vsel %vm741, %v667, %v805
  %v870 = vsel %vm742, %v672, %v806
  %v871 = vsel %vm743, %v677, %v807
  %v872 = vld [vmem:[%s3] sm:$0xff]
  %v873 = vld [vmem:[%s3 + $0x8] sm:$0xff]
  %v874 = vld [vmem:[%s3 + $0x10] sm:$0xff]
  %v875 = vld [vmem:[%s3 + $0x18] sm:$0xff]
  %v876 = vld [vmem:[%s3 + $0x20] sm:$0xff]
  %v877 = vld [vmem:[%s3 + $0x28] sm:$0xff]
  %v878 = vld [vmem:[%s3 + $0x30] sm:$0xff]
  %v879 = vld [vmem:[%s3 + $0x38] sm:$0xff]
  %vm880 = vcmask 523264
  %v882 = vsel %vm880, %v808, 0
  %v885 = vsel %vm880, %v809, 0
  %v888 = vsel %vm880, %v810, 0
  %v891 = vsel %vm880, %v811, 0
  %v894 = vsel %vm880, %v812, 0
  %v897 = vsel %vm880, %v813, 0
  %v900 = vsel %vm880, %v814, 0
  %v903 = vsel %vm880, %v815, 0
  %v906 = vsel %vm880, %v816, 0
  %v909 = vsel %vm880, %v817, 0
  %v912 = vsel %vm880, %v818, 0
  %v915 = vsel %vm880, %v819, 0
  %v918 = vsel %vm880, %v820, 0
  %v921 = vsel %vm880, %v821, 0
  %v924 = vsel %vm880, %v822, 0
  %v927 = vsel %vm880, %v823, 0
  %v930 = vsel %vm880, %v824, 0
  %v933 = vsel %vm880, %v825, 0
  %v936 = vsel %vm880, %v826, 0
  %v939 = vsel %vm880, %v827, 0
  %v942 = vsel %vm880, %v828, 0
  %v945 = vsel %vm880, %v829, 0
  %v948 = vsel %vm880, %v830, 0
  %v951 = vsel %vm880, %v831, 0
  %v954 = vsel %vm880, %v832, 0
  %v957 = vsel %vm880, %v833, 0
  %v960 = vsel %vm880, %v834, 0
  %v963 = vsel %vm880, %v835, 0
  %v966 = vsel %vm880, %v836, 0
  %v969 = vsel %vm880, %v837, 0
  %v972 = vsel %vm880, %v838, 0
  %v975 = vsel %vm880, %v839, 0
  %v978 = vsel %vm880, %v840, 0
  %v981 = vsel %vm880, %v841, 0
  %v984 = vsel %vm880, %v842, 0
  %v987 = vsel %vm880, %v843, 0
  %v990 = vsel %vm880, %v844, 0
  %v993 = vsel %vm880, %v845, 0
  %v996 = vsel %vm880, %v846, 0
  %v999 = vsel %vm880, %v847, 0
  %v1002 = vsel %vm880, %v848, 0
  %v1005 = vsel %vm880, %v849, 0
  %v1008 = vsel %vm880, %v850, 0
  %v1011 = vsel %vm880, %v851, 0
  %v1014 = vsel %vm880, %v852, 0
  %v1017 = vsel %vm880, %v853, 0
  %v1020 = vsel %vm880, %v854, 0
  %v1023 = vsel %vm880, %v855, 0
  %v1026 = vsel %vm880, %v856, 0
  %v1029 = vsel %vm880, %v857, 0
  %v1032 = vsel %vm880, %v858, 0
  %v1035 = vsel %vm880, %v859, 0
  %v1038 = vsel %vm880, %v860, 0
  %v1041 = vsel %vm880, %v861, 0
  %v1044 = vsel %vm880, %v862, 0
  %v1047 = vsel %vm880, %v863, 0
  %v1050 = vsel %vm880, %v864, 0
  %v1053 = vsel %vm880, %v865, 0
  %v1056 = vsel %vm880, %v866, 0
  %v1059 = vsel %vm880, %v867, 0
  %v1062 = vsel %vm880, %v868, 0
  %v1065 = vsel %vm880, %v869, 0
  %v1068 = vsel %vm880, %v870, 0
  %v1071 = vsel %vm880, %v871, 0
  %1073 = vmatprep.subr.mxu0 0.0
  %1074 = vmatpush1.msra.mxu0 %v872
  %1075 = vmatprep.subr.mxu0 0.0
  %1076 = vmatpush1.msra.mxu0 %v873
  %1077 = vmatprep.subr.mxu0 0.0
  %1078 = vmatpush1.msra.mxu0 %v874
  %1079 = vmatprep.subr.mxu0 0.0
  %1080 = vmatpush1.msra.mxu0 %v875
  %1081 = vmatprep.subr.mxu0 0.0
  %1082 = vmatpush1.msra.mxu0 %v876
  %1083 = vmatprep.subr.mxu0 0.0
  %1084 = vmatpush1.msra.mxu0 %v877
  %1085 = vmatprep.subr.mxu0 0.0
  %1086 = vmatpush1.msra.mxu0 %v878
  %1087 = vmatprep.subr.mxu0 0.0
  %1088 = vmatpush1.msra.mxu0 %v879
  %1089 = vmatprep.subr.mxu0 0.0
  %1090 = vmatpush1.msra.mxu0 0.0
  %1091 = vmatprep.subr.mxu0 0.0
  %1092 = vmatpush1.msra.mxu0 0.0
  %1093 = vmatprep.subr.mxu0 0.0
  %1094 = vmatpush1.msra.mxu0 0.0
  %1095 = vmatprep.subr.mxu0 0.0
  %1096 = vmatpush1.msra.mxu0 0.0
  %1097 = vmatprep.subr.mxu0 0.0
  %1098 = vmatpush1.msra.mxu0 0.0
  %1099 = vmatprep.subr.mxu0 0.0
  %1100 = vmatpush1.msra.mxu0 0.0
  %1101 = vmatprep.subr.mxu0 0.0
  %1102 = vmatpush1.msra.mxu0 0.0
  %1103 = vmatprep.subr.mxu0 0.0
  %1104 = vmatpush1.msra.mxu0 0.0
  %1105 = vmatprep.subr.mxu0 0.0
  %1106 = vmatpush1.msra.mxu0 0.0
  %1107 = vmatprep.subr.mxu0 0.0
  %1108 = vmatpush1.msra.mxu0 0.0
  %1109 = vmatprep.subr.mxu0 0.0
  %1110 = vmatpush1.msra.mxu0 0.0
  %1111 = vmatprep.subr.mxu0 0.0
  %1112 = vmatpush1.msra.mxu0 0.0
  %1113 = vmatprep.subr.mxu0 0.0
  %1114 = vmatpush1.msra.mxu0 0.0
  %1115 = vmatprep.subr.mxu0 0.0
  %1116 = vmatpush1.msra.mxu0 0.0
  %1117 = vmatprep.subr.mxu0 0.0
  %1118 = vmatpush1.msra.mxu0 0.0
  %1119 = vmatprep.subr.mxu0 0.0
  %1120 = vmatpush1.msra.mxu0 0.0
  %1121 = vmatprep.subr.mxu0 0.0
  %1122 = vmatpush1.msra.mxu0 0.0
  %1123 = vmatprep.subr.mxu0 0.0
  %1124 = vmatpush1.msra.mxu0 0.0
  %1125 = vmatprep.subr.mxu0 0.0
  %1126 = vmatpush1.msra.mxu0 0.0
  %1127 = vmatprep.subr.mxu0 0.0
  %1128 = vmatpush1.msra.mxu0 0.0
  %1129 = vmatprep.subr.mxu0 0.0
  %1130 = vmatpush1.msra.mxu0 0.0
  %1131 = vmatprep.subr.mxu0 0.0
  %1132 = vmatpush1.msra.mxu0 0.0
  %1133 = vmatprep.subr.mxu0 0.0
  %1134 = vmatpush1.msra.mxu0 0.0
  %1135 = vmatprep.subr.mxu0 0.0
  %1136 = vmatpush1.msra.mxu0 0.0
  %1137 = vmatprep.mubr.f32.mxu0 0.0
  %1138 = vmatmul.mubr.f32.gmra.mrb[0].mxu0 %v882
  %v1139 = vpop.f32.mrb[0].mxu0
  %v1140 = vadd.f32 0.0, %v1139
  %v1141 = vpop.f32.mrb[0].mxu0
  %1142 = vmatprep.mubr.f32.mxu0 0.0
  %1143 = vmatmul.mubr.f32.gmra.mrb[0].mxu0 %v885
  %v1144 = vpop.f32.mrb[0].mxu0
  %v1145 = vadd.f32 0.0, %v1144
  %v1146 = vpop.f32.mrb[0].mxu0
  %1147 = vmatprep.mubr.f32.mxu0 0.0
  %1148 = vmatmul.mubr.f32.gmra.mrb[0].mxu0 %v888
  %v1149 = vpop.f32.mrb[0].mxu0
  %v1150 = vadd.f32 0.0, %v1149
  %v1151 = vpop.f32.mrb[0].mxu0
  %1152 = vmatprep.mubr.f32.mxu0 0.0
  %1153 = vmatmul.mubr.f32.gmra.mrb[0].mxu0 %v891
  %v1154 = vpop.f32.mrb[0].mxu0
  %v1155 = vadd.f32 0.0, %v1154
  %v1156 = vpop.f32.mrb[0].mxu0
  %1157 = vmatprep.mubr.f32.mxu0 0.0
  %1158 = vmatmul.mubr.f32.gmra.mrb[0].mxu0 %v894
  %v1159 = vpop.f32.mrb[0].mxu0
  %v1160 = vadd.f32 0.0, %v1159
  %v1161 = vpop.f32.mrb[0].mxu0
  %1162 = vmatprep.mubr.f32.mxu0 0.0
  %1163 = vmatmul.mubr.f32.gmra.mrb[0].mxu0 %v897
  %v1164 = vpop.f32.mrb[0].mxu0
  %v1165 = vadd.f32 0.0, %v1164
  %v1166 = vpop.f32.mrb[0].mxu0
  %1167 = vmatprep.mubr.f32.mxu0 0.0
  %1168 = vmatmul.mubr.f32.gmra.mrb[0].mxu0 %v900
  %v1169 = vpop.f32.mrb[0].mxu0
  %v1170 = vadd.f32 0.0, %v1169
  %v1171 = vpop.f32.mrb[0].mxu0
  %1172 = vmatprep.mubr.f32.mxu0 0.0
  %1173 = vmatmul.mubr.f32.gmra.mrb[0].mxu0 %v903
  %v1174 = vpop.f32.mrb[0].mxu0
  %v1175 = vadd.f32 0.0, %v1174
  %v1176 = vpop.f32.mrb[0].mxu0
  %1177 = vmatprep.mubr.f32.mxu0 0.0
  %1178 = vmatmul.mubr.f32.gmra.mrb[0].mxu0 %v906
  %v1179 = vpop.f32.mrb[0].mxu0
  %v1180 = vadd.f32 0.0, %v1179
  %v1181 = vpop.f32.mrb[0].mxu0
  %1182 = vmatprep.mubr.f32.mxu0 0.0
  %1183 = vmatmul.mubr.f32.gmra.mrb[0].mxu0 %v909
  %v1184 = vpop.f32.mrb[0].mxu0
  %v1185 = vadd.f32 0.0, %v1184
  %v1186 = vpop.f32.mrb[0].mxu0
  %1187 = vmatprep.mubr.f32.mxu0 0.0
  %1188 = vmatmul.mubr.f32.gmra.mrb[0].mxu0 %v912
  %v1189 = vpop.f32.mrb[0].mxu0
  %v1190 = vadd.f32 0.0, %v1189
  %v1191 = vpop.f32.mrb[0].mxu0
  %1192 = vmatprep.mubr.f32.mxu0 0.0
  %1193 = vmatmul.mubr.f32.gmra.mrb[0].mxu0 %v915
  %v1194 = vpop.f32.mrb[0].mxu0
  %v1195 = vadd.f32 0.0, %v1194
  %v1196 = vpop.f32.mrb[0].mxu0
  %1197 = vmatprep.mubr.f32.mxu0 0.0
  %1198 = vmatmul.mubr.f32.gmra.mrb[0].mxu0 %v918
  %v1199 = vpop.f32.mrb[0].mxu0
  %v1200 = vadd.f32 0.0, %v1199
  %v1201 = vpop.f32.mrb[0].mxu0
  %1202 = vmatprep.mubr.f32.mxu0 0.0
  %1203 = vmatmul.mubr.f32.gmra.mrb[0].mxu0 %v921
  %v1204 = vpop.f32.mrb[0].mxu0
  %v1205 = vadd.f32 0.0, %v1204
  %v1206 = vpop.f32.mrb[0].mxu0
  %1207 = vmatprep.mubr.f32.mxu0 0.0
  %1208 = vmatmul.mubr.f32.gmra.mrb[0].mxu0 %v924
  %v1209 = vpop.f32.mrb[0].mxu0
  %v1210 = vadd.f32 0.0, %v1209
  %v1211 = vpop.f32.mrb[0].mxu0
  %1212 = vmatprep.mubr.f32.mxu0 0.0
  %1213 = vmatmul.mubr.f32.gmra.mrb[0].mxu0 %v927
  %v1214 = vpop.f32.mrb[0].mxu0
  %v1215 = vadd.f32 0.0, %v1214
  %v1216 = vpop.f32.mrb[0].mxu0
  %1217 = vmatprep.mubr.f32.mxu0 0.0
  %1218 = vmatmul.mubr.f32.gmra.mrb[0].mxu0 %v930
  %v1219 = vpop.f32.mrb[0].mxu0
  %v1220 = vadd.f32 0.0, %v1219
  %v1221 = vpop.f32.mrb[0].mxu0
  %1222 = vmatprep.mubr.f32.mxu0 0.0
  %1223 = vmatmul.mubr.f32.gmra.mrb[0].mxu0 %v933
  %v1224 = vpop.f32.mrb[0].mxu0
  %v1225 = vadd.f32 0.0, %v1224
  %v1226 = vpop.f32.mrb[0].mxu0
  %1227 = vmatprep.mubr.f32.mxu0 0.0
  %1228 = vmatmul.mubr.f32.gmra.mrb[0].mxu0 %v936
  %v1229 = vpop.f32.mrb[0].mxu0
  %v1230 = vadd.f32 0.0, %v1229
  %v1231 = vpop.f32.mrb[0].mxu0
  %1232 = vmatprep.mubr.f32.mxu0 0.0
  %1233 = vmatmul.mubr.f32.gmra.mrb[0].mxu0 %v939
  %v1234 = vpop.f32.mrb[0].mxu0
  %v1235 = vadd.f32 0.0, %v1234
  %v1236 = vpop.f32.mrb[0].mxu0
  %1237 = vmatprep.mubr.f32.mxu0 0.0
  %1238 = vmatmul.mubr.f32.gmra.mrb[0].mxu0 %v942
  %v1239 = vpop.f32.mrb[0].mxu0
  %v1240 = vadd.f32 0.0, %v1239
  %v1241 = vpop.f32.mrb[0].mxu0
  %1242 = vmatprep.mubr.f32.mxu0 0.0
  %1243 = vmatmul.mubr.f32.gmra.mrb[0].mxu0 %v945
  %v1244 = vpop.f32.mrb[0].mxu0
  %v1245 = vadd.f32 0.0, %v1244
  %v1246 = vpop.f32.mrb[0].mxu0
  %1247 = vmatprep.mubr.f32.mxu0 0.0
  %1248 = vmatmul.mubr.f32.gmra.mrb[0].mxu0 %v948
  %v1249 = vpop.f32.mrb[0].mxu0
  %v1250 = vadd.f32 0.0, %v1249
  %v1251 = vpop.f32.mrb[0].mxu0
  %1252 = vmatprep.mubr.f32.mxu0 0.0
  %1253 = vmatmul.mubr.f32.gmra.mrb[0].mxu0 %v951
  %v1254 = vpop.f32.mrb[0].mxu0
  %v1255 = vadd.f32 0.0, %v1254
  %v1256 = vpop.f32.mrb[0].mxu0
  %1257 = vmatprep.mubr.f32.mxu0 0.0
  %1258 = vmatmul.mubr.f32.gmra.mrb[0].mxu0 %v954
  %v1259 = vpop.f32.mrb[0].mxu0
  %v1260 = vadd.f32 0.0, %v1259
  %v1261 = vpop.f32.mrb[0].mxu0
  %1262 = vmatprep.mubr.f32.mxu0 0.0
  %1263 = vmatmul.mubr.f32.gmra.mrb[0].mxu0 %v957
  %v1264 = vpop.f32.mrb[0].mxu0
  %v1265 = vadd.f32 0.0, %v1264
  %v1266 = vpop.f32.mrb[0].mxu0
  %1267 = vmatprep.mubr.f32.mxu0 0.0
  %1268 = vmatmul.mubr.f32.gmra.mrb[0].mxu0 %v960
  %v1269 = vpop.f32.mrb[0].mxu0
  %v1270 = vadd.f32 0.0, %v1269
  %v1271 = vpop.f32.mrb[0].mxu0
  %1272 = vmatprep.mubr.f32.mxu0 0.0
  %1273 = vmatmul.mubr.f32.gmra.mrb[0].mxu0 %v963
  %v1274 = vpop.f32.mrb[0].mxu0
  %v1275 = vadd.f32 0.0, %v1274
  %v1276 = vpop.f32.mrb[0].mxu0
  %1277 = vmatprep.mubr.f32.mxu0 0.0
  %1278 = vmatmul.mubr.f32.gmra.mrb[0].mxu0 %v966
  %v1279 = vpop.f32.mrb[0].mxu0
  %v1280 = vadd.f32 0.0, %v1279
  %v1281 = vpop.f32.mrb[0].mxu0
  %1282 = vmatprep.mubr.f32.mxu0 0.0
  %1283 = vmatmul.mubr.f32.gmra.mrb[0].mxu0 %v969
  %v1284 = vpop.f32.mrb[0].mxu0
  %v1285 = vadd.f32 0.0, %v1284
  %v1286 = vpop.f32.mrb[0].mxu0
  %1287 = vmatprep.mubr.f32.mxu0 0.0
  %1288 = vmatmul.mubr.f32.gmra.mrb[0].mxu0 %v972
  %v1289 = vpop.f32.mrb[0].mxu0
  %v1290 = vadd.f32 0.0, %v1289
  %v1291 = vpop.f32.mrb[0].mxu0
  %1292 = vmatprep.mubr.f32.mxu0 0.0
  %1293 = vmatmul.mubr.f32.gmra.mrb[0].mxu0 %v975
  %v1294 = vpop.f32.mrb[0].mxu0
  %v1295 = vadd.f32 0.0, %v1294
  %v1296 = vpop.f32.mrb[0].mxu0
  %1297 = vmatprep.mubr.f32.mxu0 0.0
  %1298 = vmatmul.mubr.f32.gmra.mrb[0].mxu0 %v978
  %v1299 = vpop.f32.mrb[0].mxu0
  %v1300 = vadd.f32 0.0, %v1299
  %v1301 = vpop.f32.mrb[0].mxu0
  %1302 = vmatprep.mubr.f32.mxu0 0.0
  %1303 = vmatmul.mubr.f32.gmra.mrb[0].mxu0 %v981
  %v1304 = vpop.f32.mrb[0].mxu0
  %v1305 = vadd.f32 0.0, %v1304
  %v1306 = vpop.f32.mrb[0].mxu0
  %1307 = vmatprep.mubr.f32.mxu0 0.0
  %1308 = vmatmul.mubr.f32.gmra.mrb[0].mxu0 %v984
  %v1309 = vpop.f32.mrb[0].mxu0
  %v1310 = vadd.f32 0.0, %v1309
  %v1311 = vpop.f32.mrb[0].mxu0
  %1312 = vmatprep.mubr.f32.mxu0 0.0
  %1313 = vmatmul.mubr.f32.gmra.mrb[0].mxu0 %v987
  %v1314 = vpop.f32.mrb[0].mxu0
  %v1315 = vadd.f32 0.0, %v1314
  %v1316 = vpop.f32.mrb[0].mxu0
  %1317 = vmatprep.mubr.f32.mxu0 0.0
  %1318 = vmatmul.mubr.f32.gmra.mrb[0].mxu0 %v990
  %v1319 = vpop.f32.mrb[0].mxu0
  %v1320 = vadd.f32 0.0, %v1319
  %v1321 = vpop.f32.mrb[0].mxu0
  %1322 = vmatprep.mubr.f32.mxu0 0.0
  %1323 = vmatmul.mubr.f32.gmra.mrb[0].mxu0 %v993
  %v1324 = vpop.f32.mrb[0].mxu0
  %v1325 = vadd.f32 0.0, %v1324
  %v1326 = vpop.f32.mrb[0].mxu0
  %1327 = vmatprep.mubr.f32.mxu0 0.0
  %1328 = vmatmul.mubr.f32.gmra.mrb[0].mxu0 %v996
  %v1329 = vpop.f32.mrb[0].mxu0
  %v1330 = vadd.f32 0.0, %v1329
  %v1331 = vpop.f32.mrb[0].mxu0
  %1332 = vmatprep.mubr.f32.mxu0 0.0
  %1333 = vmatmul.mubr.f32.gmra.mrb[0].mxu0 %v999
  %v1334 = vpop.f32.mrb[0].mxu0
  %v1335 = vadd.f32 0.0, %v1334
  %v1336 = vpop.f32.mrb[0].mxu0
  %1337 = vmatprep.mubr.f32.mxu0 0.0
  %1338 = vmatmul.mubr.f32.gmra.mrb[0].mxu0 %v1002
  %v1339 = vpop.f32.mrb[0].mxu0
  %v1340 = vadd.f32 0.0, %v1339
  %v1341 = vpop.f32.mrb[0].mxu0
  %1342 = vmatprep.mubr.f32.mxu0 0.0
  %1343 = vmatmul.mubr.f32.gmra.mrb[0].mxu0 %v1005
  %v1344 = vpop.f32.mrb[0].mxu0
  %v1345 = vadd.f32 0.0, %v1344
  %v1346 = vpop.f32.mrb[0].mxu0
  %1347 = vmatprep.mubr.f32.mxu0 0.0
  %1348 = vmatmul.mubr.f32.gmra.mrb[0].mxu0 %v1008
  %v1349 = vpop.f32.mrb[0].mxu0
  %v1350 = vadd.f32 0.0, %v1349
  %v1351 = vpop.f32.mrb[0].mxu0
  %1352 = vmatprep.mubr.f32.mxu0 0.0
  %1353 = vmatmul.mubr.f32.gmra.mrb[0].mxu0 %v1011
  %v1354 = vpop.f32.mrb[0].mxu0
  %v1355 = vadd.f32 0.0, %v1354
  %v1356 = vpop.f32.mrb[0].mxu0
  %1357 = vmatprep.mubr.f32.mxu0 0.0
  %1358 = vmatmul.mubr.f32.gmra.mrb[0].mxu0 %v1014
  %v1359 = vpop.f32.mrb[0].mxu0
  %v1360 = vadd.f32 0.0, %v1359
  %v1361 = vpop.f32.mrb[0].mxu0
  %1362 = vmatprep.mubr.f32.mxu0 0.0
  %1363 = vmatmul.mubr.f32.gmra.mrb[0].mxu0 %v1017
  %v1364 = vpop.f32.mrb[0].mxu0
  %v1365 = vadd.f32 0.0, %v1364
  %v1366 = vpop.f32.mrb[0].mxu0
  %1367 = vmatprep.mubr.f32.mxu0 0.0
  %1368 = vmatmul.mubr.f32.gmra.mrb[0].mxu0 %v1020
  %v1369 = vpop.f32.mrb[0].mxu0
  %v1370 = vadd.f32 0.0, %v1369
  %v1371 = vpop.f32.mrb[0].mxu0
  %1372 = vmatprep.mubr.f32.mxu0 0.0
  %1373 = vmatmul.mubr.f32.gmra.mrb[0].mxu0 %v1023
  %v1374 = vpop.f32.mrb[0].mxu0
  %v1375 = vadd.f32 0.0, %v1374
  %v1376 = vpop.f32.mrb[0].mxu0
  %1377 = vmatprep.mubr.f32.mxu0 0.0
  %1378 = vmatmul.mubr.f32.gmra.mrb[0].mxu0 %v1026
  %v1379 = vpop.f32.mrb[0].mxu0
  %v1380 = vadd.f32 0.0, %v1379
  %v1381 = vpop.f32.mrb[0].mxu0
  %1382 = vmatprep.mubr.f32.mxu0 0.0
  %1383 = vmatmul.mubr.f32.gmra.mrb[0].mxu0 %v1029
  %v1384 = vpop.f32.mrb[0].mxu0
  %v1385 = vadd.f32 0.0, %v1384
  %v1386 = vpop.f32.mrb[0].mxu0
  %1387 = vmatprep.mubr.f32.mxu0 0.0
  %1388 = vmatmul.mubr.f32.gmra.mrb[0].mxu0 %v1032
  %v1389 = vpop.f32.mrb[0].mxu0
  %v1390 = vadd.f32 0.0, %v1389
  %v1391 = vpop.f32.mrb[0].mxu0
  %1392 = vmatprep.mubr.f32.mxu0 0.0
  %1393 = vmatmul.mubr.f32.gmra.mrb[0].mxu0 %v1035
  %v1394 = vpop.f32.mrb[0].mxu0
  %v1395 = vadd.f32 0.0, %v1394
  %v1396 = vpop.f32.mrb[0].mxu0
  %1397 = vmatprep.mubr.f32.mxu0 0.0
  %1398 = vmatmul.mubr.f32.gmra.mrb[0].mxu0 %v1038
  %v1399 = vpop.f32.mrb[0].mxu0
  %v1400 = vadd.f32 0.0, %v1399
  %v1401 = vpop.f32.mrb[0].mxu0
  %1402 = vmatprep.mubr.f32.mxu0 0.0
  %1403 = vmatmul.mubr.f32.gmra.mrb[0].mxu0 %v1041
  %v1404 = vpop.f32.mrb[0].mxu0
  %v1405 = vadd.f32 0.0, %v1404
  %v1406 = vpop.f32.mrb[0].mxu0
  %1407 = vmatprep.mubr.f32.mxu0 0.0
  %1408 = vmatmul.mubr.f32.gmra.mrb[0].mxu0 %v1044
  %v1409 = vpop.f32.mrb[0].mxu0
  %v1410 = vadd.f32 0.0, %v1409
  %v1411 = vpop.f32.mrb[0].mxu0
  %1412 = vmatprep.mubr.f32.mxu0 0.0
  %1413 = vmatmul.mubr.f32.gmra.mrb[0].mxu0 %v1047
  %v1414 = vpop.f32.mrb[0].mxu0
  %v1415 = vadd.f32 0.0, %v1414
  %v1416 = vpop.f32.mrb[0].mxu0
  %1417 = vmatprep.mubr.f32.mxu0 0.0
  %1418 = vmatmul.mubr.f32.gmra.mrb[0].mxu0 %v1050
  %v1419 = vpop.f32.mrb[0].mxu0
  %v1420 = vadd.f32 0.0, %v1419
  %v1421 = vpop.f32.mrb[0].mxu0
  %1422 = vmatprep.mubr.f32.mxu0 0.0
  %1423 = vmatmul.mubr.f32.gmra.mrb[0].mxu0 %v1053
  %v1424 = vpop.f32.mrb[0].mxu0
  %v1425 = vadd.f32 0.0, %v1424
  %v1426 = vpop.f32.mrb[0].mxu0
  %1427 = vmatprep.mubr.f32.mxu0 0.0
  %1428 = vmatmul.mubr.f32.gmra.mrb[0].mxu0 %v1056
  %v1429 = vpop.f32.mrb[0].mxu0
  %v1430 = vadd.f32 0.0, %v1429
  %v1431 = vpop.f32.mrb[0].mxu0
  %1432 = vmatprep.mubr.f32.mxu0 0.0
  %1433 = vmatmul.mubr.f32.gmra.mrb[0].mxu0 %v1059
  %v1434 = vpop.f32.mrb[0].mxu0
  %v1435 = vadd.f32 0.0, %v1434
  %v1436 = vpop.f32.mrb[0].mxu0
  %1437 = vmatprep.mubr.f32.mxu0 0.0
  %1438 = vmatmul.mubr.f32.gmra.mrb[0].mxu0 %v1062
  %v1439 = vpop.f32.mrb[0].mxu0
  %v1440 = vadd.f32 0.0, %v1439
  %v1441 = vpop.f32.mrb[0].mxu0
  %1442 = vmatprep.mubr.f32.mxu0 0.0
  %1443 = vmatmul.mubr.f32.gmra.mrb[0].mxu0 %v1065
  %v1444 = vpop.f32.mrb[0].mxu0
  %v1445 = vadd.f32 0.0, %v1444
  %v1446 = vpop.f32.mrb[0].mxu0
  %1447 = vmatprep.mubr.f32.mxu0 0.0
  %1448 = vmatmul.mubr.f32.gmra.mrb[0].mxu0 %v1068
  %v1449 = vpop.f32.mrb[0].mxu0
  %v1450 = vadd.f32 0.0, %v1449
  %v1451 = vpop.f32.mrb[0].mxu0
  %1452 = vmatprep.mubr.f32.mxu0 0.0
  %1453 = vmatmul.mubr.f32.gmra.mrb[0].mxu0 %v1071
  %v1454 = vpop.f32.mrb[0].mxu0
  %v1455 = vadd.f32 0.0, %v1454
  %v1456 = vpop.f32.mrb[0].mxu0
  %1457 = vdwg.mxu0
  %v1458 = vld [vmem:[%s4] sm:$0x1]
  %v1460 = vlaneseq
  %v1461 = vshrl.u32 %v1460, 7
  %v1462 = vsub.s32 0, %v1461
  %v1463 = vrot.slane %v1458, %v1462
  %v1465 = vmul.f32 %v1140, %v1463
  %v1466 = vmul.f32 %v1145, %v1463
  %v1467 = vmul.f32 %v1150, %v1463
  %v1468 = vmul.f32 %v1155, %v1463
  %v1469 = vmul.f32 %v1160, %v1463
  %v1470 = vmul.f32 %v1165, %v1463
  %v1471 = vmul.f32 %v1170, %v1463
  %v1472 = vmul.f32 %v1175, %v1463
  %v1473 = vmul.f32 %v1180, %v1463
  %v1474 = vmul.f32 %v1185, %v1463
  %v1475 = vmul.f32 %v1190, %v1463
  %v1476 = vmul.f32 %v1195, %v1463
  %v1477 = vmul.f32 %v1200, %v1463
  %v1478 = vmul.f32 %v1205, %v1463
  %v1479 = vmul.f32 %v1210, %v1463
  %v1480 = vmul.f32 %v1215, %v1463
  %v1481 = vmul.f32 %v1220, %v1463
  %v1482 = vmul.f32 %v1225, %v1463
  %v1483 = vmul.f32 %v1230, %v1463
  %v1484 = vmul.f32 %v1235, %v1463
  %v1485 = vmul.f32 %v1240, %v1463
  %v1486 = vmul.f32 %v1245, %v1463
  %v1487 = vmul.f32 %v1250, %v1463
  %v1488 = vmul.f32 %v1255, %v1463
  %v1489 = vmul.f32 %v1260, %v1463
  %v1490 = vmul.f32 %v1265, %v1463
  %v1491 = vmul.f32 %v1270, %v1463
  %v1492 = vmul.f32 %v1275, %v1463
  %v1493 = vmul.f32 %v1280, %v1463
  %v1494 = vmul.f32 %v1285, %v1463
  %v1495 = vmul.f32 %v1290, %v1463
  %v1496 = vmul.f32 %v1295, %v1463
  %v1497 = vmul.f32 %v1300, %v1463
  %v1498 = vmul.f32 %v1305, %v1463
  %v1499 = vmul.f32 %v1310, %v1463
  %v1500 = vmul.f32 %v1315, %v1463
  %v1501 = vmul.f32 %v1320, %v1463
  %v1502 = vmul.f32 %v1325, %v1463
  %v1503 = vmul.f32 %v1330, %v1463
  %v1504 = vmul.f32 %v1335, %v1463
  %v1505 = vmul.f32 %v1340, %v1463
  %v1506 = vmul.f32 %v1345, %v1463
  %v1507 = vmul.f32 %v1350, %v1463
  %v1508 = vmul.f32 %v1355, %v1463
  %v1509 = vmul.f32 %v1360, %v1463
  %v1510 = vmul.f32 %v1365, %v1463
  %v1511 = vmul.f32 %v1370, %v1463
  %v1512 = vmul.f32 %v1375, %v1463
  %v1513 = vmul.f32 %v1380, %v1463
  %v1514 = vmul.f32 %v1385, %v1463
  %v1515 = vmul.f32 %v1390, %v1463
  %v1516 = vmul.f32 %v1395, %v1463
  %v1517 = vmul.f32 %v1400, %v1463
  %v1518 = vmul.f32 %v1405, %v1463
  %v1519 = vmul.f32 %v1410, %v1463
  %v1520 = vmul.f32 %v1415, %v1463
  %v1521 = vmul.f32 %v1420, %v1463
  %v1522 = vmul.f32 %v1425, %v1463
  %v1523 = vmul.f32 %v1430, %v1463
  %v1524 = vmul.f32 %v1435, %v1463
  %v1525 = vmul.f32 %v1440, %v1463
  %v1526 = vmul.f32 %v1445, %v1463
  %v1527 = vmul.f32 %v1450, %v1463
  %v1528 = vmul.f32 %v1455, %v1463
  %v1529 = vld [vmem:[%s5] sm:$0x1]
  %v1531 = vlaneseq
  %v1532 = vshrl.u32 %v1531, 7
  %v1533 = vsub.s32 0, %v1532
  %v1534 = vrot.slane %v1529, %v1533
  %v1536 = vadd.f32 %v1465, %v1534
  %v1537 = vadd.f32 %v1466, %v1534
  %v1538 = vadd.f32 %v1467, %v1534
  %v1539 = vadd.f32 %v1468, %v1534
  %v1540 = vadd.f32 %v1469, %v1534
  %v1541 = vadd.f32 %v1470, %v1534
  %v1542 = vadd.f32 %v1471, %v1534
  %v1543 = vadd.f32 %v1472, %v1534
  %v1544 = vadd.f32 %v1473, %v1534
  %v1545 = vadd.f32 %v1474, %v1534
  %v1546 = vadd.f32 %v1475, %v1534
  %v1547 = vadd.f32 %v1476, %v1534
  %v1548 = vadd.f32 %v1477, %v1534
  %v1549 = vadd.f32 %v1478, %v1534
  %v1550 = vadd.f32 %v1479, %v1534
  %v1551 = vadd.f32 %v1480, %v1534
  %v1552 = vadd.f32 %v1481, %v1534
  %v1553 = vadd.f32 %v1482, %v1534
  %v1554 = vadd.f32 %v1483, %v1534
  %v1555 = vadd.f32 %v1484, %v1534
  %v1556 = vadd.f32 %v1485, %v1534
  %v1557 = vadd.f32 %v1486, %v1534
  %v1558 = vadd.f32 %v1487, %v1534
  %v1559 = vadd.f32 %v1488, %v1534
  %v1560 = vadd.f32 %v1489, %v1534
  %v1561 = vadd.f32 %v1490, %v1534
  %v1562 = vadd.f32 %v1491, %v1534
  %v1563 = vadd.f32 %v1492, %v1534
  %v1564 = vadd.f32 %v1493, %v1534
  %v1565 = vadd.f32 %v1494, %v1534
  %v1566 = vadd.f32 %v1495, %v1534
  %v1567 = vadd.f32 %v1496, %v1534
  %v1568 = vadd.f32 %v1497, %v1534
  %v1569 = vadd.f32 %v1498, %v1534
  %v1570 = vadd.f32 %v1499, %v1534
  %v1571 = vadd.f32 %v1500, %v1534
  %v1572 = vadd.f32 %v1501, %v1534
  %v1573 = vadd.f32 %v1502, %v1534
  %v1574 = vadd.f32 %v1503, %v1534
  %v1575 = vadd.f32 %v1504, %v1534
  %v1576 = vadd.f32 %v1505, %v1534
  %v1577 = vadd.f32 %v1506, %v1534
  %v1578 = vadd.f32 %v1507, %v1534
  %v1579 = vadd.f32 %v1508, %v1534
  %v1580 = vadd.f32 %v1509, %v1534
  %v1581 = vadd.f32 %v1510, %v1534
  %v1582 = vadd.f32 %v1511, %v1534
  %v1583 = vadd.f32 %v1512, %v1534
  %v1584 = vadd.f32 %v1513, %v1534
  %v1585 = vadd.f32 %v1514, %v1534
  %v1586 = vadd.f32 %v1515, %v1534
  %v1587 = vadd.f32 %v1516, %v1534
  %v1588 = vadd.f32 %v1517, %v1534
  %v1589 = vadd.f32 %v1518, %v1534
  %v1590 = vadd.f32 %v1519, %v1534
  %v1591 = vadd.f32 %v1520, %v1534
  %v1592 = vadd.f32 %v1521, %v1534
  %v1593 = vadd.f32 %v1522, %v1534
  %v1594 = vadd.f32 %v1523, %v1534
  %v1595 = vadd.f32 %v1524, %v1534
  %v1596 = vadd.f32 %v1525, %v1534
  %v1597 = vadd.f32 %v1526, %v1534
  %v1598 = vadd.f32 %v1527, %v1534
  %v1599 = vadd.f32 %v1528, %v1534
  %vm1600 = vcmp.gt.f32.partialorder %v1536, 0.0
  %vm1601 = vcmp.gt.f32.partialorder %v1537, 0.0
  %vm1602 = vcmp.gt.f32.partialorder %v1538, 0.0
  %vm1603 = vcmp.gt.f32.partialorder %v1539, 0.0
  %vm1604 = vcmp.gt.f32.partialorder %v1540, 0.0
  %vm1605 = vcmp.gt.f32.partialorder %v1541, 0.0
  %vm1606 = vcmp.gt.f32.partialorder %v1542, 0.0
  %vm1607 = vcmp.gt.f32.partialorder %v1543, 0.0
  %vm1608 = vcmp.gt.f32.partialorder %v1544, 0.0
  %vm1609 = vcmp.gt.f32.partialorder %v1545, 0.0
  %vm1610 = vcmp.gt.f32.partialorder %v1546, 0.0
  %vm1611 = vcmp.gt.f32.partialorder %v1547, 0.0
  %vm1612 = vcmp.gt.f32.partialorder %v1548, 0.0
  %vm1613 = vcmp.gt.f32.partialorder %v1549, 0.0
  %vm1614 = vcmp.gt.f32.partialorder %v1550, 0.0
  %vm1615 = vcmp.gt.f32.partialorder %v1551, 0.0
  %vm1616 = vcmp.gt.f32.partialorder %v1552, 0.0
  %vm1617 = vcmp.gt.f32.partialorder %v1553, 0.0
  %vm1618 = vcmp.gt.f32.partialorder %v1554, 0.0
  %vm1619 = vcmp.gt.f32.partialorder %v1555, 0.0
  %vm1620 = vcmp.gt.f32.partialorder %v1556, 0.0
  %vm1621 = vcmp.gt.f32.partialorder %v1557, 0.0
  %vm1622 = vcmp.gt.f32.partialorder %v1558, 0.0
  %vm1623 = vcmp.gt.f32.partialorder %v1559, 0.0
  %vm1624 = vcmp.gt.f32.partialorder %v1560, 0.0
  %vm1625 = vcmp.gt.f32.partialorder %v1561, 0.0
  %vm1626 = vcmp.gt.f32.partialorder %v1562, 0.0
  %vm1627 = vcmp.gt.f32.partialorder %v1563, 0.0
  %vm1628 = vcmp.gt.f32.partialorder %v1564, 0.0
  %vm1629 = vcmp.gt.f32.partialorder %v1565, 0.0
  %vm1630 = vcmp.gt.f32.partialorder %v1566, 0.0
  %vm1631 = vcmp.gt.f32.partialorder %v1567, 0.0
  %vm1632 = vcmp.gt.f32.partialorder %v1568, 0.0
  %vm1633 = vcmp.gt.f32.partialorder %v1569, 0.0
  %vm1634 = vcmp.gt.f32.partialorder %v1570, 0.0
  %vm1635 = vcmp.gt.f32.partialorder %v1571, 0.0
  %vm1636 = vcmp.gt.f32.partialorder %v1572, 0.0
  %vm1637 = vcmp.gt.f32.partialorder %v1573, 0.0
  %vm1638 = vcmp.gt.f32.partialorder %v1574, 0.0
  %vm1639 = vcmp.gt.f32.partialorder %v1575, 0.0
  %vm1640 = vcmp.gt.f32.partialorder %v1576, 0.0
  %vm1641 = vcmp.gt.f32.partialorder %v1577, 0.0
  %vm1642 = vcmp.gt.f32.partialorder %v1578, 0.0
  %vm1643 = vcmp.gt.f32.partialorder %v1579, 0.0
  %vm1644 = vcmp.gt.f32.partialorder %v1580, 0.0
  %vm1645 = vcmp.gt.f32.partialorder %v1581, 0.0
  %vm1646 = vcmp.gt.f32.partialorder %v1582, 0.0
  %vm1647 = vcmp.gt.f32.partialorder %v1583, 0.0
  %vm1648 = vcmp.gt.f32.partialorder %v1584, 0.0
  %vm1649 = vcmp.gt.f32.partialorder %v1585, 0.0
  %vm1650 = vcmp.gt.f32.partialorder %v1586, 0.0
  %vm1651 = vcmp.gt.f32.partialorder %v1587, 0.0
  %vm1652 = vcmp.gt.f32.partialorder %v1588, 0.0
  %vm1653 = vcmp.gt.f32.partialorder %v1589, 0.0
  %vm1654 = vcmp.gt.f32.partialorder %v1590, 0.0
  %vm1655 = vcmp.gt.f32.partialorder %v1591, 0.0
  %vm1656 = vcmp.gt.f32.partialorder %v1592, 0.0
  %vm1657 = vcmp.gt.f32.partialorder %v1593, 0.0
  %vm1658 = vcmp.gt.f32.partialorder %v1594, 0.0
  %vm1659 = vcmp.gt.f32.partialorder %v1595, 0.0
  %vm1660 = vcmp.gt.f32.partialorder %v1596, 0.0
  %vm1661 = vcmp.gt.f32.partialorder %v1597, 0.0
  %vm1662 = vcmp.gt.f32.partialorder %v1598, 0.0
  %vm1663 = vcmp.gt.f32.partialorder %v1599, 0.0
  %v1664 = vmul.f32 %v1536, 0.2
  %v1665 = vmul.f32 %v1537, 0.2
  %v1666 = vmul.f32 %v1538, 0.2
  %v1667 = vmul.f32 %v1539, 0.2
  %v1668 = vmul.f32 %v1540, 0.2
  %v1669 = vmul.f32 %v1541, 0.2
  %v1670 = vmul.f32 %v1542, 0.2
  %v1671 = vmul.f32 %v1543, 0.2
  %v1672 = vmul.f32 %v1544, 0.2
  %v1673 = vmul.f32 %v1545, 0.2
  %v1674 = vmul.f32 %v1546, 0.2
  %v1675 = vmul.f32 %v1547, 0.2
  %v1676 = vmul.f32 %v1548, 0.2
  %v1677 = vmul.f32 %v1549, 0.2
  %v1678 = vmul.f32 %v1550, 0.2
  %v1679 = vmul.f32 %v1551, 0.2
  %v1680 = vmul.f32 %v1552, 0.2
  %v1681 = vmul.f32 %v1553, 0.2
  %v1682 = vmul.f32 %v1554, 0.2
  %v1683 = vmul.f32 %v1555, 0.2
  %v1684 = vmul.f32 %v1556, 0.2
  %v1685 = vmul.f32 %v1557, 0.2
  %v1686 = vmul.f32 %v1558, 0.2
  %v1687 = vmul.f32 %v1559, 0.2
  %v1688 = vmul.f32 %v1560, 0.2
  %v1689 = vmul.f32 %v1561, 0.2
  %v1690 = vmul.f32 %v1562, 0.2
  %v1691 = vmul.f32 %v1563, 0.2
  %v1692 = vmul.f32 %v1564, 0.2
  %v1693 = vmul.f32 %v1565, 0.2
  %v1694 = vmul.f32 %v1566, 0.2
  %v1695 = vmul.f32 %v1567, 0.2
  %v1696 = vmul.f32 %v1568, 0.2
  %v1697 = vmul.f32 %v1569, 0.2
  %v1698 = vmul.f32 %v1570, 0.2
  %v1699 = vmul.f32 %v1571, 0.2
  %v1700 = vmul.f32 %v1572, 0.2
  %v1701 = vmul.f32 %v1573, 0.2
  %v1702 = vmul.f32 %v1574, 0.2
  %v1703 = vmul.f32 %v1575, 0.2
  %v1704 = vmul.f32 %v1576, 0.2
  %v1705 = vmul.f32 %v1577, 0.2
  %v1706 = vmul.f32 %v1578, 0.2
  %v1707 = vmul.f32 %v1579, 0.2
  %v1708 = vmul.f32 %v1580, 0.2
  %v1709 = vmul.f32 %v1581, 0.2
  %v1710 = vmul.f32 %v1582, 0.2
  %v1711 = vmul.f32 %v1583, 0.2
  %v1712 = vmul.f32 %v1584, 0.2
  %v1713 = vmul.f32 %v1585, 0.2
  %v1714 = vmul.f32 %v1586, 0.2
  %v1715 = vmul.f32 %v1587, 0.2
  %v1716 = vmul.f32 %v1588, 0.2
  %v1717 = vmul.f32 %v1589, 0.2
  %v1718 = vmul.f32 %v1590, 0.2
  %v1719 = vmul.f32 %v1591, 0.2
  %v1720 = vmul.f32 %v1592, 0.2
  %v1721 = vmul.f32 %v1593, 0.2
  %v1722 = vmul.f32 %v1594, 0.2
  %v1723 = vmul.f32 %v1595, 0.2
  %v1724 = vmul.f32 %v1596, 0.2
  %v1725 = vmul.f32 %v1597, 0.2
  %v1726 = vmul.f32 %v1598, 0.2
  %v1727 = vmul.f32 %v1599, 0.2
  %v1728 = vsel %vm1600, %v1536, %v1664
  %v1729 = vsel %vm1601, %v1537, %v1665
  %v1730 = vsel %vm1602, %v1538, %v1666
  %v1731 = vsel %vm1603, %v1539, %v1667
  %v1732 = vsel %vm1604, %v1540, %v1668
  %v1733 = vsel %vm1605, %v1541, %v1669
  %v1734 = vsel %vm1606, %v1542, %v1670
  %v1735 = vsel %vm1607, %v1543, %v1671
  %v1736 = vsel %vm1608, %v1544, %v1672
  %v1737 = vsel %vm1609, %v1545, %v1673
  %v1738 = vsel %vm1610, %v1546, %v1674
  %v1739 = vsel %vm1611, %v1547, %v1675
  %v1740 = vsel %vm1612, %v1548, %v1676
  %v1741 = vsel %vm1613, %v1549, %v1677
  %v1742 = vsel %vm1614, %v1550, %v1678
  %v1743 = vsel %vm1615, %v1551, %v1679
  %v1744 = vsel %vm1616, %v1552, %v1680
  %v1745 = vsel %vm1617, %v1553, %v1681
  %v1746 = vsel %vm1618, %v1554, %v1682
  %v1747 = vsel %vm1619, %v1555, %v1683
  %v1748 = vsel %vm1620, %v1556, %v1684
  %v1749 = vsel %vm1621, %v1557, %v1685
  %v1750 = vsel %vm1622, %v1558, %v1686
  %v1751 = vsel %vm1623, %v1559, %v1687
  %v1752 = vsel %vm1624, %v1560, %v1688
  %v1753 = vsel %vm1625, %v1561, %v1689
  %v1754 = vsel %vm1626, %v1562, %v1690
  %v1755 = vsel %vm1627, %v1563, %v1691
  %v1756 = vsel %vm1628, %v1564, %v1692
  %v1757 = vsel %vm1629, %v1565, %v1693
  %v1758 = vsel %vm1630, %v1566, %v1694
  %v1759 = vsel %vm1631, %v1567, %v1695
  %v1760 = vsel %vm1632, %v1568, %v1696
  %v1761 = vsel %vm1633, %v1569, %v1697
  %v1762 = vsel %vm1634, %v1570, %v1698
  %v1763 = vsel %vm1635, %v1571, %v1699
  %v1764 = vsel %vm1636, %v1572, %v1700
  %v1765 = vsel %vm1637, %v1573, %v1701
  %v1766 = vsel %vm1638, %v1574, %v1702
  %v1767 = vsel %vm1639, %v1575, %v1703
  %v1768 = vsel %vm1640, %v1576, %v1704
  %v1769 = vsel %vm1641, %v1577, %v1705
  %v1770 = vsel %vm1642, %v1578, %v1706
  %v1771 = vsel %vm1643, %v1579, %v1707
  %v1772 = vsel %vm1644, %v1580, %v1708
  %v1773 = vsel %vm1645, %v1581, %v1709
  %v1774 = vsel %vm1646, %v1582, %v1710
  %v1775 = vsel %vm1647, %v1583, %v1711
  %v1776 = vsel %vm1648, %v1584, %v1712
  %v1777 = vsel %vm1649, %v1585, %v1713
  %v1778 = vsel %vm1650, %v1586, %v1714
  %v1779 = vsel %vm1651, %v1587, %v1715
  %v1780 = vsel %vm1652, %v1588, %v1716
  %v1781 = vsel %vm1653, %v1589, %v1717
  %v1782 = vsel %vm1654, %v1590, %v1718
  %v1783 = vsel %vm1655, %v1591, %v1719
  %v1784 = vsel %vm1656, %v1592, %v1720
  %v1785 = vsel %vm1657, %v1593, %v1721
  %v1786 = vsel %vm1658, %v1594, %v1722
  %v1787 = vsel %vm1659, %v1595, %v1723
  %v1788 = vsel %vm1660, %v1596, %v1724
  %v1789 = vsel %vm1661, %v1597, %v1725
  %v1790 = vsel %vm1662, %v1598, %v1726
  %v1791 = vsel %vm1663, %v1599, %v1727
  %v1792 = vld [vmem:[%s6] sm:$0x1]
  %v1794 = vlaneseq
  %v1795 = vshrl.u32 %v1794, 7
  %v1796 = vsub.s32 0, %v1795
  %v1797 = vrot.slane %v1792, %v1796
  %v1799 = vmul.f32 %v1728, %v1797
  %v1800 = vmul.f32 %v1729, %v1797
  %v1801 = vmul.f32 %v1730, %v1797
  %v1802 = vmul.f32 %v1731, %v1797
  %v1803 = vmul.f32 %v1732, %v1797
  %v1804 = vmul.f32 %v1733, %v1797
  %v1805 = vmul.f32 %v1734, %v1797
  %v1806 = vmul.f32 %v1735, %v1797
  %v1807 = vmul.f32 %v1736, %v1797
  %v1808 = vmul.f32 %v1737, %v1797
  %v1809 = vmul.f32 %v1738, %v1797
  %v1810 = vmul.f32 %v1739, %v1797
  %v1811 = vmul.f32 %v1740, %v1797
  %v1812 = vmul.f32 %v1741, %v1797
  %v1813 = vmul.f32 %v1742, %v1797
  %v1814 = vmul.f32 %v1743, %v1797
  %v1815 = vmul.f32 %v1744, %v1797
  %v1816 = vmul.f32 %v1745, %v1797
  %v1817 = vmul.f32 %v1746, %v1797
  %v1818 = vmul.f32 %v1747, %v1797
  %v1819 = vmul.f32 %v1748, %v1797
  %v1820 = vmul.f32 %v1749, %v1797
  %v1821 = vmul.f32 %v1750, %v1797
  %v1822 = vmul.f32 %v1751, %v1797
  %v1823 = vmul.f32 %v1752, %v1797
  %v1824 = vmul.f32 %v1753, %v1797
  %v1825 = vmul.f32 %v1754, %v1797
  %v1826 = vmul.f32 %v1755, %v1797
  %v1827 = vmul.f32 %v1756, %v1797
  %v1828 = vmul.f32 %v1757, %v1797
  %v1829 = vmul.f32 %v1758, %v1797
  %v1830 = vmul.f32 %v1759, %v1797
  %v1831 = vmul.f32 %v1760, %v1797
  %v1832 = vmul.f32 %v1761, %v1797
  %v1833 = vmul.f32 %v1762, %v1797
  %v1834 = vmul.f32 %v1763, %v1797
  %v1835 = vmul.f32 %v1764, %v1797
  %v1836 = vmul.f32 %v1765, %v1797
  %v1837 = vmul.f32 %v1766, %v1797
  %v1838 = vmul.f32 %v1767, %v1797
  %v1839 = vmul.f32 %v1768, %v1797
  %v1840 = vmul.f32 %v1769, %v1797
  %v1841 = vmul.f32 %v1770, %v1797
  %v1842 = vmul.f32 %v1771, %v1797
  %v1843 = vmul.f32 %v1772, %v1797
  %v1844 = vmul.f32 %v1773, %v1797
  %v1845 = vmul.f32 %v1774, %v1797
  %v1846 = vmul.f32 %v1775, %v1797
  %v1847 = vmul.f32 %v1776, %v1797
  %v1848 = vmul.f32 %v1777, %v1797
  %v1849 = vmul.f32 %v1778, %v1797
  %v1850 = vmul.f32 %v1779, %v1797
  %v1851 = vmul.f32 %v1780, %v1797
  %v1852 = vmul.f32 %v1781, %v1797
  %v1853 = vmul.f32 %v1782, %v1797
  %v1854 = vmul.f32 %v1783, %v1797
  %v1855 = vmul.f32 %v1784, %v1797
  %v1856 = vmul.f32 %v1785, %v1797
  %v1857 = vmul.f32 %v1786, %v1797
  %v1858 = vmul.f32 %v1787, %v1797
  %v1859 = vmul.f32 %v1788, %v1797
  %v1860 = vmul.f32 %v1789, %v1797
  %v1861 = vmul.f32 %v1790, %v1797
  %v1862 = vmul.f32 %v1791, %v1797
  %1863 = vadd.xlane.f32.xlu0 %v1799
  %v1864 = vpop.xlane.xlu0 %1863
  %1865 = vadd.xlane.f32.xlu0 %v1800
  %v1866 = vpop.xlane.xlu0 %1865
  %1867 = vadd.xlane.f32.xlu0 %v1801
  %v1868 = vpop.xlane.xlu0 %1867
  %1869 = vadd.xlane.f32.xlu0 %v1802
  %v1870 = vpop.xlane.xlu0 %1869
  %1871 = vadd.xlane.f32.xlu0 %v1803
  %v1872 = vpop.xlane.xlu0 %1871
  %1873 = vadd.xlane.f32.xlu0 %v1804
  %v1874 = vpop.xlane.xlu0 %1873
  %1875 = vadd.xlane.f32.xlu0 %v1805
  %v1876 = vpop.xlane.xlu0 %1875
  %1877 = vadd.xlane.f32.xlu0 %v1806
  %v1878 = vpop.xlane.xlu0 %1877
  %1879 = vadd.xlane.f32.xlu0 %v1807
  %v1880 = vpop.xlane.xlu0 %1879
  %1881 = vadd.xlane.f32.xlu0 %v1808
  %v1882 = vpop.xlane.xlu0 %1881
  %1883 = vadd.xlane.f32.xlu0 %v1809
  %v1884 = vpop.xlane.xlu0 %1883
  %1885 = vadd.xlane.f32.xlu0 %v1810
  %v1886 = vpop.xlane.xlu0 %1885
  %1887 = vadd.xlane.f32.xlu0 %v1811
  %v1888 = vpop.xlane.xlu0 %1887
  %1889 = vadd.xlane.f32.xlu0 %v1812
  %v1890 = vpop.xlane.xlu0 %1889
  %1891 = vadd.xlane.f32.xlu0 %v1813
  %v1892 = vpop.xlane.xlu0 %1891
  %1893 = vadd.xlane.f32.xlu0 %v1814
  %v1894 = vpop.xlane.xlu0 %1893
  %1895 = vadd.xlane.f32.xlu0 %v1815
  %v1896 = vpop.xlane.xlu0 %1895
  %1897 = vadd.xlane.f32.xlu0 %v1816
  %v1898 = vpop.xlane.xlu0 %1897
  %1899 = vadd.xlane.f32.xlu0 %v1817
  %v1900 = vpop.xlane.xlu0 %1899
  %1901 = vadd.xlane.f32.xlu0 %v1818
  %v1902 = vpop.xlane.xlu0 %1901
  %1903 = vadd.xlane.f32.xlu0 %v1819
  %v1904 = vpop.xlane.xlu0 %1903
  %1905 = vadd.xlane.f32.xlu0 %v1820
  %v1906 = vpop.xlane.xlu0 %1905
  %1907 = vadd.xlane.f32.xlu0 %v1821
  %v1908 = vpop.xlane.xlu0 %1907
  %1909 = vadd.xlane.f32.xlu0 %v1822
  %v1910 = vpop.xlane.xlu0 %1909
  %1911 = vadd.xlane.f32.xlu0 %v1823
  %v1912 = vpop.xlane.xlu0 %1911
  %1913 = vadd.xlane.f32.xlu0 %v1824
  %v1914 = vpop.xlane.xlu0 %1913
  %1915 = vadd.xlane.f32.xlu0 %v1825
  %v1916 = vpop.xlane.xlu0 %1915
  %1917 = vadd.xlane.f32.xlu0 %v1826
  %v1918 = vpop.xlane.xlu0 %1917
  %1919 = vadd.xlane.f32.xlu0 %v1827
  %v1920 = vpop.xlane.xlu0 %1919
  %1921 = vadd.xlane.f32.xlu0 %v1828
  %v1922 = vpop.xlane.xlu0 %1921
  %1923 = vadd.xlane.f32.xlu0 %v1829
  %v1924 = vpop.xlane.xlu0 %1923
  %1925 = vadd.xlane.f32.xlu0 %v1830
  %v1926 = vpop.xlane.xlu0 %1925
  %1927 = vadd.xlane.f32.xlu0 %v1831
  %v1928 = vpop.xlane.xlu0 %1927
  %1929 = vadd.xlane.f32.xlu0 %v1832
  %v1930 = vpop.xlane.xlu0 %1929
  %1931 = vadd.xlane.f32.xlu0 %v1833
  %v1932 = vpop.xlane.xlu0 %1931
  %1933 = vadd.xlane.f32.xlu0 %v1834
  %v1934 = vpop.xlane.xlu0 %1933
  %1935 = vadd.xlane.f32.xlu0 %v1835
  %v1936 = vpop.xlane.xlu0 %1935
  %1937 = vadd.xlane.f32.xlu0 %v1836
  %v1938 = vpop.xlane.xlu0 %1937
  %1939 = vadd.xlane.f32.xlu0 %v1837
  %v1940 = vpop.xlane.xlu0 %1939
  %1941 = vadd.xlane.f32.xlu0 %v1838
  %v1942 = vpop.xlane.xlu0 %1941
  %1943 = vadd.xlane.f32.xlu0 %v1839
  %v1944 = vpop.xlane.xlu0 %1943
  %1945 = vadd.xlane.f32.xlu0 %v1840
  %v1946 = vpop.xlane.xlu0 %1945
  %1947 = vadd.xlane.f32.xlu0 %v1841
  %v1948 = vpop.xlane.xlu0 %1947
  %1949 = vadd.xlane.f32.xlu0 %v1842
  %v1950 = vpop.xlane.xlu0 %1949
  %1951 = vadd.xlane.f32.xlu0 %v1843
  %v1952 = vpop.xlane.xlu0 %1951
  %1953 = vadd.xlane.f32.xlu0 %v1844
  %v1954 = vpop.xlane.xlu0 %1953
  %1955 = vadd.xlane.f32.xlu0 %v1845
  %v1956 = vpop.xlane.xlu0 %1955
  %1957 = vadd.xlane.f32.xlu0 %v1846
  %v1958 = vpop.xlane.xlu0 %1957
  %1959 = vadd.xlane.f32.xlu0 %v1847
  %v1960 = vpop.xlane.xlu0 %1959
  %1961 = vadd.xlane.f32.xlu0 %v1848
  %v1962 = vpop.xlane.xlu0 %1961
  %1963 = vadd.xlane.f32.xlu0 %v1849
  %v1964 = vpop.xlane.xlu0 %1963
  %1965 = vadd.xlane.f32.xlu0 %v1850
  %v1966 = vpop.xlane.xlu0 %1965
  %1967 = vadd.xlane.f32.xlu0 %v1851
  %v1968 = vpop.xlane.xlu0 %1967
  %1969 = vadd.xlane.f32.xlu0 %v1852
  %v1970 = vpop.xlane.xlu0 %1969
  %1971 = vadd.xlane.f32.xlu0 %v1853
  %v1972 = vpop.xlane.xlu0 %1971
  %1973 = vadd.xlane.f32.xlu0 %v1854
  %v1974 = vpop.xlane.xlu0 %1973
  %1975 = vadd.xlane.f32.xlu0 %v1855
  %v1976 = vpop.xlane.xlu0 %1975
  %1977 = vadd.xlane.f32.xlu0 %v1856
  %v1978 = vpop.xlane.xlu0 %1977
  %1979 = vadd.xlane.f32.xlu0 %v1857
  %v1980 = vpop.xlane.xlu0 %1979
  %1981 = vadd.xlane.f32.xlu0 %v1858
  %v1982 = vpop.xlane.xlu0 %1981
  %1983 = vadd.xlane.f32.xlu0 %v1859
  %v1984 = vpop.xlane.xlu0 %1983
  %1985 = vadd.xlane.f32.xlu0 %v1860
  %v1986 = vpop.xlane.xlu0 %1985
  %1987 = vadd.xlane.f32.xlu0 %v1861
  %v1988 = vpop.xlane.xlu0 %1987
  %1989 = vadd.xlane.f32.xlu0 %v1862
  %v1990 = vpop.xlane.xlu0 %1989
  %vm1991 = vcmask 7168
  %1992 = vst.msk [vmem:[%s7] sm:$0xff] %vm1991, %v1864
  %1993 = vst.msk [vmem:[%s7 + $0x8] sm:$0xff] %vm1991, %v1866
  %1994 = vst.msk [vmem:[%s7 + $0x10] sm:$0xff] %vm1991, %v1868
  %1995 = vst.msk [vmem:[%s7 + $0x18] sm:$0xff] %vm1991, %v1870
  %1996 = vst.msk [vmem:[%s7 + $0x20] sm:$0xff] %vm1991, %v1872
  %1997 = vst.msk [vmem:[%s7 + $0x28] sm:$0xff] %vm1991, %v1874
  %1998 = vst.msk [vmem:[%s7 + $0x30] sm:$0xff] %vm1991, %v1876
  %1999 = vst.msk [vmem:[%s7 + $0x38] sm:$0xff] %vm1991, %v1878
  %2000 = vst.msk [vmem:[%s7 + $0x40] sm:$0xff] %vm1991, %v1880
  %2001 = vst.msk [vmem:[%s7 + $0x48] sm:$0xff] %vm1991, %v1882
  %2002 = vst.msk [vmem:[%s7 + $0x50] sm:$0xff] %vm1991, %v1884
  %2003 = vst.msk [vmem:[%s7 + $0x58] sm:$0xff] %vm1991, %v1886
  %2004 = vst.msk [vmem:[%s7 + $0x60] sm:$0xff] %vm1991, %v1888
  %2005 = vst.msk [vmem:[%s7 + $0x68] sm:$0xff] %vm1991, %v1890
  %2006 = vst.msk [vmem:[%s7 + $0x70] sm:$0xff] %vm1991, %v1892
  %2007 = vst.msk [vmem:[%s7 + $0x78] sm:$0xff] %vm1991, %v1894
  %2008 = vst.msk [vmem:[%s7 + $0x80] sm:$0xff] %vm1991, %v1896
  %2009 = vst.msk [vmem:[%s7 + $0x88] sm:$0xff] %vm1991, %v1898
  %2010 = vst.msk [vmem:[%s7 + $0x90] sm:$0xff] %vm1991, %v1900
  %2011 = vst.msk [vmem:[%s7 + $0x98] sm:$0xff] %vm1991, %v1902
  %2012 = vst.msk [vmem:[%s7 + $0xa0] sm:$0xff] %vm1991, %v1904
  %2013 = vst.msk [vmem:[%s7 + $0xa8] sm:$0xff] %vm1991, %v1906
  %2014 = vst.msk [vmem:[%s7 + $0xb0] sm:$0xff] %vm1991, %v1908
  %2015 = vst.msk [vmem:[%s7 + $0xb8] sm:$0xff] %vm1991, %v1910
  %2016 = vst.msk [vmem:[%s7 + $0xc0] sm:$0xff] %vm1991, %v1912
  %2017 = vst.msk [vmem:[%s7 + $0xc8] sm:$0xff] %vm1991, %v1914
  %2018 = vst.msk [vmem:[%s7 + $0xd0] sm:$0xff] %vm1991, %v1916
  %2019 = vst.msk [vmem:[%s7 + $0xd8] sm:$0xff] %vm1991, %v1918
  %2020 = vst.msk [vmem:[%s7 + $0xe0] sm:$0xff] %vm1991, %v1920
  %2021 = vst.msk [vmem:[%s7 + $0xe8] sm:$0xff] %vm1991, %v1922
  %2022 = vst.msk [vmem:[%s7 + $0xf0] sm:$0xff] %vm1991, %v1924
  %2023 = vst.msk [vmem:[%s7 + $0xf8] sm:$0xff] %vm1991, %v1926
  %2024 = vst.msk [vmem:[%s7 + $0x100] sm:$0xff] %vm1991, %v1928
  %2025 = vst.msk [vmem:[%s7 + $0x108] sm:$0xff] %vm1991, %v1930
  %2026 = vst.msk [vmem:[%s7 + $0x110] sm:$0xff] %vm1991, %v1932
  %2027 = vst.msk [vmem:[%s7 + $0x118] sm:$0xff] %vm1991, %v1934
  %2028 = vst.msk [vmem:[%s7 + $0x120] sm:$0xff] %vm1991, %v1936
  %2029 = vst.msk [vmem:[%s7 + $0x128] sm:$0xff] %vm1991, %v1938
  %2030 = vst.msk [vmem:[%s7 + $0x130] sm:$0xff] %vm1991, %v1940
  %2031 = vst.msk [vmem:[%s7 + $0x138] sm:$0xff] %vm1991, %v1942
  %2032 = vst.msk [vmem:[%s7 + $0x140] sm:$0xff] %vm1991, %v1944
  %2033 = vst.msk [vmem:[%s7 + $0x148] sm:$0xff] %vm1991, %v1946
  %2034 = vst.msk [vmem:[%s7 + $0x150] sm:$0xff] %vm1991, %v1948
  %2035 = vst.msk [vmem:[%s7 + $0x158] sm:$0xff] %vm1991, %v1950
  %2036 = vst.msk [vmem:[%s7 + $0x160] sm:$0xff] %vm1991, %v1952
  %2037 = vst.msk [vmem:[%s7 + $0x168] sm:$0xff] %vm1991, %v1954
  %2038 = vst.msk [vmem:[%s7 + $0x170] sm:$0xff] %vm1991, %v1956
  %2039 = vst.msk [vmem:[%s7 + $0x178] sm:$0xff] %vm1991, %v1958
  %2040 = vst.msk [vmem:[%s7 + $0x180] sm:$0xff] %vm1991, %v1960
  %2041 = vst.msk [vmem:[%s7 + $0x188] sm:$0xff] %vm1991, %v1962
  %2042 = vst.msk [vmem:[%s7 + $0x190] sm:$0xff] %vm1991, %v1964
  %2043 = vst.msk [vmem:[%s7 + $0x198] sm:$0xff] %vm1991, %v1966
  %2044 = vst.msk [vmem:[%s7 + $0x1a0] sm:$0xff] %vm1991, %v1968
  %2045 = vst.msk [vmem:[%s7 + $0x1a8] sm:$0xff] %vm1991, %v1970
  %2046 = vst.msk [vmem:[%s7 + $0x1b0] sm:$0xff] %vm1991, %v1972
  %2047 = vst.msk [vmem:[%s7 + $0x1b8] sm:$0xff] %vm1991, %v1974
  %2048 = vst.msk [vmem:[%s7 + $0x1c0] sm:$0xff] %vm1991, %v1976
  %2049 = vst.msk [vmem:[%s7 + $0x1c8] sm:$0xff] %vm1991, %v1978
  %2050 = vst.msk [vmem:[%s7 + $0x1d0] sm:$0xff] %vm1991, %v1980
  %2051 = vst.msk [vmem:[%s7 + $0x1d8] sm:$0xff] %vm1991, %v1982
  %2052 = vst.msk [vmem:[%s7 + $0x1e0] sm:$0xff] %vm1991, %v1984
  %2053 = vst.msk [vmem:[%s7 + $0x1e8] sm:$0xff] %vm1991, %v1986
  %2054 = vst.msk [vmem:[%s7 + $0x1f0] sm:$0xff] %vm1991, %v1988
  %2055 = vst.msk [vmem:[%s7 + $0x1f8] sm:$0xff] %vm1991, %v1990
  // Predicated region
  $region30: #{pixel_discriminator_forward.3} parent=0 // pred_check
    _
  $region31: #{pixel_discriminator_forward.3} parent=0 // pred_check_branch
    %2057 = sbr.rel (0) target = $region33
  $region32: #{pixel_discriminator_forward.3} parent=0 // pred_region
    _
  $region33: #{pixel_discriminator_forward.3} parent=0 // pred_fallthru
    _
  // Predicated region
  $region34: #{pixel_discriminator_forward.3} parent=0 // pred_check
    _
  $region35: #{pixel_discriminator_forward.3} parent=0 // pred_check_branch
    %2059 = sbr.rel (0) target = $region37
  $region36: #{pixel_discriminator_forward.3} parent=0 // pred_region
    _
  $region37: #{pixel_discriminator_forward.3} parent=0 // pred_fallthru
    _

</llo_original>
